<compile_context>
chip_gen: v7x
topology: tpu7x:2x2x1
jax: 0.10.0
libtpu: 0.0.40
codegen_flags: <defaults>
</compile_context>

<pallas_src>
import functools

import jax
import jax.numpy as jnp
from jax.experimental import pallas as pl
from jax.experimental.pallas import tpu as pltpu

_LANE = 128                        # TPU lane width; feature dims padded to multiples of this
_KERNEL_SIZE = 16                  # KPConv kernel points
_K_NEIGHBORS = 16                  # KNN K
_SIGMA = 0.3                       # KPConv linear influence bandwidth

# MXU operand dtype: bf16 is the fast path on all generations (f32 accumulation kept).
_MM_DTYPE = jnp.bfloat16

# deterministic (fixed, non-learned) kernel point disposition
# TODO(synk): real KPConv uses an optimized sphere-packing disposition for the kernel points.
_KPTS = 0.1 * jax.random.normal(jax.random.PRNGKey(1234), (_KERNEL_SIZE, 3), jnp.float32)


# --------------------------------------------------------------------------------------
# VMEM budget (per generation) and tiling helpers
# --------------------------------------------------------------------------------------
def _vmem_capacity_bytes():
    try:
        return int(pltpu.get_tpu_info().vmem_capacity_bytes)
    except Exception:
        return 64 * 1024 * 1024    # assume v7x's 64 MiB/TC when the query is unavailable


_VMEM_CAP = _vmem_capacity_bytes()
_VMEM_LIMIT = min(_VMEM_CAP * 3 // 4, 100 * 1024 * 1024)   # ~48 MiB v7x, ~96 MiB v5e/v6e
_TILE_BUDGET = _VMEM_LIMIT * 3 // 4                        # headroom for Mosaic scratch


def _ceil_to(n, m=_LANE):
    return ((n + m - 1) // m) * m


def _pick_k_tile(cin_p):
    """Reduction-axis tile: full cin when small, else the largest 128-multiple divisor."""
    if cin_p <= 1024:
        return cin_p
    for t in (1024, 512, 256, 128):
        if cin_p % t == 0:
            return t
    return cin_p


def _pick_col_tile(cout_p, tk, mm_it):
    """Prefer the full padded cout (weight block fetched once per row tile)."""
    tc = cout_p
    while tc > 128 and 2 * tk * tc * mm_it > _TILE_BUDGET // 3 and tc % 256 == 0:
        tc //= 2
    return tc


# --------------------------------------------------------------------------------------
# Pallas kernels: K-tiled matmul + fused BN / ReLU / residual epilogue
# --------------------------------------------------------------------------------------
def _mm_bn_kernel(x_ref, w_ref, s_ref, t_ref, o_ref, acc_ref, *, relu):
    k = pl.program_id(2)

    @pl.when(k == 0)
    def _():
        acc_ref[...] = jnp.zeros_like(acc_ref)

    acc_ref[...] += jnp.dot(x_ref[...], w_ref[...], preferred_element_type=jnp.float32)

    @pl.when(k == pl.num_programs(2) - 1)
    def _():
        y = acc_ref[...] * s_ref[...] + t_ref[...]
        if relu:
            y = jnp.maximum(y, 0.0)
        o_ref[...] = y.astype(o_ref.dtype)


def _mm_bn_res_kernel(x_ref, w_ref, s_ref, t_ref, sc_ref, o_ref, acc_ref):
    k = pl.program_id(2)

    @pl.when(k == 0)
    def _():
        acc_ref[...] = jnp.zeros_like(acc_ref)

    acc_ref[...] += jnp.dot(x_ref[...], w_ref[...], preferred_element_type=jnp.float32)

    @pl.when(k == pl.num_programs(2) - 1)
    def _():
        y = acc_ref[...] * s_ref[...] + t_ref[...]
        o_ref[...] = jnp.maximum(y + sc_ref[...].astype(jnp.float32), 0.0).astype(o_ref.dtype)


def fused_matmul_bn(x2d, w, scale, shift, *, shortcut=None, relu=True,
                    out_dtype=jnp.float32):
    """(rows, Cin) @ (Cin, Cout) -> *scale + shift [-> +shortcut] [-> ReLU].

    All feature dims lane-padded.  Grid = (row tiles, col tiles, K tiles) with the reduction
    axis last ('arbitrary') and an f32 VMEM accumulator.
    """
    rows, cin_p = x2d.shape
    cout_p = w.shape[1]
    mm_it = jnp.dtype(_MM_DTYPE).itemsize
    out_it = jnp.dtype(out_dtype).itemsize
    sc_it = 0 if shortcut is None else jnp.dtype(shortcut.dtype).itemsize

    tk = _pick_k_tile(cin_p)
    tc = _pick_col_tile(cout_p, tk, mm_it)

    # per-row live bytes, counting Pallas's 2x double-buffering of every streamed block,
    # plus the (double-buffered) weight + scale/shift blocks and the accumulator scratch.
    per_row = 2 * tk * mm_it + 2 * tc * out_it + tc * 4 + 2 * tc * sc_it
    fixed = 2 * tk * tc * mm_it + 4 * tc * 4
    cap = _ceil_to(rows, 8)
    tr = 8
    for t in (1024, 512, 256, 128, 64, 32, 16, 8):
        if t <= cap and fixed + t * per_row <= _TILE_BUDGET:
            tr = t
            break
    # keep >=2 row tiles so the leading 'parallel' axis can feed both v7x TensorCores
    while tr >= 16 and -(-rows // tr) < 2:
        tr //= 2
    rows_p = -(-rows // tr) * tr          # pad rows instead of a whole-rows VMEM fallback

    x2d = x2d.astype(_MM_DTYPE)
    if rows_p != rows:
        x2d = jnp.pad(x2d, ((0, rows_p - rows), (0, 0)))

    operands = [x2d, w.astype(_MM_DTYPE), scale, shift]
    in_specs = [
        pl.BlockSpec((tr, tk), lambda i, j, k: (i, k)),
        pl.BlockSpec((tk, tc), lambda i, j, k: (k, j)),
        pl.BlockSpec((1, tc), lambda i, j, k: (0, j)),
        pl.BlockSpec((1, tc), lambda i, j, k: (0, j)),
    ]
    if shortcut is None:
        kernel = functools.partial(_mm_bn_kernel, relu=relu)
    else:
        if rows_p != rows:
            shortcut = jnp.pad(shortcut, ((0, rows_p - rows), (0, 0)))
        operands.append(shortcut)
        in_specs.append(pl.BlockSpec((tr, tc), lambda i, j, k: (i, j)))
        kernel = _mm_bn_res_kernel

    out = pl.pallas_call(
        kernel,
        out_shape=jax.ShapeDtypeStruct((rows_p, cout_p), out_dtype),
        grid_spec=pltpu.PrefetchScalarGridSpec(
            num_scalar_prefetch=0,
            grid=(rows_p // tr, cout_p // tc, cin_p // tk),
            in_specs=in_specs,
            out_specs=pl.BlockSpec((tr, tc), lambda i, j, k: (i, j)),
            scratch_shapes=[pltpu.VMEM((tr, tc), jnp.float32)],
        ),
        compiler_params=pltpu.CompilerParams(
            dimension_semantics=("parallel", "parallel", "arbitrary"),
            vmem_limit_bytes=_VMEM_LIMIT),
    )(*operands)
    return out[:rows] if rows_p != rows else out


# --------------------------------------------------------------------------------------
# JAX glue: search / subsample / gather (data-dependent indexing stays in XLA)
# --------------------------------------------------------------------------------------
def knn_indices(support_pts, points, K):
    K = min(K, points.shape[1])          # never request more neighbors than points exist
    d = jnp.sum((support_pts[:, :, None, :] - points[:, None, :, :]) ** 2, axis=-1)
    _, idx = jax.lax.top_k(-d, K)
    return idx.astype(jnp.int32)         # (B, Ns, K)


def subsample(points, npoints):
    # TODO(synk): deterministic strided subsampling stands in for quantized / FPS search;
    # stride>1 search is not modelled.
    n = points.shape[1]
    npoints = min(npoints, n)
    idx = jnp.arange(npoints, dtype=jnp.int32) * (n // npoints)
    return points[:, idx, :]


def gather_neighbors(arr, idx):
    # arr (B, N, D), idx (B, Ns, K) -> (B, Ns, K, D)
    B, Ns, K = idx.shape
    flat = jnp.take_along_axis(arr, idx.reshape(B, Ns * K, 1), axis=1)
    return flat.reshape(B, Ns, K, arr.shape[-1])


# --------------------------------------------------------------------------------------
# Padding / parameter-folding helpers (keep the compute path lane-dense)
# --------------------------------------------------------------------------------------
def _pad_channels(x, c_pad):
    c = x.shape[-1]
    if c == c_pad:
        return x
    return jnp.pad(x, [(0, 0)] * (x.ndim - 1) + [(0, c_pad - c)])


def _pad_weight(w, cin_p, cout_p):
    cin, cout = w.shape
    return jnp.pad(w, ((0, cin_p - cin), (0, cout_p - cout)))


def _pad_kp_weight(w, cin_p, cout_p):
    kp, cin, cout = w.shape
    wp = jnp.pad(w, ((0, 0), (0, cin_p - cin), (0, cout_p - cout)))
    return wp.reshape(kp * cin_p, cout_p)       # one big (KP*Cin, Cout) MXU operand


def _fold_affine(bias, p_bn, cout, cout_p):
    """Fold conv bias + eval-BatchNorm into a single (scale, shift), padded to lane width."""
    if p_bn is None:
        scale = jnp.ones((1, cout), jnp.float32)
        shift = jnp.zeros((1, cout), jnp.float32)
    else:
        scale, shift = p_bn['scale'], p_bn['shift']
    if bias is not None:
        shift = bias * scale + shift            # (xW + b)*s + t == (xW)*s + (b*s + t)
    scale = jnp.pad(scale, ((0, 0), (0, cout_p - cout)), constant_values=1.0)
    shift = jnp.pad(shift, ((0, 0), (0, cout_p - cout)))
    return scale, shift


# --------------------------------------------------------------------------------------
# ResnetBlock forward
# --------------------------------------------------------------------------------------
def resnet_block(p, x, input_pts, support_points=None, indices=None,
                 npoints=-1, K=_K_NEIGHBORS):
    """Channel-last ResnetBlock forward.  x: (B, N, Cin) or None.  Returns (out, pts, ids)."""
    # --- search (lcp Search): support points + KNN indices ------------------------------
    if support_points is None:
        support_points = subsample(input_pts, npoints) if npoints > 0 else input_pts
    if indices is None:
        indices = knn_indices(support_points, input_pts, K)
    if x is None:
        return None, support_points, indices

    B, N, cin = x.shape
    Ns = indices.shape[1]
    hid = p['cv0']['w'].shape[1]
    cout = p['cv2']['w'].shape[1]
    cin_p, hid_p, cout_p = _ceil_to(cin), _ceil_to(hid), _ceil_to(cout)

    xp = _pad_channels(x, cin_p)                                        # f32 channel-last

    # --- cv0 (1x1) + bn0 + relu -> bf16 intermediate --------------------------------------
    w0 = _pad_weight(p['cv0']['w'], cin_p, hid_p)
    s0, t0 = _fold_affine(p['cv0']['b'], p['bn0'], hid, hid_p)
    h = fused_matmul_bn(xp.reshape(B * N, cin_p), w0, s0, t0,
                        relu=True, out_dtype=_MM_DTYPE).reshape(B, N, hid_p)

    # --- cv1: KPConv + bn1 + relu (lcp_nn.Conv) ------------------------------------------
    # kernel-point influences (linear correlation) from relative neighbor positions
    rel = gather_neighbors(input_pts, indices) - support_points[:, :, None, :]      # (B,Ns,K,3)
    dist = jnp.sqrt(jnp.sum((rel[:, :, :, None, :] - _KPTS[None, None, None]) ** 2, axis=-1))
    infl = jnp.maximum(0.0, 1.0 - dist / _SIGMA).astype(_MM_DTYPE)                  # (B,Ns,K,KP)
    feats = gather_neighbors(h, indices)                                            # bf16
    # contract K here so XLA fuses the neighbor gather with the reduce (the K-inflated gathered
    # tensor never round-trips HBM); agg lands in HBM as bf16.
    # TODO(synk): an in-kernel gather (scalar-prefetched indices + manual DMA) would also keep
    # the (B,Ns,KP,C) aggregated intermediate out of HBM entirely.
    agg = jnp.einsum('bnkp,bnkc->bnpc', infl, feats,
                     preferred_element_type=jnp.float32).astype(_MM_DTYPE)
    agg = agg.reshape(B * Ns, _KERNEL_SIZE * hid_p)
    w1 = _pad_kp_weight(p['cv1']['w'], hid_p, hid_p)                                # (KP*C, C)
    s1, t1 = _fold_affine(p['cv1']['b'], p['bn1'], hid, hid_p)
    h = fused_matmul_bn(agg, w1, s1, t1, relu=True, out_dtype=_MM_DTYPE)            # (B*Ns, C)

    # --- shortcut projection (short + bn_short) when the channel count changes -----------
    shortcut = xp
    if 'short' in p:
        ws = _pad_weight(p['short']['w'], cin_p, cout_p)
        ss, ts = _fold_affine(p['short']['b'], p['bn_short'], cout, cout_p)
        shortcut = fused_matmul_bn(shortcut.reshape(B * N, cin_p), ws, ss, ts,
                                   relu=False).reshape(B, N, cout_p)

    # --- shortcut neighborhood max-pool (downsampling) done in XLA: gather+reduce fuse, so
    # the 16x-inflated gathered shortcut never hits HBM and the residual kernel stays lean.
    if npoints > 0:
        shortcut = jnp.max(gather_neighbors(shortcut, indices), axis=2)             # (B,Ns,Cout)
    sc = shortcut.reshape(B * Ns, cout_p)

    # --- cv2 + bn2 + residual add + relu, fused -------------------------------------------
    w2 = _pad_weight(p['cv2']['w'], hid_p, cout_p)
    s2, t2 = _fold_affine(p['cv2']['b'], p['bn2'], cout, cout_p)
    out = fused_matmul_bn(h, w2, s2, t2, shortcut=sc).reshape(B, Ns, cout_p)
    return out[..., :cout], support_points, indices


def resnet_block_forward(params, x_ncw, input_pts, support_points=None, indices=None,
                         npoints=-1, K=_K_NEIGHBORS):
    """Matches ResnetBlock.forward: x is (B, C, N) NCW; returns ((B, Cout, Ns), pts, ids)."""
    x = None if x_ncw is None else jnp.transpose(x_ncw, (0, 2, 1))
    out, pts, ids = resnet_block(params, x, input_pts, support_points, indices,
                                 npoints=npoints, K=K)
    out_ncw = None if out is None else jnp.transpose(out, (0, 2, 1))
    return out_ncw, pts, ids


# --------------------------------------------------------------------------------------
# Parameter init (deterministic, synthetic)
# --------------------------------------------------------------------------------------
class _KeyGen:
    def __init__(self, seed):
        self._key = jax.random.PRNGKey(seed)

    def __call__(self):
        self._key, sub = jax.random.split(self._key)
        return sub


def init_conv1x1(kg, cin, cout):
    w = jax.random.normal(kg(), (cin, cout), jnp.float32) / jnp.sqrt(float(cin))
    b = 0.01 * jax.random.normal(kg(), (1, cout), jnp.float32)
    return {'w': w, 'b': b}


def init_bn(kg, c):
    gamma = 1.0 + 0.1 * jax.random.normal(kg(), (1, c), jnp.float32)
    beta = 0.1 * jax.random.normal(kg(), (1, c), jnp.float32)
    mean = 0.05 * jax.random.normal(kg(), (1, c), jnp.float32)
    var = 1.0 + 0.1 * jax.random.uniform(kg(), (1, c), jnp.float32)
    scale = gamma / jnp.sqrt(var + 1e-5)
    shift = beta - mean * scale
    return {'scale': scale, 'shift': shift}


def init_kpconv(kg, cin, cout, n_kp=_KERNEL_SIZE):
    w = jax.random.normal(kg(), (n_kp, cin, cout), jnp.float32) / jnp.sqrt(float(cin * n_kp))
    b = 0.01 * jax.random.normal(kg(), (1, cout), jnp.float32)
    return {'w': w, 'b': b}


def init_resnet_block(kg, cin, cout):
    p = {
        'cv0': init_conv1x1(kg, cin, cin // 2),
        'bn0': init_bn(kg, cin // 2),
        'cv1': init_kpconv(kg, cin // 2, cin // 2),
        'bn1': init_bn(kg, cin // 2),
        'cv2': init_conv1x1(kg, cin // 2, cout),
        'bn2': init_bn(kg, cout),
    }
    if cout != cin:
        p['short'] = init_conv1x1(kg, cin, cout)
        p['bn_short'] = init_bn(kg, cout)
    return p


# --------------------------------------------------------------------------------------
# Demo
# --------------------------------------------------------------------------------------
if __name__ == "__main__":
    B, N, K = 2, 256, 16
    in_channels, out_channels = 64, 128
    npoints = 64                                   # K <= npoints <= N, so KNN is always valid

    key = jax.random.PRNGKey(0)
    kx, kp = jax.random.split(key)
    x = jax.random.normal(kx, (B, in_channels, N), jnp.float32)       # NCW, like nn.Conv1d
    input_pts = jax.random.uniform(kp, (B, N, 3), jnp.float32)

    kg = _KeyGen(0)
    params_down = init_resnet_block(kg, in_channels, out_channels)    # projection shortcut + pool
    params_same = init_resnet_block(kg, out_channels, out_channels)   # identity shortcut, no pool

    fwd_down = jax.jit(functools.partial(resnet_block_forward, npoints=npoints, K=K))
    fwd_same = jax.jit(functools.partial(resnet_block_forward, K=K))

    y1, pts1, ids1 = fwd_down(params_down, x, input_pts)
    y2, pts2, ids2 = fwd_same(params_same, y1, pts1)
    jax.block_until_ready((y1, y2))

    assert y1.shape == (B, out_channels, npoints), y1.shape
    assert pts1.shape == (B, npoints, 3), pts1.shape
    assert ids1.shape == (B, npoints, K), ids1.shape
    assert y2.shape == (B, out_channels, npoints), y2.shape
    assert bool(jnp.all(jnp.isfinite(y1))) and bool(jnp.all(jnp.isfinite(y2)))
    print("KERNEL_OK")
</pallas_src>

<mosaic_0001>
module attributes {stable_mosaic.version = 11 : i64} {
  func.func @_mm_bn_kernel(%arg0: i32, %arg1: i32, %arg2: i32, %arg3: memref<256x128xbf16, #tpu.memory_space<vmem>>, %arg4: memref<128x128xbf16, #tpu.memory_space<vmem>>, %arg5: memref<1x128xf32, #tpu.memory_space<vmem>>, %arg6: memref<1x128xf32, #tpu.memory_space<vmem>>, %arg7: memref<256x128xbf16, #tpu.memory_space<vmem>>, %arg8: memref<256x128xf32, #tpu.memory_space<vmem>>) attributes {dimension_semantics = [#tpu.dimension_semantics<parallel>, #tpu.dimension_semantics<parallel>, #tpu.dimension_semantics<arbitrary>], iteration_bounds = array<i64: 2, 1, 1>, scalar_prefetch = 0 : i64, scratch_operands = 1 : i64, tpu.core_type = #tpu.core_type<tc>, window_params = [{transform_indices = @transform_0, window_bounds = array<i64: 256, 128>}, {transform_indices = @transform_1, window_bounds = array<i64: 128, 128>}, {transform_indices = @transform_2, window_bounds = array<i64: 1, 128>}, {transform_indices = @transform_3, window_bounds = array<i64: 1, 128>}, {transform_indices = @transform_4, window_bounds = array<i64: 256, 128>}]} {
    %c0_i32 = arith.constant 0 : i32
    %0 = arith.cmpi eq, %arg2, %c0_i32 : i32
    %1 = arith.extui %0 : i1 to i32
    %c0_i32_0 = arith.constant 0 : i32
    %2 = arith.cmpi ne, %1, %c0_i32_0 : i32
    scf.if %2 {
      %cst_10 = arith.constant 0.000000e+00 : f32
      %12 = vector.broadcast %cst_10 : f32 to vector<256x128xf32>
      %c0_11 = arith.constant 0 : index
      %c0_12 = arith.constant 0 : index
      %13 = vector.load %arg8[%c0_11, %c0_12] : memref<256x128xf32, #tpu.memory_space<vmem>>, vector<256x128xf32>
      tpu.vector_store %arg8[%c0_11, %c0_12], %12 {strides = array<i32>} : memref<256x128xf32, #tpu.memory_space<vmem>>, vector<256x128xf32>,
    } else {
    }
    %c0 = arith.constant 0 : index
    %c0_1 = arith.constant 0 : index
    %3 = vector.load %arg8[%c0, %c0_1] : memref<256x128xf32, #tpu.memory_space<vmem>>, vector<256x128xf32>
    %c0_2 = arith.constant 0 : index
    %c0_3 = arith.constant 0 : index
    %4 = vector.load %arg3[%c0_2, %c0_3] : memref<256x128xbf16, #tpu.memory_space<vmem>>, vector<256x128xbf16>
    %c0_4 = arith.constant 0 : index
    %c0_5 = arith.constant 0 : index
    %5 = vector.load %arg4[%c0_4, %c0_5] : memref<128x128xbf16, #tpu.memory_space<vmem>>, vector<128x128xbf16>
    %cst = arith.constant dense<0.000000e+00> : vector<256x128xf32>
    %6 = tpu.matmul %4, %5, %cst {dimension_numbers = #tpu.dot_dimension_numbers<[1], [0], [0], [1], [0, 0, 1, 1], [], []>} : vector<256x128xbf16>, vector<128x128xbf16>, vector<256x128xf32> -> vector<256x128xf32>
    %7 = arith.addf %3, %6 : vector<256x128xf32>
    %c0_6 = arith.constant 0 : index
    %c0_7 = arith.constant 0 : index
    %8 = vector.load %arg8[%c0_6, %c0_7] : memref<256x128xf32, #tpu.memory_space<vmem>>, vector<256x128xf32>
    tpu.vector_store %arg8[%c0_6, %c0_7], %7 {strides = array<i32>} : memref<256x128xf32, #tpu.memory_space<vmem>>, vector<256x128xf32>,
    %c0_i32_8 = arith.constant 0 : i32
    %9 = arith.cmpi eq, %arg2, %c0_i32_8 : i32
    %10 = arith.extui %9 : i1 to i32
    %c0_i32_9 = arith.constant 0 : i32
    %11 = arith.cmpi ne, %10, %c0_i32_9 : i32
    scf.if %11 {
      %c0_10 = arith.constant 0 : index
      %c0_11 = arith.constant 0 : index
      %12 = vector.load %arg8[%c0_10, %c0_11] : memref<256x128xf32, #tpu.memory_space<vmem>>, vector<256x128xf32>
      %c0_12 = arith.constant 0 : index
      %c0_13 = arith.constant 0 : index
      %13 = vector.load %arg5[%c0_12, %c0_13] : memref<1x128xf32, #tpu.memory_space<vmem>>, vector<1x128xf32>
      %14 = vector.broadcast %13 : vector<1x128xf32> to vector<256x128xf32>
      %15 = arith.mulf %12, %14 : vector<256x128xf32>
      %c0_14 = arith.constant 0 : index
      %c0_15 = arith.constant 0 : index
      %16 = vector.load %arg6[%c0_14, %c0_15] : memref<1x128xf32, #tpu.memory_space<vmem>>, vector<1x128xf32>
      %17 = vector.broadcast %16 : vector<1x128xf32> to vector<256x128xf32>
      %18 = arith.addf %15, %17 : vector<256x128xf32>
      %cst_16 = arith.constant 0.000000e+00 : f32
      %19 = vector.broadcast %cst_16 : f32 to vector<256x128xf32>
      %20 = arith.maximumf %18, %19 : vector<256x128xf32>
      %21 = arith.truncf %20 : vector<256x128xf32> to vector<256x128xbf16>
      %c0_17 = arith.constant 0 : index
      %c0_18 = arith.constant 0 : index
      %22 = vector.load %arg7[%c0_17, %c0_18] : memref<256x128xbf16, #tpu.memory_space<vmem>>, vector<256x128xbf16>
      tpu.vector_store %arg7[%c0_17, %c0_18], %21 {strides = array<i32>} : memref<256x128xbf16, #tpu.memory_space<vmem>>, vector<256x128xbf16>,
    } else {
    }
    return
  }
  func.func @transform_0(%arg0: i32, %arg1: i32, %arg2: i32) -> (i32, i32) {
    %c0_i32 = arith.constant 0 : i32
    return %arg0, %arg2 : i32, i32
  }
  func.func @transform_1(%arg0: i32, %arg1: i32, %arg2: i32) -> (i32, i32) {
    %c0_i32 = arith.constant 0 : i32
    return %arg2, %arg1 : i32, i32
  }
  func.func @transform_2(%arg0: i32, %arg1: i32, %arg2: i32) -> (i32, i32) {
    %c0_i32 = arith.constant 0 : i32
    %c0_i32_0 = arith.constant 0 : i32
    return %c0_i32, %arg1 : i32, i32
  }
  func.func @transform_3(%arg0: i32, %arg1: i32, %arg2: i32) -> (i32, i32) {
    %c0_i32 = arith.constant 0 : i32
    %c0_i32_0 = arith.constant 0 : i32
    return %c0_i32, %arg1 : i32, i32
  }
  func.func @transform_4(%arg0: i32, %arg1: i32, %arg2: i32) -> (i32, i32) {
    %c0_i32 = arith.constant 0 : i32
    return %arg0, %arg1 : i32, i32
  }
}

module attributes {stable_mosaic.version = 11 : i64} {
  func.func @_mm_bn_kernel(%arg0: i32, %arg1: i32, %arg2: i32, %arg3: memref<64x1024xbf16, #tpu.memory_space<vmem>>, %arg4: memref<1024x128xbf16, #tpu.memory_space<vmem>>, %arg5: memref<1x128xf32, #tpu.memory_space<vmem>>, %arg6: memref<1x128xf32, #tpu.memory_space<vmem>>, %arg7: memref<64x128xbf16, #tpu.memory_space<vmem>>, %arg8: memref<64x128xf32, #tpu.memory_space<vmem>>) attributes {dimension_semantics = [#tpu.dimension_semantics<parallel>, #tpu.dimension_semantics<parallel>, #tpu.dimension_semantics<arbitrary>], iteration_bounds = array<i64: 2, 1, 2>, scalar_prefetch = 0 : i64, scratch_operands = 1 : i64, tpu.core_type = #tpu.core_type<tc>, window_params = [{transform_indices = @transform_0, window_bounds = array<i64: 64, 1024>}, {transform_indices = @transform_1, window_bounds = array<i64: 1024, 128>}, {transform_indices = @transform_2, window_bounds = array<i64: 1, 128>}, {transform_indices = @transform_3, window_bounds = array<i64: 1, 128>}, {transform_indices = @transform_4, window_bounds = array<i64: 64, 128>}]} {
    %c0_i32 = arith.constant 0 : i32
    %0 = arith.cmpi eq, %arg2, %c0_i32 : i32
    %1 = arith.extui %0 : i1 to i32
    %c0_i32_0 = arith.constant 0 : i32
    %2 = arith.cmpi ne, %1, %c0_i32_0 : i32
    scf.if %2 {
      %cst_9 = arith.constant 0.000000e+00 : f32
      %12 = vector.broadcast %cst_9 : f32 to vector<64x128xf32>
      %c0_10 = arith.constant 0 : index
      %c0_11 = arith.constant 0 : index
      %13 = vector.load %arg8[%c0_10, %c0_11] : memref<64x128xf32, #tpu.memory_space<vmem>>, vector<64x128xf32>
      tpu.vector_store %arg8[%c0_10, %c0_11], %12 {strides = array<i32>} : memref<64x128xf32, #tpu.memory_space<vmem>>, vector<64x128xf32>,
    } else {
    }
    %c0 = arith.constant 0 : index
    %c0_1 = arith.constant 0 : index
    %3 = vector.load %arg8[%c0, %c0_1] : memref<64x128xf32, #tpu.memory_space<vmem>>, vector<64x128xf32>
    %c0_2 = arith.constant 0 : index
    %c0_3 = arith.constant 0 : index
    %4 = vector.load %arg3[%c0_2, %c0_3] : memref<64x1024xbf16, #tpu.memory_space<vmem>>, vector<64x1024xbf16>
    %c0_4 = arith.constant 0 : index
    %c0_5 = arith.constant 0 : index
    %5 = vector.load %arg4[%c0_4, %c0_5] : memref<1024x128xbf16, #tpu.memory_space<vmem>>, vector<1024x128xbf16>
    %cst = arith.constant dense<0.000000e+00> : vector<64x128xf32>
    %6 = tpu.matmul %4, %5, %cst {dimension_numbers = #tpu.dot_dimension_numbers<[1], [0], [0], [1], [0, 0, 1, 1], [], []>} : vector<64x1024xbf16>, vector<1024x128xbf16>, vector<64x128xf32> -> vector<64x128xf32>
    %7 = arith.addf %3, %6 : vector<64x128xf32>
    %c0_6 = arith.constant 0 : index
    %c0_7 = arith.constant 0 : index
    %8 = vector.load %arg8[%c0_6, %c0_7] : memref<64x128xf32, #tpu.memory_space<vmem>>, vector<64x128xf32>
    tpu.vector_store %arg8[%c0_6, %c0_7], %7 {strides = array<i32>} : memref<64x128xf32, #tpu.memory_space<vmem>>, vector<64x128xf32>,
    %c1_i32 = arith.constant 1 : i32
    %9 = arith.cmpi eq, %arg2, %c1_i32 : i32
    %10 = arith.extui %9 : i1 to i32
    %c0_i32_8 = arith.constant 0 : i32
    %11 = arith.cmpi ne, %10, %c0_i32_8 : i32
    scf.if %11 {
      %c0_9 = arith.constant 0 : index
      %c0_10 = arith.constant 0 : index
      %12 = vector.load %arg8[%c0_9, %c0_10] : memref<64x128xf32, #tpu.memory_space<vmem>>, vector<64x128xf32>
      %c0_11 = arith.constant 0 : index
      %c0_12 = arith.constant 0 : index
      %13 = vector.load %arg5[%c0_11, %c0_12] : memref<1x128xf32, #tpu.memory_space<vmem>>, vector<1x128xf32>
      %14 = vector.broadcast %13 : vector<1x128xf32> to vector<64x128xf32>
      %15 = arith.mulf %12, %14 : vector<64x128xf32>
      %c0_13 = arith.constant 0 : index
      %c0_14 = arith.constant 0 : index
      %16 = vector.load %arg6[%c0_13, %c0_14] : memref<1x128xf32, #tpu.memory_space<vmem>>, vector<1x128xf32>
      %17 = vector.broadcast %16 : vector<1x128xf32> to vector<64x128xf32>
      %18 = arith.addf %15, %17 : vector<64x128xf32>
      %cst_15 = arith.constant 0.000000e+00 : f32
      %19 = vector.broadcast %cst_15 : f32 to vector<64x128xf32>
      %20 = arith.maximumf %18, %19 : vector<64x128xf32>
      %21 = arith.truncf %20 : vector<64x128xf32> to vector<64x128xbf16>
      %c0_16 = arith.constant 0 : index
      %c0_17 = arith.constant 0 : index
      %22 = vector.load %arg7[%c0_16, %c0_17] : memref<64x128xbf16, #tpu.memory_space<vmem>>, vector<64x128xbf16>
      tpu.vector_store %arg7[%c0_16, %c0_17], %21 {strides = array<i32>} : memref<64x128xbf16, #tpu.memory_space<vmem>>, vector<64x128xbf16>,
    } else {
    }
    return
  }
  func.func @transform_0(%arg0: i32, %arg1: i32, %arg2: i32) -> (i32, i32) {
    %c0_i32 = arith.constant 0 : i32
    return %arg0, %arg2 : i32, i32
  }
  func.func @transform_1(%arg0: i32, %arg1: i32, %arg2: i32) -> (i32, i32) {
    %c0_i32 = arith.constant 0 : i32
    return %arg2, %arg1 : i32, i32
  }
  func.func @transform_2(%arg0: i32, %arg1: i32, %arg2: i32) -> (i32, i32) {
    %c0_i32 = arith.constant 0 : i32
    %c0_i32_0 = arith.constant 0 : i32
    return %c0_i32, %arg1 : i32, i32
  }
  func.func @transform_3(%arg0: i32, %arg1: i32, %arg2: i32) -> (i32, i32) {
    %c0_i32 = arith.constant 0 : i32
    %c0_i32_0 = arith.constant 0 : i32
    return %c0_i32, %arg1 : i32, i32
  }
  func.func @transform_4(%arg0: i32, %arg1: i32, %arg2: i32) -> (i32, i32) {
    %c0_i32 = arith.constant 0 : i32
    return %arg0, %arg1 : i32, i32
  }
}

module attributes {stable_mosaic.version = 11 : i64} {
  func.func @_mm_bn_kernel(%arg0: i32, %arg1: i32, %arg2: i32, %arg3: memref<256x128xbf16, #tpu.memory_space<vmem>>, %arg4: memref<128x128xbf16, #tpu.memory_space<vmem>>, %arg5: memref<1x128xf32, #tpu.memory_space<vmem>>, %arg6: memref<1x128xf32, #tpu.memory_space<vmem>>, %arg7: memref<256x128xf32, #tpu.memory_space<vmem>>, %arg8: memref<256x128xf32, #tpu.memory_space<vmem>>) attributes {dimension_semantics = [#tpu.dimension_semantics<parallel>, #tpu.dimension_semantics<parallel>, #tpu.dimension_semantics<arbitrary>], iteration_bounds = array<i64: 2, 1, 1>, scalar_prefetch = 0 : i64, scratch_operands = 1 : i64, tpu.core_type = #tpu.core_type<tc>, window_params = [{transform_indices = @transform_0, window_bounds = array<i64: 256, 128>}, {transform_indices = @transform_1, window_bounds = array<i64: 128, 128>}, {transform_indices = @transform_2, window_bounds = array<i64: 1, 128>}, {transform_indices = @transform_3, window_bounds = array<i64: 1, 128>}, {transform_indices = @transform_4, window_bounds = array<i64: 256, 128>}]} {
    %c0_i32 = arith.constant 0 : i32
    %0 = arith.cmpi eq, %arg2, %c0_i32 : i32
    %1 = arith.extui %0 : i1 to i32
    %c0_i32_0 = arith.constant 0 : i32
    %2 = arith.cmpi ne, %1, %c0_i32_0 : i32
    scf.if %2 {
      %cst_10 = arith.constant 0.000000e+00 : f32
      %12 = vector.broadcast %cst_10 : f32 to vector<256x128xf32>
      %c0_11 = arith.constant 0 : index
      %c0_12 = arith.constant 0 : index
      %13 = vector.load %arg8[%c0_11, %c0_12] : memref<256x128xf32, #tpu.memory_space<vmem>>, vector<256x128xf32>
      tpu.vector_store %arg8[%c0_11, %c0_12], %12 {strides = array<i32>} : memref<256x128xf32, #tpu.memory_space<vmem>>, vector<256x128xf32>,
    } else {
    }
    %c0 = arith.constant 0 : index
    %c0_1 = arith.constant 0 : index
    %3 = vector.load %arg8[%c0, %c0_1] : memref<256x128xf32, #tpu.memory_space<vmem>>, vector<256x128xf32>
    %c0_2 = arith.constant 0 : index
    %c0_3 = arith.constant 0 : index
    %4 = vector.load %arg3[%c0_2, %c0_3] : memref<256x128xbf16, #tpu.memory_space<vmem>>, vector<256x128xbf16>
    %c0_4 = arith.constant 0 : index
    %c0_5 = arith.constant 0 : index
    %5 = vector.load %arg4[%c0_4, %c0_5] : memref<128x128xbf16, #tpu.memory_space<vmem>>, vector<128x128xbf16>
    %cst = arith.constant dense<0.000000e+00> : vector<256x128xf32>
    %6 = tpu.matmul %4, %5, %cst {dimension_numbers = #tpu.dot_dimension_numbers<[1], [0], [0], [1], [0, 0, 1, 1], [], []>} : vector<256x128xbf16>, vector<128x128xbf16>, vector<256x128xf32> -> vector<256x128xf32>
    %7 = arith.addf %3, %6 : vector<256x128xf32>
    %c0_6 = arith.constant 0 : index
    %c0_7 = arith.constant 0 : index
    %8 = vector.load %arg8[%c0_6, %c0_7] : memref<256x128xf32, #tpu.memory_space<vmem>>, vector<256x128xf32>
    tpu.vector_store %arg8[%c0_6, %c0_7], %7 {strides = array<i32>} : memref<256x128xf32, #tpu.memory_space<vmem>>, vector<256x128xf32>,
    %c0_i32_8 = arith.constant 0 : i32
    %9 = arith.cmpi eq, %arg2, %c0_i32_8 : i32
    %10 = arith.extui %9 : i1 to i32
    %c0_i32_9 = arith.constant 0 : i32
    %11 = arith.cmpi ne, %10, %c0_i32_9 : i32
    scf.if %11 {
      %c0_10 = arith.constant 0 : index
      %c0_11 = arith.constant 0 : index
      %12 = vector.load %arg8[%c0_10, %c0_11] : memref<256x128xf32, #tpu.memory_space<vmem>>, vector<256x128xf32>
      %c0_12 = arith.constant 0 : index
      %c0_13 = arith.constant 0 : index
      %13 = vector.load %arg5[%c0_12, %c0_13] : memref<1x128xf32, #tpu.memory_space<vmem>>, vector<1x128xf32>
      %14 = vector.broadcast %13 : vector<1x128xf32> to vector<256x128xf32>
      %15 = arith.mulf %12, %14 : vector<256x128xf32>
      %c0_14 = arith.constant 0 : index
      %c0_15 = arith.constant 0 : index
      %16 = vector.load %arg6[%c0_14, %c0_15] : memref<1x128xf32, #tpu.memory_space<vmem>>, vector<1x128xf32>
      %17 = vector.broadcast %16 : vector<1x128xf32> to vector<256x128xf32>
      %18 = arith.addf %15, %17 : vector<256x128xf32>
      %c0_16 = arith.constant 0 : index
      %c0_17 = arith.constant 0 : index
      %19 = vector.load %arg7[%c0_16, %c0_17] : memref<256x128xf32, #tpu.memory_space<vmem>>, vector<256x128xf32>
      tpu.vector_store %arg7[%c0_16, %c0_17], %18 {strides = array<i32>} : memref<256x128xf32, #tpu.memory_space<vmem>>, vector<256x128xf32>,
    } else {
    }
    return
  }
  func.func @transform_0(%arg0: i32, %arg1: i32, %arg2: i32) -> (i32, i32) {
    %c0_i32 = arith.constant 0 : i32
    return %arg0, %arg2 : i32, i32
  }
  func.func @transform_1(%arg0: i32, %arg1: i32, %arg2: i32) -> (i32, i32) {
    %c0_i32 = arith.constant 0 : i32
    return %arg2, %arg1 : i32, i32
  }
  func.func @transform_2(%arg0: i32, %arg1: i32, %arg2: i32) -> (i32, i32) {
    %c0_i32 = arith.constant 0 : i32
    %c0_i32_0 = arith.constant 0 : i32
    return %c0_i32, %arg1 : i32, i32
  }
  func.func @transform_3(%arg0: i32, %arg1: i32, %arg2: i32) -> (i32, i32) {
    %c0_i32 = arith.constant 0 : i32
    %c0_i32_0 = arith.constant 0 : i32
    return %c0_i32, %arg1 : i32, i32
  }
  func.func @transform_4(%arg0: i32, %arg1: i32, %arg2: i32) -> (i32, i32) {
    %c0_i32 = arith.constant 0 : i32
    return %arg0, %arg1 : i32, i32
  }
}

module attributes {stable_mosaic.version = 11 : i64} {
  func.func @_mm_bn_res_kernel(%arg0: i32, %arg1: i32, %arg2: i32, %arg3: memref<64x128xbf16, #tpu.memory_space<vmem>>, %arg4: memref<128x128xbf16, #tpu.memory_space<vmem>>, %arg5: memref<1x128xf32, #tpu.memory_space<vmem>>, %arg6: memref<1x128xf32, #tpu.memory_space<vmem>>, %arg7: memref<64x128xf32, #tpu.memory_space<vmem>>, %arg8: memref<64x128xf32, #tpu.memory_space<vmem>>, %arg9: memref<64x128xf32, #tpu.memory_space<vmem>>) attributes {dimension_semantics = [#tpu.dimension_semantics<parallel>, #tpu.dimension_semantics<parallel>, #tpu.dimension_semantics<arbitrary>], iteration_bounds = array<i64: 2, 1, 1>, scalar_prefetch = 0 : i64, scratch_operands = 1 : i64, tpu.core_type = #tpu.core_type<tc>, window_params = [{transform_indices = @transform_0, window_bounds = array<i64: 64, 128>}, {transform_indices = @transform_1, window_bounds = array<i64: 128, 128>}, {transform_indices = @transform_2, window_bounds = array<i64: 1, 128>}, {transform_indices = @transform_3, window_bounds = array<i64: 1, 128>}, {transform_indices = @transform_4, window_bounds = array<i64: 64, 128>}, {transform_indices = @transform_5, window_bounds = array<i64: 64, 128>}]} {
    %c0_i32 = arith.constant 0 : i32
    %0 = arith.cmpi eq, %arg2, %c0_i32 : i32
    %1 = arith.extui %0 : i1 to i32
    %c0_i32_0 = arith.constant 0 : i32
    %2 = arith.cmpi ne, %1, %c0_i32_0 : i32
    scf.if %2 {
      %cst_10 = arith.constant 0.000000e+00 : f32
      %12 = vector.broadcast %cst_10 : f32 to vector<64x128xf32>
      %c0_11 = arith.constant 0 : index
      %c0_12 = arith.constant 0 : index
      %13 = vector.load %arg9[%c0_11, %c0_12] : memref<64x128xf32, #tpu.memory_space<vmem>>, vector<64x128xf32>
      tpu.vector_store %arg9[%c0_11, %c0_12], %12 {strides = array<i32>} : memref<64x128xf32, #tpu.memory_space<vmem>>, vector<64x128xf32>,
    } else {
    }
    %c0 = arith.constant 0 : index
    %c0_1 = arith.constant 0 : index
    %3 = vector.load %arg9[%c0, %c0_1] : memref<64x128xf32, #tpu.memory_space<vmem>>, vector<64x128xf32>
    %c0_2 = arith.constant 0 : index
    %c0_3 = arith.constant 0 : index
    %4 = vector.load %arg3[%c0_2, %c0_3] : memref<64x128xbf16, #tpu.memory_space<vmem>>, vector<64x128xbf16>
    %c0_4 = arith.constant 0 : index
    %c0_5 = arith.constant 0 : index
    %5 = vector.load %arg4[%c0_4, %c0_5] : memref<128x128xbf16, #tpu.memory_space<vmem>>, vector<128x128xbf16>
    %cst = arith.constant dense<0.000000e+00> : vector<64x128xf32>
    %6 = tpu.matmul %4, %5, %cst {dimension_numbers = #tpu.dot_dimension_numbers<[1], [0], [0], [1], [0, 0, 1, 1], [], []>} : vector<64x128xbf16>, vector<128x128xbf16>, vector<64x128xf32> -> vector<64x128xf32>
    %7 = arith.addf %3, %6 : vector<64x128xf32>
    %c0_6 = arith.constant 0 : index
    %c0_7 = arith.constant 0 : index
    %8 = vector.load %arg9[%c0_6, %c0_7] : memref<64x128xf32, #tpu.memory_space<vmem>>, vector<64x128xf32>
    tpu.vector_store %arg9[%c0_6, %c0_7], %7 {strides = array<i32>} : memref<64x128xf32, #tpu.memory_space<vmem>>, vector<64x128xf32>,
    %c0_i32_8 = arith.constant 0 : i32
    %9 = arith.cmpi eq, %arg2, %c0_i32_8 : i32
    %10 = arith.extui %9 : i1 to i32
    %c0_i32_9 = arith.constant 0 : i32
    %11 = arith.cmpi ne, %10, %c0_i32_9 : i32
    scf.if %11 {
      %c0_10 = arith.constant 0 : index
      %c0_11 = arith.constant 0 : index
      %12 = vector.load %arg9[%c0_10, %c0_11] : memref<64x128xf32, #tpu.memory_space<vmem>>, vector<64x128xf32>
      %c0_12 = arith.constant 0 : index
      %c0_13 = arith.constant 0 : index
      %13 = vector.load %arg5[%c0_12, %c0_13] : memref<1x128xf32, #tpu.memory_space<vmem>>, vector<1x128xf32>
      %14 = vector.broadcast %13 : vector<1x128xf32> to vector<64x128xf32>
      %15 = arith.mulf %12, %14 : vector<64x128xf32>
      %c0_14 = arith.constant 0 : index
      %c0_15 = arith.constant 0 : index
      %16 = vector.load %arg6[%c0_14, %c0_15] : memref<1x128xf32, #tpu.memory_space<vmem>>, vector<1x128xf32>
      %17 = vector.broadcast %16 : vector<1x128xf32> to vector<64x128xf32>
      %18 = arith.addf %15, %17 : vector<64x128xf32>
      %c0_16 = arith.constant 0 : index
      %c0_17 = arith.constant 0 : index
      %19 = vector.load %arg7[%c0_16, %c0_17] : memref<64x128xf32, #tpu.memory_space<vmem>>, vector<64x128xf32>
      %20 = arith.addf %18, %19 : vector<64x128xf32>
      %cst_18 = arith.constant 0.000000e+00 : f32
      %21 = vector.broadcast %cst_18 : f32 to vector<64x128xf32>
      %22 = arith.maximumf %20, %21 : vector<64x128xf32>
      %c0_19 = arith.constant 0 : index
      %c0_20 = arith.constant 0 : index
      %23 = vector.load %arg8[%c0_19, %c0_20] : memref<64x128xf32, #tpu.memory_space<vmem>>, vector<64x128xf32>
      tpu.vector_store %arg8[%c0_19, %c0_20], %22 {strides = array<i32>} : memref<64x128xf32, #tpu.memory_space<vmem>>, vector<64x128xf32>,
    } else {
    }
    return
  }
  func.func @transform_0(%arg0: i32, %arg1: i32, %arg2: i32) -> (i32, i32) {
    %c0_i32 = arith.constant 0 : i32
    return %arg0, %arg2 : i32, i32
  }
  func.func @transform_1(%arg0: i32, %arg1: i32, %arg2: i32) -> (i32, i32) {
    %c0_i32 = arith.constant 0 : i32
    return %arg2, %arg1 : i32, i32
  }
  func.func @transform_2(%arg0: i32, %arg1: i32, %arg2: i32) -> (i32, i32) {
    %c0_i32 = arith.constant 0 : i32
    %c0_i32_0 = arith.constant 0 : i32
    return %c0_i32, %arg1 : i32, i32
  }
  func.func @transform_3(%arg0: i32, %arg1: i32, %arg2: i32) -> (i32, i32) {
    %c0_i32 = arith.constant 0 : i32
    %c0_i32_0 = arith.constant 0 : i32
    return %c0_i32, %arg1 : i32, i32
  }
  func.func @transform_4(%arg0: i32, %arg1: i32, %arg2: i32) -> (i32, i32) {
    %c0_i32 = arith.constant 0 : i32
    return %arg0, %arg1 : i32, i32
  }
  func.func @transform_5(%arg0: i32, %arg1: i32, %arg2: i32) -> (i32, i32) {
    %c0_i32 = arith.constant 0 : i32
    return %arg0, %arg1 : i32, i32
  }
}

</mosaic_0001>

<llo_original>
// kernel: neg.1
$region0: #{neg.1}
  #allocation0 [shape = 's32[1]{0}', space=sflag, size = 0x4, scoped, tag = 'scoped memory for neg.1']
  %s0 = inlined_call_operand.vmem [shape: f32[2,64,256], index: 0, kind: input, shape index: {}]
  %s1 = inlined_call_operand.vmem [shape: f32[2,64,256], index: 1, kind: output, shape index: {}]
  %v2 = vld [vmem:[%s0] sm:$0xff]
  %3 = xla_tuple %v2
  %4 = xla_tuple %3
  %v5 = vxor.u32 %v2, 2147483648
  %6 = xla_tuple %v5
  %7 = vst [vmem:[%s1] sm:$0xff] %v5
  %s8 = scalar_lea.vmem %s0, 128
  %v9 = vld [vmem:[%s8] sm:$0xff]
  %10 = xla_tuple %v9
  %11 = xla_tuple %10
  %v12 = vxor.u32 %v9, 2147483648
  %13 = xla_tuple %v12
  %s14 = scalar_lea.vmem %s1, 128
  %15 = vst [vmem:[%s14] sm:$0xff] %v12
  %s16 = scalar_lea.vmem %s0, 16
  %v17 = vld [vmem:[%s16] sm:$0xff]
  %18 = xla_tuple %v17
  %19 = xla_tuple %18
  %v20 = vxor.u32 %v17, 2147483648
  %21 = xla_tuple %v20
  %s22 = scalar_lea.vmem %s1, 16
  %23 = vst [vmem:[%s22] sm:$0xff] %v20
  %s24 = scalar_lea.vmem %s0, 144
  %v25 = vld [vmem:[%s24] sm:$0xff]
  %26 = xla_tuple %v25
  %27 = xla_tuple %26
  %v28 = vxor.u32 %v25, 2147483648
  %29 = xla_tuple %v28
  %s30 = scalar_lea.vmem %s1, 144
  %31 = vst [vmem:[%s30] sm:$0xff] %v28
  %s32 = scalar_lea.vmem %s0, 32
  %v33 = vld [vmem:[%s32] sm:$0xff]
  %34 = xla_tuple %v33
  %35 = xla_tuple %34
  %v36 = vxor.u32 %v33, 2147483648
  %37 = xla_tuple %v36
  %s38 = scalar_lea.vmem %s1, 32
  %39 = vst [vmem:[%s38] sm:$0xff] %v36
  %s40 = scalar_lea.vmem %s0, 160
  %v41 = vld [vmem:[%s40] sm:$0xff]
  %42 = xla_tuple %v41
  %43 = xla_tuple %42
  %v44 = vxor.u32 %v41, 2147483648
  %45 = xla_tuple %v44
  %s46 = scalar_lea.vmem %s1, 160
  %47 = vst [vmem:[%s46] sm:$0xff] %v44
  %s48 = scalar_lea.vmem %s0, 48
  %v49 = vld [vmem:[%s48] sm:$0xff]
  %50 = xla_tuple %v49
  %51 = xla_tuple %50
  %v52 = vxor.u32 %v49, 2147483648
  %53 = xla_tuple %v52
  %s54 = scalar_lea.vmem %s1, 48
  %55 = vst [vmem:[%s54] sm:$0xff] %v52
  %s56 = scalar_lea.vmem %s0, 176
  %v57 = vld [vmem:[%s56] sm:$0xff]
  %58 = xla_tuple %v57
  %59 = xla_tuple %58
  %v60 = vxor.u32 %v57, 2147483648
  %61 = xla_tuple %v60
  %s62 = scalar_lea.vmem %s1, 176
  %63 = vst [vmem:[%s62] sm:$0xff] %v60
  %s64 = scalar_lea.vmem %s0, 64
  %v65 = vld [vmem:[%s64] sm:$0xff]
  %66 = xla_tuple %v65
  %67 = xla_tuple %66
  %v68 = vxor.u32 %v65, 2147483648
  %69 = xla_tuple %v68
  %s70 = scalar_lea.vmem %s1, 64
  %71 = vst [vmem:[%s70] sm:$0xff] %v68
  %s72 = scalar_lea.vmem %s0, 192
  %v73 = vld [vmem:[%s72] sm:$0xff]
  %74 = xla_tuple %v73
  %75 = xla_tuple %74
  %v76 = vxor.u32 %v73, 2147483648
  %77 = xla_tuple %v76
  %s78 = scalar_lea.vmem %s1, 192
  %79 = vst [vmem:[%s78] sm:$0xff] %v76
  %s80 = scalar_lea.vmem %s0, 80
  %v81 = vld [vmem:[%s80] sm:$0xff]
  %82 = xla_tuple %v81
  %83 = xla_tuple %82
  %v84 = vxor.u32 %v81, 2147483648
  %85 = xla_tuple %v84
  %s86 = scalar_lea.vmem %s1, 80
  %87 = vst [vmem:[%s86] sm:$0xff] %v84
  %s88 = scalar_lea.vmem %s0, 208
  %v89 = vld [vmem:[%s88] sm:$0xff]
  %90 = xla_tuple %v89
  %91 = xla_tuple %90
  %v92 = vxor.u32 %v89, 2147483648
  %93 = xla_tuple %v92
  %s94 = scalar_lea.vmem %s1, 208
  %95 = vst [vmem:[%s94] sm:$0xff] %v92
  %s96 = scalar_lea.vmem %s0, 96
  %v97 = vld [vmem:[%s96] sm:$0xff]
  %98 = xla_tuple %v97
  %99 = xla_tuple %98
  %v100 = vxor.u32 %v97, 2147483648
  %101 = xla_tuple %v100
  %s102 = scalar_lea.vmem %s1, 96
  %103 = vst [vmem:[%s102] sm:$0xff] %v100
  %s104 = scalar_lea.vmem %s0, 224
  %v105 = vld [vmem:[%s104] sm:$0xff]
  %106 = xla_tuple %v105
  %107 = xla_tuple %106
  %v108 = vxor.u32 %v105, 2147483648
  %109 = xla_tuple %v108
  %s110 = scalar_lea.vmem %s1, 224
  %111 = vst [vmem:[%s110] sm:$0xff] %v108
  %s112 = scalar_lea.vmem %s0, 112
  %v113 = vld [vmem:[%s112] sm:$0xff]
  %114 = xla_tuple %v113
  %115 = xla_tuple %114
  %v116 = vxor.u32 %v113, 2147483648
  %117 = xla_tuple %v116
  %s118 = scalar_lea.vmem %s1, 112
  %119 = vst [vmem:[%s118] sm:$0xff] %v116
  %s120 = scalar_lea.vmem %s0, 240
  %v121 = vld [vmem:[%s120] sm:$0xff]
  %122 = xla_tuple %v121
  %123 = xla_tuple %122
  %v124 = vxor.u32 %v121, 2147483648
  %125 = xla_tuple %v124
  %s126 = scalar_lea.vmem %s1, 240
  %127 = vst [vmem:[%s126] sm:$0xff] %v124
  %s128 = scalar_lea.vmem %s0, 8
  %v129 = vld [vmem:[%s128] sm:$0xff]
  %130 = xla_tuple %v129
  %131 = xla_tuple %130
  %v132 = vxor.u32 %v129, 2147483648
  %133 = xla_tuple %v132
  %s134 = scalar_lea.vmem %s1, 8
  %135 = vst [vmem:[%s134] sm:$0xff] %v132
  %s136 = scalar_lea.vmem %s0, 136
  %v137 = vld [vmem:[%s136] sm:$0xff]
  %138 = xla_tuple %v137
  %139 = xla_tuple %138
  %v140 = vxor.u32 %v137, 2147483648
  %141 = xla_tuple %v140
  %s142 = scalar_lea.vmem %s1, 136
  %143 = vst [vmem:[%s142] sm:$0xff] %v140
  %s144 = scalar_lea.vmem %s0, 24
  %v145 = vld [vmem:[%s144] sm:$0xff]
  %146 = xla_tuple %v145
  %147 = xla_tuple %146
  %v148 = vxor.u32 %v145, 2147483648
  %149 = xla_tuple %v148
  %s150 = scalar_lea.vmem %s1, 24
  %151 = vst [vmem:[%s150] sm:$0xff] %v148
  %s152 = scalar_lea.vmem %s0, 152
  %v153 = vld [vmem:[%s152] sm:$0xff]
  %154 = xla_tuple %v153
  %155 = xla_tuple %154
  %v156 = vxor.u32 %v153, 2147483648
  %157 = xla_tuple %v156
  %s158 = scalar_lea.vmem %s1, 152
  %159 = vst [vmem:[%s158] sm:$0xff] %v156
  %s160 = scalar_lea.vmem %s0, 40
  %v161 = vld [vmem:[%s160] sm:$0xff]
  %162 = xla_tuple %v161
  %163 = xla_tuple %162
  %v164 = vxor.u32 %v161, 2147483648
  %165 = xla_tuple %v164
  %s166 = scalar_lea.vmem %s1, 40
  %167 = vst [vmem:[%s166] sm:$0xff] %v164
  %s168 = scalar_lea.vmem %s0, 168
  %v169 = vld [vmem:[%s168] sm:$0xff]
  %170 = xla_tuple %v169
  %171 = xla_tuple %170
  %v172 = vxor.u32 %v169, 2147483648
  %173 = xla_tuple %v172
  %s174 = scalar_lea.vmem %s1, 168
  %175 = vst [vmem:[%s174] sm:$0xff] %v172
  %s176 = scalar_lea.vmem %s0, 56
  %v177 = vld [vmem:[%s176] sm:$0xff]
  %178 = xla_tuple %v177
  %179 = xla_tuple %178
  %v180 = vxor.u32 %v177, 2147483648
  %181 = xla_tuple %v180
  %s182 = scalar_lea.vmem %s1, 56
  %183 = vst [vmem:[%s182] sm:$0xff] %v180
  %s184 = scalar_lea.vmem %s0, 184
  %v185 = vld [vmem:[%s184] sm:$0xff]
  %186 = xla_tuple %v185
  %187 = xla_tuple %186
  %v188 = vxor.u32 %v185, 2147483648
  %189 = xla_tuple %v188
  %s190 = scalar_lea.vmem %s1, 184
  %191 = vst [vmem:[%s190] sm:$0xff] %v188
  %s192 = scalar_lea.vmem %s0, 72
  %v193 = vld [vmem:[%s192] sm:$0xff]
  %194 = xla_tuple %v193
  %195 = xla_tuple %194
  %v196 = vxor.u32 %v193, 2147483648
  %197 = xla_tuple %v196
  %s198 = scalar_lea.vmem %s1, 72
  %199 = vst [vmem:[%s198] sm:$0xff] %v196
  %s200 = scalar_lea.vmem %s0, 200
  %v201 = vld [vmem:[%s200] sm:$0xff]
  %202 = xla_tuple %v201
  %203 = xla_tuple %202
  %v204 = vxor.u32 %v201, 2147483648
  %205 = xla_tuple %v204
  %s206 = scalar_lea.vmem %s1, 200
  %207 = vst [vmem:[%s206] sm:$0xff] %v204
  %s208 = scalar_lea.vmem %s0, 88
  %v209 = vld [vmem:[%s208] sm:$0xff]
  %210 = xla_tuple %v209
  %211 = xla_tuple %210
  %v212 = vxor.u32 %v209, 2147483648
  %213 = xla_tuple %v212
  %s214 = scalar_lea.vmem %s1, 88
  %215 = vst [vmem:[%s214] sm:$0xff] %v212
  %s216 = scalar_lea.vmem %s0, 216
  %v217 = vld [vmem:[%s216] sm:$0xff]
  %218 = xla_tuple %v217
  %219 = xla_tuple %218
  %v220 = vxor.u32 %v217, 2147483648
  %221 = xla_tuple %v220
  %s222 = scalar_lea.vmem %s1, 216
  %223 = vst [vmem:[%s222] sm:$0xff] %v220
  %s224 = scalar_lea.vmem %s0, 104
  %v225 = vld [vmem:[%s224] sm:$0xff]
  %226 = xla_tuple %v225
  %227 = xla_tuple %226
  %v228 = vxor.u32 %v225, 2147483648
  %229 = xla_tuple %v228
  %s230 = scalar_lea.vmem %s1, 104
  %231 = vst [vmem:[%s230] sm:$0xff] %v228
  %s232 = scalar_lea.vmem %s0, 232
  %v233 = vld [vmem:[%s232] sm:$0xff]
  %234 = xla_tuple %v233
  %235 = xla_tuple %234
  %v236 = vxor.u32 %v233, 2147483648
  %237 = xla_tuple %v236
  %s238 = scalar_lea.vmem %s1, 232
  %239 = vst [vmem:[%s238] sm:$0xff] %v236
  %s240 = scalar_lea.vmem %s0, 120
  %v241 = vld [vmem:[%s240] sm:$0xff]
  %242 = xla_tuple %v241
  %243 = xla_tuple %242
  %v244 = vxor.u32 %v241, 2147483648
  %245 = xla_tuple %v244
  %s246 = scalar_lea.vmem %s1, 120
  %247 = vst [vmem:[%s246] sm:$0xff] %v244
  %s248 = scalar_lea.vmem %s0, 248
  %v249 = vld [vmem:[%s248] sm:$0xff]
  %250 = xla_tuple %v249
  %251 = xla_tuple %250
  %v252 = vxor.u32 %v249, 2147483648
  %253 = xla_tuple %v252
  %s254 = scalar_lea.vmem %s1, 248
  %255 = vst [vmem:[%s254] sm:$0xff] %v252

// kernel: resnet_block_forward.4
$region0: #{resnet_block_forward.4}
  #allocation0 [shape = 'u32[]', space=smem, size = 0x4, offset = 0x4, fixed_abs, tag = 'smem constant byte address 0x4 - core index']
  #allocation1 [shape = 'u32[144,128]{1,0:T(1,128)}', space=vmem, size = 0x12000, scoped, tag = 'internal scratch']
  #allocation2 [shape = 'f32[256,128]{1,0:T(8,128)}', space=vmem, size = 0x20000, scoped, tag = 'scratch operand']
  %s0 = inlined_call_operand.vmem [shape: bf16[512,128], index: 0, kind: input, shape index: {}]
  %s1 = inlined_call_operand.vmem [shape: bf16[128,128], index: 1, kind: input, shape index: {}]
  %s2 = inlined_call_operand.vmem [shape: f32[1,128], index: 2, kind: input, shape index: {}]
  %s3 = inlined_call_operand.vmem [shape: f32[1,128], index: 3, kind: input, shape index: {}]
  %s4 = inlined_call_operand.vmem [shape: bf16[512,128], index: 4, kind: output, shape index: {}]
  %s5 = sld [smem:[#allocation0]]
  $region57: #{resnet_block_forward.4} parent=0
    _
  %s7 = ssub.s32 1, %s5
  %s8 = scalar_select 0, %s7, %s5
  loop: start=0, step=1, limit=4
  $region2: #{resnet_block_forward.4} parent=0 // loop_pre_header
    _
  $region3: #{resnet_block_forward.4} parent=0 // loop_header
    %s10 = sphi 0, %s14
    %p11 = scmp.ge.s32.totalorder %s10, 4
    %s17 = sphi 0, %s36
    %s18 = sphi 0, %s32
    %s19 = sphi 0, %s28
    %s20 = sphi 0, %s17
    %s21 = sphi 0, %s18
    %s22 = sphi 0, %s19
    %s23 = sphi 0, %s20
    %s24 = sphi 0, %s21
    %s25 = sphi 0, %s22
    %s41 = sphi 0, %s43
    %s44 = sphi 0, %s41
    %s45 = sphi 0, %s44
    %s61 = sphi 0, %s45
    %s69 = sphi 0, %s71
    %s72 = sphi 0, %s69
    %s73 = sphi 0, %s72
    %s89 = sphi 0, %s73
    %s95 = sphi 0, %s97
    %s98 = sphi 0, %s95
    %s99 = sphi 0, %s98
    %s115 = sphi 0, %s99
    %s121 = sphi 0, %s123
    %s124 = sphi 0, %s121
    %s125 = sphi 0, %s124
    %s141 = sphi 0, %s125
    %s149 = sphi 0, %s151
    %s152 = sphi 0, %s149
    %s153 = sphi 0, %s152
    %s169 = sphi 0, %s153
  $region4: #{resnet_block_forward.4} parent=0 // loop_header_branch
    %13 = sbr.rel (%p11) target = $region8
  $region5: #{resnet_block_forward.4} parent=0 // loop_body
    %s15 = ssub.s32 %s10, 1
    %s16 = ssub.s32 %s10, 2
    %s26 = sadd.s32 1, %s19
    %p27 = scmp.ge.s32.totalorder %s26, 1
    %s28 = scalar_select %p27, 0, %s26
    %s29 = sadd.s32 1, %s18
    %s30 = scalar_select %p27, %s29, %s18
    %p31 = scmp.ge.s32.totalorder %s30, 1
    %s32 = scalar_select %p31, 0, %s30
    %s33 = sadd.s32 1, %s17
    %s34 = scalar_select %p31, %s33, %s17
    %p35 = scmp.ge.s32.totalorder %s34, 2
    %s36 = scalar_select %p35, 0, %s34
    %s37 = ssub.s32 %s17, %s36
    %s38 = ssub.s32 %s19, %s28
    %s39 = sor.u32 %s37, %s38
    %p40 = scmp.eq.s32.totalorder %s39, 0
    %s42 = sadd.s32 %s41, 1
    %s43 = scalar_select %p40, %s41, %s42
    %p46 = pneg %p40
    %p47 = scmp.eq.s32.totalorder %s10, 1
    %p48 = por %p46, %p47
    %p49 = scmp.ne.s32.totalorder %s41, %s44
    %p50 = scmp.eq.s32.totalorder %s10, 0
    %p51 = por %p49, %p50
    %p52 = scmp.ne.s32.totalorder %s41, %s44
    %p53 = scmp.eq.s32.totalorder %s15, 1
    %p54 = por %p52, %p53
    %p55 = scmp.ne.s32.totalorder %s44, %s45
    %p56 = scmp.eq.s32.totalorder %s15, 0
    %p57 = por %p55, %p56
    %p58 = scmp.ne.s32.totalorder %s44, %s45
    %p59 = scmp.eq.s32.totalorder %s16, 1
    %p60 = por %p58, %p59
    %p62 = scmp.ne.s32.totalorder %s45, %s61
    %p63 = scmp.eq.s32.totalorder %s16, 0
    %p64 = por %p62, %p63
    %s65 = ssub.s32 %s19, %s28
    %s66 = ssub.s32 %s18, %s32
    %s67 = sor.u32 %s65, %s66
    %p68 = scmp.eq.s32.totalorder %s67, 0
    %s70 = sadd.s32 %s69, 1
    %s71 = scalar_select %p68, %s69, %s70
    %p74 = pneg %p68
    %p75 = scmp.eq.s32.totalorder %s10, 1
    %p76 = por %p74, %p75
    %p77 = scmp.ne.s32.totalorder %s69, %s72
    %p78 = scmp.eq.s32.totalorder %s10, 0
    %p79 = por %p77, %p78
    %p80 = scmp.ne.s32.totalorder %s69, %s72
    %p81 = scmp.eq.s32.totalorder %s15, 1
    %p82 = por %p80, %p81
    %p83 = scmp.ne.s32.totalorder %s72, %s73
    %p84 = scmp.eq.s32.totalorder %s15, 0
    %p85 = por %p83, %p84
    %p86 = scmp.ne.s32.totalorder %s72, %s73
    %p87 = scmp.eq.s32.totalorder %s16, 1
    %p88 = por %p86, %p87
    %p90 = scmp.ne.s32.totalorder %s73, %s89
    %p91 = scmp.eq.s32.totalorder %s16, 0
    %p92 = por %p90, %p91
    %s93 = ssub.s32 %s18, %s32
    %p94 = scmp.eq.s32.totalorder %s93, 0
    %s96 = sadd.s32 %s95, 1
    %s97 = scalar_select %p94, %s95, %s96
    %p100 = pneg %p94
    %p101 = scmp.eq.s32.totalorder %s10, 1
    %p102 = por %p100, %p101
    %p103 = scmp.ne.s32.totalorder %s95, %s98
    %p104 = scmp.eq.s32.totalorder %s10, 0
    %p105 = por %p103, %p104
    %p106 = scmp.ne.s32.totalorder %s95, %s98
    %p107 = scmp.eq.s32.totalorder %s15, 1
    %p108 = por %p106, %p107
    %p109 = scmp.ne.s32.totalorder %s98, %s99
    %p110 = scmp.eq.s32.totalorder %s15, 0
    %p111 = por %p109, %p110
    %p112 = scmp.ne.s32.totalorder %s98, %s99
    %p113 = scmp.eq.s32.totalorder %s16, 1
    %p114 = por %p112, %p113
    %p116 = scmp.ne.s32.totalorder %s99, %s115
    %p117 = scmp.eq.s32.totalorder %s16, 0
    %p118 = por %p116, %p117
    %s119 = ssub.s32 %s18, %s32
    %p120 = scmp.eq.s32.totalorder %s119, 0
    %s122 = sadd.s32 %s121, 1
    %s123 = scalar_select %p120, %s121, %s122
    %p126 = pneg %p120
    %p127 = scmp.eq.s32.totalorder %s10, 1
    %p128 = por %p126, %p127
    %p129 = scmp.ne.s32.totalorder %s121, %s124
    %p130 = scmp.eq.s32.totalorder %s10, 0
    %p131 = por %p129, %p130
    %p132 = scmp.ne.s32.totalorder %s121, %s124
    %p133 = scmp.eq.s32.totalorder %s15, 1
    %p134 = por %p132, %p133
    %p135 = scmp.ne.s32.totalorder %s124, %s125
    %p136 = scmp.eq.s32.totalorder %s15, 0
    %p137 = por %p135, %p136
    %p138 = scmp.ne.s32.totalorder %s124, %s125
    %p139 = scmp.eq.s32.totalorder %s16, 1
    %p140 = por %p138, %p139
    %p142 = scmp.ne.s32.totalorder %s125, %s141
    %p143 = scmp.eq.s32.totalorder %s16, 0
    %p144 = por %p142, %p143
    %s145 = ssub.s32 %s17, %s36
    %s146 = ssub.s32 %s18, %s32
    %s147 = sor.u32 %s145, %s146
    %p148 = scmp.eq.s32.totalorder %s147, 0
    %s150 = sadd.s32 %s149, 1
    %s151 = scalar_select %p148, %s149, %s150
    %p154 = pneg %p148
    %p155 = scmp.eq.s32.totalorder %s10, 1
    %p156 = por %p154, %p155
    %p157 = scmp.ne.s32.totalorder %s149, %s152
    %p158 = scmp.eq.s32.totalorder %s10, 0
    %p159 = por %p157, %p158
    %p160 = scmp.ne.s32.totalorder %s149, %s152
    %p161 = scmp.eq.s32.totalorder %s15, 1
    %p162 = por %p160, %p161
    %p163 = scmp.ne.s32.totalorder %s152, %s153
    %p164 = scmp.eq.s32.totalorder %s15, 0
    %p165 = por %p163, %p164
    %p166 = scmp.ne.s32.totalorder %s152, %s153
    %p167 = scmp.eq.s32.totalorder %s16, 1
    %p168 = por %p166, %p167
    %p170 = scmp.ne.s32.totalorder %s153, %s169
    %p171 = scmp.eq.s32.totalorder %s16, 0
    %p172 = por %p170, %p171
    %p173 = scmp.le.s32.totalorder 1, %s10
    %p174 = scmp.lt.s32.totalorder %s10, 3
    %p175 = pnand %p173, %p174
    %p176 = pneg %p175
    // Predicated region
    $region9: #{resnet_block_forward.4} parent=5 // pred_check
      _
    $region10: #{resnet_block_forward.4} parent=5 // pred_check_branch
      %178 = sbr.rel (%p175) target = $region12
    $region11: #{resnet_block_forward.4} parent=5 // pred_region
      %s179 = ssub.s32 %s10, 1
      // Predicated region
      $region13: #{resnet_block_forward.4} parent=11 // pred_check
        %p180 = pneg %p85
      $region14: #{resnet_block_forward.4} parent=11 // pred_check_branch
        %182 = sbr.rel (%p180) target = $region16
      $region15: #{resnet_block_forward.4} parent=11 // pred_region
        %s183 = smul.u32 16, %s22
        %p184 = scmp.lt.s32.totalorder %s183, 15
        %s185 = scalar_select %p184, %s183, 15
        %p186 = scmp.lt.s32.totalorder %s21, 0
        %s187 = scalar_select %p186, %s21, 0
        %s188 = sadd.s32 %s187, %s185
        %s189 = smul.addr %s188, 4
        %s190 = scalar_lea.vmem %s1, %s189
        %s191 = smul.u32 16, %s22
      $region16: #{resnet_block_forward.4} parent=11 // pred_fallthru
        _
      // Predicated region
      $region17: #{resnet_block_forward.4} parent=11 // pred_check
        %p192 = pneg %p111
      $region18: #{resnet_block_forward.4} parent=11 // pred_check_branch
        %194 = sbr.rel (%p192) target = $region20
      $region19: #{resnet_block_forward.4} parent=11 // pred_region
        %p195 = scmp.lt.s32.totalorder %s21, 0
        %s196 = scalar_select %p195, %s21, 0
        %s197 = scalar_lea.vmem %s2, %s196
      $region20: #{resnet_block_forward.4} parent=11 // pred_fallthru
        _
      // Predicated region
      $region21: #{resnet_block_forward.4} parent=11 // pred_check
        %p198 = pneg %p137
      $region22: #{resnet_block_forward.4} parent=11 // pred_check_branch
        %200 = sbr.rel (%p198) target = $region24
      $region23: #{resnet_block_forward.4} parent=11 // pred_region
        %p201 = scmp.lt.s32.totalorder %s21, 0
        %s202 = scalar_select %p201, %s21, 0
        %s203 = scalar_lea.vmem %s3, %s202
      $region24: #{resnet_block_forward.4} parent=11 // pred_fallthru
        _
    $region12: #{resnet_block_forward.4} parent=5 // pred_fallthru
      _
    %p204 = scmp.lt.s32.totalorder %s10, 2
    // Predicated region
    $region25: #{resnet_block_forward.4} parent=5 // pred_check
      %p205 = pneg %p204
    $region26: #{resnet_block_forward.4} parent=5 // pred_check_branch
      %207 = sbr.rel (%p205) target = $region28
    $region27: #{resnet_block_forward.4} parent=5 // pred_region
      // Predicated region
      $region29: #{resnet_block_forward.4} parent=27 // pred_check
        %p208 = pneg %p51
      $region30: #{resnet_block_forward.4} parent=27 // pred_check_branch
        %210 = sbr.rel (%p208) target = $region32
      $region31: #{resnet_block_forward.4} parent=27 // pred_region
        %s211 = smul.u32 32, %s17
        %p212 = scmp.lt.s32.totalorder %s211, 63
        %s213 = scalar_select %p212, %s211, 63
        %p214 = scmp.lt.s32.totalorder %s19, 0
        %s215 = scalar_select %p214, %s19, 0
        %s216 = sadd.s32 %s215, %s213
        %s217 = smul.addr %s216, 4
        %s218 = scalar_lea.vmem %s0, %s217
        %s219 = smul.u32 32, %s17
      $region32: #{resnet_block_forward.4} parent=27 // pred_fallthru
        _
    $region28: #{resnet_block_forward.4} parent=5 // pred_fallthru
      _
    %p220 = scmp.le.s32.totalorder 1, %s10
    %p221 = scmp.lt.s32.totalorder %s10, 3
    %p222 = pnand %p220, %p221
    %p223 = pneg %p222
    // Predicated region
    $region33: #{resnet_block_forward.4} parent=5 // pred_check
      _
    $region34: #{resnet_block_forward.4} parent=5 // pred_check_branch
      %225 = sbr.rel (%p222) target = $region36
    $region35: #{resnet_block_forward.4} parent=5 // pred_region
      %s226 = ssub.s32 %s10, 1
      %s227 = smul.u32 32, %s20
      %p228 = scmp.lt.s32.totalorder %s227, 63
      %s229 = scalar_select %p228, %s227, 63
      %p230 = scmp.lt.s32.totalorder %s22, 0
      %s231 = scalar_select %p230, %s22, 0
      %s232 = sadd.s32 %s231, %s229
      %s233 = smul.addr %s232, 4
      %s234 = scalar_lea.vmem %s0, %s233
      %p235 = pneg %p57
      %p236 = pneg %p54
      %s237 = smul.u32 16, %s22
      %p238 = scmp.lt.s32.totalorder %s237, 15
      %s239 = scalar_select %p238, %s237, 15
      %p240 = scmp.lt.s32.totalorder %s21, 0
      %s241 = scalar_select %p240, %s21, 0
      %s242 = sadd.s32 %s241, %s239
      %s243 = smul.addr %s242, 4
      %s244 = scalar_lea.vmem %s1, %s243
      %p245 = pneg %p85
      %p246 = pneg %p82
      %p247 = scmp.lt.s32.totalorder %s21, 0
      %s248 = scalar_select %p247, %s21, 0
      %s249 = scalar_lea.vmem %s2, %s248
      %p250 = pneg %p111
      %p251 = pneg %p108
      %p252 = scmp.lt.s32.totalorder %s21, 0
      %s253 = scalar_select %p252, %s21, 0
      %s254 = scalar_lea.vmem %s3, %s253
      %p255 = pneg %p137
      %p256 = pneg %p134
      %p257 = pneg %p165
      %p258 = pneg %p162
      %s259 = smul.u32 32, %s20
      %p260 = scmp.lt.s32.totalorder %s259, 63
      %s261 = scalar_select %p260, %s259, 63
      %p262 = scmp.lt.s32.totalorder %s21, 0
      %s263 = scalar_select %p262, %s21, 0
      %s264 = sadd.s32 %s263, %s261
      %s265 = smul.addr %s264, 4
      %s266 = scalar_lea.vmem %s4, %s265
      %s267 = smul.u32 32, %s20
      %p268 = scmp.lt.s32.totalorder %s267, 63
      %s269 = scalar_select %p268, %s267, 63
      %p270 = scmp.lt.s32.totalorder %s22, 0
      %s271 = scalar_select %p270, %s22, 0
      %s272 = sadd.s32 %s271, %s269
      %s273 = smul.addr %s272, 4
      %s274 = scalar_lea.vmem %s0, %s273
      %s275 = smul.u32 32, %s20
      %s276 = smul.u32 16, %s22
      %p277 = scmp.lt.s32.totalorder %s276, 15
      %s278 = scalar_select %p277, %s276, 15
      %p279 = scmp.lt.s32.totalorder %s21, 0
      %s280 = scalar_select %p279, %s21, 0
      %s281 = sadd.s32 %s280, %s278
      %s282 = smul.addr %s281, 4
      %s283 = scalar_lea.vmem %s1, %s282
      %s284 = smul.u32 16, %s22
      %p285 = scmp.lt.s32.totalorder %s21, 0
      %s286 = scalar_select %p285, %s21, 0
      %s287 = scalar_lea.vmem %s2, %s286
      %p288 = scmp.lt.s32.totalorder %s21, 0
      %s289 = scalar_select %p288, %s21, 0
      %s290 = scalar_lea.vmem %s3, %s289
      %s291 = smul.u32 32, %s20
      %p292 = scmp.lt.s32.totalorder %s291, 63
      %s293 = scalar_select %p292, %s291, 63
      %p294 = scmp.lt.s32.totalorder %s21, 0
      %s295 = scalar_select %p294, %s21, 0
      %s296 = sadd.s32 %s295, %s293
      %s297 = smul.addr %s296, 4
      %s298 = scalar_lea.vmem %s4, %s297
      %s299 = smul.u32 32, %s20
      %p301 = scmp.eq.s32.totalorder %s22, 0
      // Predicated region
      $region37: #{resnet_block_forward.4} parent=35 // pred_check
        %p302 = pneg %p301
      $region38: #{resnet_block_forward.4} parent=35 // pred_check_branch
        %304 = sbr.rel (%p302) target = $region40
      $region39: #{resnet_block_forward.4} parent=35 // pred_region
        %305 = vst [vmem:[#allocation2] sm:$0xff] 0.0
        %306 = vst [vmem:[#allocation2 + $0x8] sm:$0xff] 0.0
        %307 = vst [vmem:[#allocation2 + $0x10] sm:$0xff] 0.0
        %308 = vst [vmem:[#allocation2 + $0x18] sm:$0xff] 0.0
        %309 = vst [vmem:[#allocation2 + $0x20] sm:$0xff] 0.0
        %310 = vst [vmem:[#allocation2 + $0x28] sm:$0xff] 0.0
        %311 = vst [vmem:[#allocation2 + $0x30] sm:$0xff] 0.0
        %312 = vst [vmem:[#allocation2 + $0x38] sm:$0xff] 0.0
        %313 = vst [vmem:[#allocation2 + $0x40] sm:$0xff] 0.0
        %314 = vst [vmem:[#allocation2 + $0x48] sm:$0xff] 0.0
        %315 = vst [vmem:[#allocation2 + $0x50] sm:$0xff] 0.0
        %316 = vst [vmem:[#allocation2 + $0x58] sm:$0xff] 0.0
        %317 = vst [vmem:[#allocation2 + $0x60] sm:$0xff] 0.0
        %318 = vst [vmem:[#allocation2 + $0x68] sm:$0xff] 0.0
        %319 = vst [vmem:[#allocation2 + $0x70] sm:$0xff] 0.0
        %320 = vst [vmem:[#allocation2 + $0x78] sm:$0xff] 0.0
        %321 = vst [vmem:[#allocation2 + $0x80] sm:$0xff] 0.0
        %322 = vst [vmem:[#allocation2 + $0x88] sm:$0xff] 0.0
        %323 = vst [vmem:[#allocation2 + $0x90] sm:$0xff] 0.0
        %324 = vst [vmem:[#allocation2 + $0x98] sm:$0xff] 0.0
        %325 = vst [vmem:[#allocation2 + $0xa0] sm:$0xff] 0.0
        %326 = vst [vmem:[#allocation2 + $0xa8] sm:$0xff] 0.0
        %327 = vst [vmem:[#allocation2 + $0xb0] sm:$0xff] 0.0
        %328 = vst [vmem:[#allocation2 + $0xb8] sm:$0xff] 0.0
        %329 = vst [vmem:[#allocation2 + $0xc0] sm:$0xff] 0.0
        %330 = vst [vmem:[#allocation2 + $0xc8] sm:$0xff] 0.0
        %331 = vst [vmem:[#allocation2 + $0xd0] sm:$0xff] 0.0
        %332 = vst [vmem:[#allocation2 + $0xd8] sm:$0xff] 0.0
        %333 = vst [vmem:[#allocation2 + $0xe0] sm:$0xff] 0.0
        %334 = vst [vmem:[#allocation2 + $0xe8] sm:$0xff] 0.0
        %335 = vst [vmem:[#allocation2 + $0xf0] sm:$0xff] 0.0
        %336 = vst [vmem:[#allocation2 + $0xf8] sm:$0xff] 0.0
      $region40: #{resnet_block_forward.4} parent=35 // pred_fallthru
        _
      %v337 = vld [vmem:[#allocation2] sm:$0xff]
      %v338 = vld [vmem:[#allocation2 + $0x8] sm:$0xff]
      %v339 = vld [vmem:[#allocation2 + $0x10] sm:$0xff]
      %v340 = vld [vmem:[#allocation2 + $0x18] sm:$0xff]
      %v341 = vld [vmem:[#allocation2 + $0x20] sm:$0xff]
      %v342 = vld [vmem:[#allocation2 + $0x28] sm:$0xff]
      %v343 = vld [vmem:[#allocation2 + $0x30] sm:$0xff]
      %v344 = vld [vmem:[#allocation2 + $0x38] sm:$0xff]
      %v345 = vld [vmem:[#allocation2 + $0x40] sm:$0xff]
      %v346 = vld [vmem:[#allocation2 + $0x48] sm:$0xff]
      %v347 = vld [vmem:[#allocation2 + $0x50] sm:$0xff]
      %v348 = vld [vmem:[#allocation2 + $0x58] sm:$0xff]
      %v349 = vld [vmem:[#allocation2 + $0x60] sm:$0xff]
      %v350 = vld [vmem:[#allocation2 + $0x68] sm:$0xff]
      %v351 = vld [vmem:[#allocation2 + $0x70] sm:$0xff]
      %v352 = vld [vmem:[#allocation2 + $0x78] sm:$0xff]
      %v353 = vld [vmem:[#allocation2 + $0x80] sm:$0xff]
      %v354 = vld [vmem:[#allocation2 + $0x88] sm:$0xff]
      %v355 = vld [vmem:[#allocation2 + $0x90] sm:$0xff]
      %v356 = vld [vmem:[#allocation2 + $0x98] sm:$0xff]
      %v357 = vld [vmem:[#allocation2 + $0xa0] sm:$0xff]
      %v358 = vld [vmem:[#allocation2 + $0xa8] sm:$0xff]
      %v359 = vld [vmem:[#allocation2 + $0xb0] sm:$0xff]
      %v360 = vld [vmem:[#allocation2 + $0xb8] sm:$0xff]
      %v361 = vld [vmem:[#allocation2 + $0xc0] sm:$0xff]
      %v362 = vld [vmem:[#allocation2 + $0xc8] sm:$0xff]
      %v363 = vld [vmem:[#allocation2 + $0xd0] sm:$0xff]
      %v364 = vld [vmem:[#allocation2 + $0xd8] sm:$0xff]
      %v365 = vld [vmem:[#allocation2 + $0xe0] sm:$0xff]
      %v366 = vld [vmem:[#allocation2 + $0xe8] sm:$0xff]
      %v367 = vld [vmem:[#allocation2 + $0xf0] sm:$0xff]
      %v368 = vld [vmem:[#allocation2 + $0xf8] sm:$0xff]
      %v369 = vld [vmem:[%s274] sm:$0xf]
      %v370 = vld [vmem:[%s274 + $0x4] sm:$0xf]
      %v371 = vld [vmem:[%s274 + $0x8] sm:$0xf]
      %v372 = vld [vmem:[%s274 + $0xc] sm:$0xf]
      %v373 = vld [vmem:[%s274 + $0x10] sm:$0xf]
      %v374 = vld [vmem:[%s274 + $0x14] sm:$0xf]
      %v375 = vld [vmem:[%s274 + $0x18] sm:$0xf]
      %v376 = vld [vmem:[%s274 + $0x1c] sm:$0xf]
      %v377 = vld [vmem:[%s274 + $0x20] sm:$0xf]
      %v378 = vld [vmem:[%s274 + $0x24] sm:$0xf]
      %v379 = vld [vmem:[%s274 + $0x28] sm:$0xf]
      %v380 = vld [vmem:[%s274 + $0x2c] sm:$0xf]
      %v381 = vld [vmem:[%s274 + $0x30] sm:$0xf]
      %v382 = vld [vmem:[%s274 + $0x34] sm:$0xf]
      %v383 = vld [vmem:[%s274 + $0x38] sm:$0xf]
      %v384 = vld [vmem:[%s274 + $0x3c] sm:$0xf]
      %v385 = vld [vmem:[%s274 + $0x40] sm:$0xf]
      %v386 = vld [vmem:[%s274 + $0x44] sm:$0xf]
      %v387 = vld [vmem:[%s274 + $0x48] sm:$0xf]
      %v388 = vld [vmem:[%s274 + $0x4c] sm:$0xf]
      %v389 = vld [vmem:[%s274 + $0x50] sm:$0xf]
      %v390 = vld [vmem:[%s274 + $0x54] sm:$0xf]
      %v391 = vld [vmem:[%s274 + $0x58] sm:$0xf]
      %v392 = vld [vmem:[%s274 + $0x5c] sm:$0xf]
      %v393 = vld [vmem:[%s274 + $0x60] sm:$0xf]
      %v394 = vld [vmem:[%s274 + $0x64] sm:$0xf]
      %v395 = vld [vmem:[%s274 + $0x68] sm:$0xf]
      %v396 = vld [vmem:[%s274 + $0x6c] sm:$0xf]
      %v397 = vld [vmem:[%s274 + $0x70] sm:$0xf]
      %v398 = vld [vmem:[%s274 + $0x74] sm:$0xf]
      %v399 = vld [vmem:[%s274 + $0x78] sm:$0xf]
      %v400 = vld [vmem:[%s274 + $0x7c] sm:$0xf]
      %v401 = vld [vmem:[%s283] sm:$0xf]
      %v402 = vld [vmem:[%s283 + $0x4] sm:$0xf]
      %v403 = vld [vmem:[%s283 + $0x8] sm:$0xf]
      %v404 = vld [vmem:[%s283 + $0xc] sm:$0xf]
      %v405 = vld [vmem:[%s283 + $0x10] sm:$0xf]
      %v406 = vld [vmem:[%s283 + $0x14] sm:$0xf]
      %v407 = vld [vmem:[%s283 + $0x18] sm:$0xf]
      %v408 = vld [vmem:[%s283 + $0x1c] sm:$0xf]
      %v409 = vld [vmem:[%s283 + $0x20] sm:$0xf]
      %v410 = vld [vmem:[%s283 + $0x24] sm:$0xf]
      %v411 = vld [vmem:[%s283 + $0x28] sm:$0xf]
      %v412 = vld [vmem:[%s283 + $0x2c] sm:$0xf]
      %v413 = vld [vmem:[%s283 + $0x30] sm:$0xf]
      %v414 = vld [vmem:[%s283 + $0x34] sm:$0xf]
      %v415 = vld [vmem:[%s283 + $0x38] sm:$0xf]
      %v416 = vld [vmem:[%s283 + $0x3c] sm:$0xf]
      %v449 = vunpack.c.l.b16 %v369
      %v450 = vunpack.c.l.b16 %v370
      %v451 = vunpack.c.l.b16 %v371
      %v452 = vunpack.c.l.b16 %v372
      %v453 = vunpack.c.l.b16 %v373
      %v454 = vunpack.c.l.b16 %v374
      %v455 = vunpack.c.l.b16 %v375
      %v456 = vunpack.c.l.b16 %v376
      %v457 = vunpack.c.l.b16 %v377
      %v458 = vunpack.c.l.b16 %v378
      %v459 = vunpack.c.l.b16 %v379
      %v460 = vunpack.c.l.b16 %v380
      %v461 = vunpack.c.l.b16 %v381
      %v462 = vunpack.c.l.b16 %v382
      %v463 = vunpack.c.l.b16 %v383
      %v464 = vunpack.c.l.b16 %v384
      %v465 = vunpack.c.l.b16 %v385
      %v466 = vunpack.c.l.b16 %v386
      %v467 = vunpack.c.l.b16 %v387
      %v468 = vunpack.c.l.b16 %v388
      %v469 = vunpack.c.l.b16 %v389
      %v470 = vunpack.c.l.b16 %v390
      %v471 = vunpack.c.l.b16 %v391
      %v472 = vunpack.c.l.b16 %v392
      %v473 = vunpack.c.l.b16 %v393
      %v474 = vunpack.c.l.b16 %v394
      %v475 = vunpack.c.l.b16 %v395
      %v476 = vunpack.c.l.b16 %v396
      %v477 = vunpack.c.l.b16 %v397
      %v478 = vunpack.c.l.b16 %v398
      %v479 = vunpack.c.l.b16 %v399
      %v480 = vunpack.c.l.b16 %v400
      %v481 = vpack.c.b16 %v450, %v449
      %v482 = vpack.c.b16 %v452, %v451
      %v483 = vpack.c.b16 %v454, %v453
      %v484 = vpack.c.b16 %v456, %v455
      %v485 = vpack.c.b16 %v458, %v457
      %v486 = vpack.c.b16 %v460, %v459
      %v487 = vpack.c.b16 %v462, %v461
      %v488 = vpack.c.b16 %v464, %v463
      %v489 = vpack.c.b16 %v466, %v465
      %v490 = vpack.c.b16 %v468, %v467
      %v491 = vpack.c.b16 %v470, %v469
      %v492 = vpack.c.b16 %v472, %v471
      %v493 = vpack.c.b16 %v474, %v473
      %v494 = vpack.c.b16 %v476, %v475
      %v495 = vpack.c.b16 %v478, %v477
      %v496 = vpack.c.b16 %v480, %v479
      %v529 = vunpack.c.l.b16 %v401
      %v530 = vunpack.c.l.b16 %v402
      %v531 = vunpack.c.l.b16 %v403
      %v532 = vunpack.c.l.b16 %v404
      %v533 = vunpack.c.l.b16 %v405
      %v534 = vunpack.c.l.b16 %v406
      %v535 = vunpack.c.l.b16 %v407
      %v536 = vunpack.c.l.b16 %v408
      %v537 = vunpack.c.l.b16 %v409
      %v538 = vunpack.c.l.b16 %v410
      %v539 = vunpack.c.l.b16 %v411
      %v540 = vunpack.c.l.b16 %v412
      %v541 = vunpack.c.l.b16 %v413
      %v542 = vunpack.c.l.b16 %v414
      %v543 = vunpack.c.l.b16 %v415
      %v544 = vunpack.c.l.b16 %v416
      %v545 = vpack.c.b16 %v530, %v529
      %v546 = vpack.c.b16 %v532, %v531
      %v547 = vpack.c.b16 %v534, %v533
      %v548 = vpack.c.b16 %v536, %v535
      %v549 = vpack.c.b16 %v538, %v537
      %v550 = vpack.c.b16 %v540, %v539
      %v551 = vpack.c.b16 %v542, %v541
      %v552 = vpack.c.b16 %v544, %v543
      %561 = vmatprep.subr.bf16.mxu0 0
      %562 = vmatpush1.bf16.msra.mxu0 %v545
      %563 = vmatprep.subr.bf16.mxu0 0
      %564 = vmatpush1.bf16.msra.mxu0 %v546
      %565 = vmatprep.subr.bf16.mxu0 0
      %566 = vmatpush1.bf16.msra.mxu0 %v547
      %567 = vmatprep.subr.bf16.mxu0 0
      %568 = vmatpush1.bf16.msra.mxu0 %v548
      %569 = vmatprep.subr.bf16.mxu0 0
      %570 = vmatpush1.bf16.msra.mxu0 %v549
      %571 = vmatprep.subr.bf16.mxu0 0
      %572 = vmatpush1.bf16.msra.mxu0 %v550
      %573 = vmatprep.subr.bf16.mxu0 0
      %574 = vmatpush1.bf16.msra.mxu0 %v551
      %575 = vmatprep.subr.bf16.mxu0 0
      %576 = vmatpush1.bf16.msra.mxu0 %v552
      %577 = vmatprep.subr.bf16.mxu0 0
      %578 = vmatpush1.bf16.msra.mxu0 0
      %579 = vmatprep.subr.bf16.mxu0 0
      %580 = vmatpush1.bf16.msra.mxu0 0
      %581 = vmatprep.subr.bf16.mxu0 0
      %582 = vmatpush1.bf16.msra.mxu0 0
      %583 = vmatprep.subr.bf16.mxu0 0
      %584 = vmatpush1.bf16.msra.mxu0 0
      %585 = vmatprep.subr.bf16.mxu0 0
      %586 = vmatpush1.bf16.msra.mxu0 0
      %587 = vmatprep.subr.bf16.mxu0 0
      %588 = vmatpush1.bf16.msra.mxu0 0
      %589 = vmatprep.subr.bf16.mxu0 0
      %590 = vmatpush1.bf16.msra.mxu0 0
      %591 = vmatprep.subr.bf16.mxu0 0
      %592 = vmatpush1.bf16.msra.mxu0 0
      %593 = vmatprep.mubr.bf16.mxu0 0
      %594 = vmatmul.mubr.bf16.gmra.mrb[0].mxu0 %v481
      %v595 = vpop.f32.mrb[0].mxu0
      %v596 = vadd.f32 0.0, %v595
      %v597 = vpop.f32.mrb[0].mxu0
      %v598 = vpop.f32.mrb[0].mxu0
      %v599 = vadd.f32 0.0, %v598
      %v600 = vpop.f32.mrb[0].mxu0
      %601 = vmatprep.mubr.bf16.mxu0 0
      %602 = vmatmul.mubr.bf16.gmra.mrb[0].mxu0 %v482
      %v603 = vpop.f32.mrb[0].mxu0
      %v604 = vadd.f32 0.0, %v603
      %v605 = vpop.f32.mrb[0].mxu0
      %v606 = vpop.f32.mrb[0].mxu0
      %v607 = vadd.f32 0.0, %v606
      %v608 = vpop.f32.mrb[0].mxu0
      %609 = vmatprep.mubr.bf16.mxu0 0
      %610 = vmatmul.mubr.bf16.gmra.mrb[0].mxu0 %v483
      %v611 = vpop.f32.mrb[0].mxu0
      %v612 = vadd.f32 0.0, %v611
      %v613 = vpop.f32.mrb[0].mxu0
      %v614 = vpop.f32.mrb[0].mxu0
      %v615 = vadd.f32 0.0, %v614
      %v616 = vpop.f32.mrb[0].mxu0
      %617 = vmatprep.mubr.bf16.mxu0 0
      %618 = vmatmul.mubr.bf16.gmra.mrb[0].mxu0 %v484
      %v619 = vpop.f32.mrb[0].mxu0
      %v620 = vadd.f32 0.0, %v619
      %v621 = vpop.f32.mrb[0].mxu0
      %v622 = vpop.f32.mrb[0].mxu0
      %v623 = vadd.f32 0.0, %v622
      %v624 = vpop.f32.mrb[0].mxu0
      %625 = vmatprep.mubr.bf16.mxu0 0
      %626 = vmatmul.mubr.bf16.gmra.mrb[0].mxu0 %v485
      %v627 = vpop.f32.mrb[0].mxu0
      %v628 = vadd.f32 0.0, %v627
      %v629 = vpop.f32.mrb[0].mxu0
      %v630 = vpop.f32.mrb[0].mxu0
      %v631 = vadd.f32 0.0, %v630
      %v632 = vpop.f32.mrb[0].mxu0
      %633 = vmatprep.mubr.bf16.mxu0 0
      %634 = vmatmul.mubr.bf16.gmra.mrb[0].mxu0 %v486
      %v635 = vpop.f32.mrb[0].mxu0
      %v636 = vadd.f32 0.0, %v635
      %v637 = vpop.f32.mrb[0].mxu0
      %v638 = vpop.f32.mrb[0].mxu0
      %v639 = vadd.f32 0.0, %v638
      %v640 = vpop.f32.mrb[0].mxu0
      %641 = vmatprep.mubr.bf16.mxu0 0
      %642 = vmatmul.mubr.bf16.gmra.mrb[0].mxu0 %v487
      %v643 = vpop.f32.mrb[0].mxu0
      %v644 = vadd.f32 0.0, %v643
      %v645 = vpop.f32.mrb[0].mxu0
      %v646 = vpop.f32.mrb[0].mxu0
      %v647 = vadd.f32 0.0, %v646
      %v648 = vpop.f32.mrb[0].mxu0
      %649 = vmatprep.mubr.bf16.mxu0 0
      %650 = vmatmul.mubr.bf16.gmra.mrb[0].mxu0 %v488
      %v651 = vpop.f32.mrb[0].mxu0
      %v652 = vadd.f32 0.0, %v651
      %v653 = vpop.f32.mrb[0].mxu0
      %v654 = vpop.f32.mrb[0].mxu0
      %v655 = vadd.f32 0.0, %v654
      %v656 = vpop.f32.mrb[0].mxu0
      %657 = vmatprep.mubr.bf16.mxu0 0
      %658 = vmatmul.mubr.bf16.gmra.mrb[0].mxu0 %v489
      %v659 = vpop.f32.mrb[0].mxu0
      %v660 = vadd.f32 0.0, %v659
      %v661 = vpop.f32.mrb[0].mxu0
      %v662 = vpop.f32.mrb[0].mxu0
      %v663 = vadd.f32 0.0, %v662
      %v664 = vpop.f32.mrb[0].mxu0
      %665 = vmatprep.mubr.bf16.mxu0 0
      %666 = vmatmul.mubr.bf16.gmra.mrb[0].mxu0 %v490
      %v667 = vpop.f32.mrb[0].mxu0
      %v668 = vadd.f32 0.0, %v667
      %v669 = vpop.f32.mrb[0].mxu0
      %v670 = vpop.f32.mrb[0].mxu0
      %v671 = vadd.f32 0.0, %v670
      %v672 = vpop.f32.mrb[0].mxu0
      %673 = vmatprep.mubr.bf16.mxu0 0
      %674 = vmatmul.mubr.bf16.gmra.mrb[0].mxu0 %v491
      %v675 = vpop.f32.mrb[0].mxu0
      %v676 = vadd.f32 0.0, %v675
      %v677 = vpop.f32.mrb[0].mxu0
      %v678 = vpop.f32.mrb[0].mxu0
      %v679 = vadd.f32 0.0, %v678
      %v680 = vpop.f32.mrb[0].mxu0
      %681 = vmatprep.mubr.bf16.mxu0 0
      %682 = vmatmul.mubr.bf16.gmra.mrb[0].mxu0 %v492
      %v683 = vpop.f32.mrb[0].mxu0
      %v684 = vadd.f32 0.0, %v683
      %v685 = vpop.f32.mrb[0].mxu0
      %v686 = vpop.f32.mrb[0].mxu0
      %v687 = vadd.f32 0.0, %v686
      %v688 = vpop.f32.mrb[0].mxu0
      %689 = vmatprep.mubr.bf16.mxu0 0
      %690 = vmatmul.mubr.bf16.gmra.mrb[0].mxu0 %v493
      %v691 = vpop.f32.mrb[0].mxu0
      %v692 = vadd.f32 0.0, %v691
      %v693 = vpop.f32.mrb[0].mxu0
      %v694 = vpop.f32.mrb[0].mxu0
      %v695 = vadd.f32 0.0, %v694
      %v696 = vpop.f32.mrb[0].mxu0
      %697 = vmatprep.mubr.bf16.mxu0 0
      %698 = vmatmul.mubr.bf16.gmra.mrb[0].mxu0 %v494
      %v699 = vpop.f32.mrb[0].mxu0
      %v700 = vadd.f32 0.0, %v699
      %v701 = vpop.f32.mrb[0].mxu0
      %v702 = vpop.f32.mrb[0].mxu0
      %v703 = vadd.f32 0.0, %v702
      %v704 = vpop.f32.mrb[0].mxu0
      %705 = vmatprep.mubr.bf16.mxu0 0
      %706 = vmatmul.mubr.bf16.gmra.mrb[0].mxu0 %v495
      %v707 = vpop.f32.mrb[0].mxu0
      %v708 = vadd.f32 0.0, %v707
      %v709 = vpop.f32.mrb[0].mxu0
      %v710 = vpop.f32.mrb[0].mxu0
      %v711 = vadd.f32 0.0, %v710
      %v712 = vpop.f32.mrb[0].mxu0
      %713 = vmatprep.mubr.bf16.mxu0 0
      %714 = vmatmul.mubr.bf16.gmra.mrb[0].mxu0 %v496
      %v715 = vpop.f32.mrb[0].mxu0
      %v716 = vadd.f32 0.0, %v715
      %v717 = vpop.f32.mrb[0].mxu0
      %v718 = vpop.f32.mrb[0].mxu0
      %v719 = vadd.f32 0.0, %v718
      %v720 = vpop.f32.mrb[0].mxu0
      %721 = vdwg.mxu0
      %v722 = vadd.f32 %v337, %v596
      %v723 = vadd.f32 %v338, %v599
      %v724 = vadd.f32 %v339, %v604
      %v725 = vadd.f32 %v340, %v607
      %v726 = vadd.f32 %v341, %v612
      %v727 = vadd.f32 %v342, %v615
      %v728 = vadd.f32 %v343, %v620
      %v729 = vadd.f32 %v344, %v623
      %v730 = vadd.f32 %v345, %v628
      %v731 = vadd.f32 %v346, %v631
      %v732 = vadd.f32 %v347, %v636
      %v733 = vadd.f32 %v348, %v639
      %v734 = vadd.f32 %v349, %v644
      %v735 = vadd.f32 %v350, %v647
      %v736 = vadd.f32 %v351, %v652
      %v737 = vadd.f32 %v352, %v655
      %v738 = vadd.f32 %v353, %v660
      %v739 = vadd.f32 %v354, %v663
      %v740 = vadd.f32 %v355, %v668
      %v741 = vadd.f32 %v356, %v671
      %v742 = vadd.f32 %v357, %v676
      %v743 = vadd.f32 %v358, %v679
      %v744 = vadd.f32 %v359, %v684
      %v745 = vadd.f32 %v360, %v687
      %v746 = vadd.f32 %v361, %v692
      %v747 = vadd.f32 %v362, %v695
      %v748 = vadd.f32 %v363, %v700
      %v749 = vadd.f32 %v364, %v703
      %v750 = vadd.f32 %v365, %v708
      %v751 = vadd.f32 %v366, %v711
      %v752 = vadd.f32 %v367, %v716
      %v753 = vadd.f32 %v368, %v719
      %754 = vst [vmem:[#allocation2] sm:$0xff] %v722
      %755 = vst [vmem:[#allocation2 + $0x8] sm:$0xff] %v723
      %756 = vst [vmem:[#allocation2 + $0x10] sm:$0xff] %v724
      %757 = vst [vmem:[#allocation2 + $0x18] sm:$0xff] %v725
      %758 = vst [vmem:[#allocation2 + $0x20] sm:$0xff] %v726
      %759 = vst [vmem:[#allocation2 + $0x28] sm:$0xff] %v727
      %760 = vst [vmem:[#allocation2 + $0x30] sm:$0xff] %v728
      %761 = vst [vmem:[#allocation2 + $0x38] sm:$0xff] %v729
      %762 = vst [vmem:[#allocation2 + $0x40] sm:$0xff] %v730
      %763 = vst [vmem:[#allocation2 + $0x48] sm:$0xff] %v731
      %764 = vst [vmem:[#allocation2 + $0x50] sm:$0xff] %v732
      %765 = vst [vmem:[#allocation2 + $0x58] sm:$0xff] %v733
      %766 = vst [vmem:[#allocation2 + $0x60] sm:$0xff] %v734
      %767 = vst [vmem:[#allocation2 + $0x68] sm:$0xff] %v735
      %768 = vst [vmem:[#allocation2 + $0x70] sm:$0xff] %v736
      %769 = vst [vmem:[#allocation2 + $0x78] sm:$0xff] %v737
      %770 = vst [vmem:[#allocation2 + $0x80] sm:$0xff] %v738
      %771 = vst [vmem:[#allocation2 + $0x88] sm:$0xff] %v739
      %772 = vst [vmem:[#allocation2 + $0x90] sm:$0xff] %v740
      %773 = vst [vmem:[#allocation2 + $0x98] sm:$0xff] %v741
      %774 = vst [vmem:[#allocation2 + $0xa0] sm:$0xff] %v742
      %775 = vst [vmem:[#allocation2 + $0xa8] sm:$0xff] %v743
      %776 = vst [vmem:[#allocation2 + $0xb0] sm:$0xff] %v744
      %777 = vst [vmem:[#allocation2 + $0xb8] sm:$0xff] %v745
      %778 = vst [vmem:[#allocation2 + $0xc0] sm:$0xff] %v746
      %779 = vst [vmem:[#allocation2 + $0xc8] sm:$0xff] %v747
      %780 = vst [vmem:[#allocation2 + $0xd0] sm:$0xff] %v748
      %781 = vst [vmem:[#allocation2 + $0xd8] sm:$0xff] %v749
      %782 = vst [vmem:[#allocation2 + $0xe0] sm:$0xff] %v750
      %783 = vst [vmem:[#allocation2 + $0xe8] sm:$0xff] %v751
      %784 = vst [vmem:[#allocation2 + $0xf0] sm:$0xff] %v752
      %785 = vst [vmem:[#allocation2 + $0xf8] sm:$0xff] %v753
      // Predicated region
      $region41: #{resnet_block_forward.4} parent=35 // pred_check
        %p786 = pneg %p301
      $region42: #{resnet_block_forward.4} parent=35 // pred_check_branch
        %788 = sbr.rel (%p786) target = $region44
      $region43: #{resnet_block_forward.4} parent=35 // pred_region
        %v789 = vld [vmem:[#allocation2] sm:$0xff]
        %v790 = vld [vmem:[#allocation2 + $0x8] sm:$0xff]
        %v791 = vld [vmem:[#allocation2 + $0x10] sm:$0xff]
        %v792 = vld [vmem:[#allocation2 + $0x18] sm:$0xff]
        %v793 = vld [vmem:[#allocation2 + $0x20] sm:$0xff]
        %v794 = vld [vmem:[#allocation2 + $0x28] sm:$0xff]
        %v795 = vld [vmem:[#allocation2 + $0x30] sm:$0xff]
        %v796 = vld [vmem:[#allocation2 + $0x38] sm:$0xff]
        %v797 = vld [vmem:[#allocation2 + $0x40] sm:$0xff]
        %v798 = vld [vmem:[#allocation2 + $0x48] sm:$0xff]
        %v799 = vld [vmem:[#allocation2 + $0x50] sm:$0xff]
        %v800 = vld [vmem:[#allocation2 + $0x58] sm:$0xff]
        %v801 = vld [vmem:[#allocation2 + $0x60] sm:$0xff]
        %v802 = vld [vmem:[#allocation2 + $0x68] sm:$0xff]
        %v803 = vld [vmem:[#allocation2 + $0x70] sm:$0xff]
        %v804 = vld [vmem:[#allocation2 + $0x78] sm:$0xff]
        %v805 = vld [vmem:[#allocation2 + $0x80] sm:$0xff]
        %v806 = vld [vmem:[#allocation2 + $0x88] sm:$0xff]
        %v807 = vld [vmem:[#allocation2 + $0x90] sm:$0xff]
        %v808 = vld [vmem:[#allocation2 + $0x98] sm:$0xff]
        %v809 = vld [vmem:[#allocation2 + $0xa0] sm:$0xff]
        %v810 = vld [vmem:[#allocation2 + $0xa8] sm:$0xff]
        %v811 = vld [vmem:[#allocation2 + $0xb0] sm:$0xff]
        %v812 = vld [vmem:[#allocation2 + $0xb8] sm:$0xff]
        %v813 = vld [vmem:[#allocation2 + $0xc0] sm:$0xff]
        %v814 = vld [vmem:[#allocation2 + $0xc8] sm:$0xff]
        %v815 = vld [vmem:[#allocation2 + $0xd0] sm:$0xff]
        %v816 = vld [vmem:[#allocation2 + $0xd8] sm:$0xff]
        %v817 = vld [vmem:[#allocation2 + $0xe0] sm:$0xff]
        %v818 = vld [vmem:[#allocation2 + $0xe8] sm:$0xff]
        %v819 = vld [vmem:[#allocation2 + $0xf0] sm:$0xff]
        %v820 = vld [vmem:[#allocation2 + $0xf8] sm:$0xff]
        %v821 = vld [vmem:[%s287] sm:$0x1]
        %v823 = vlaneseq
        %v824 = vshrl.u32 %v823, 7
        %v825 = vsub.s32 0, %v824
        %v826 = vrot.slane %v821, %v825
        %v828 = vmul.f32 %v789, %v826
        %v829 = vmul.f32 %v790, %v826
        %v830 = vmul.f32 %v791, %v826
        %v831 = vmul.f32 %v792, %v826
        %v832 = vmul.f32 %v793, %v826
        %v833 = vmul.f32 %v794, %v826
        %v834 = vmul.f32 %v795, %v826
        %v835 = vmul.f32 %v796, %v826
        %v836 = vmul.f32 %v797, %v826
        %v837 = vmul.f32 %v798, %v826
        %v838 = vmul.f32 %v799, %v826
        %v839 = vmul.f32 %v800, %v826
        %v840 = vmul.f32 %v801, %v826
        %v841 = vmul.f32 %v802, %v826
        %v842 = vmul.f32 %v803, %v826
        %v843 = vmul.f32 %v804, %v826
        %v844 = vmul.f32 %v805, %v826
        %v845 = vmul.f32 %v806, %v826
        %v846 = vmul.f32 %v807, %v826
        %v847 = vmul.f32 %v808, %v826
        %v848 = vmul.f32 %v809, %v826
        %v849 = vmul.f32 %v810, %v826
        %v850 = vmul.f32 %v811, %v826
        %v851 = vmul.f32 %v812, %v826
        %v852 = vmul.f32 %v813, %v826
        %v853 = vmul.f32 %v814, %v826
        %v854 = vmul.f32 %v815, %v826
        %v855 = vmul.f32 %v816, %v826
        %v856 = vmul.f32 %v817, %v826
        %v857 = vmul.f32 %v818, %v826
        %v858 = vmul.f32 %v819, %v826
        %v859 = vmul.f32 %v820, %v826
        %v860 = vld [vmem:[%s290] sm:$0x1]
        %v862 = vlaneseq
        %v863 = vshrl.u32 %v862, 7
        %v864 = vsub.s32 0, %v863
        %v865 = vrot.slane %v860, %v864
        %v867 = vadd.f32 %v828, %v865
        %v868 = vadd.f32 %v829, %v865
        %v869 = vadd.f32 %v830, %v865
        %v870 = vadd.f32 %v831, %v865
        %v871 = vadd.f32 %v832, %v865
        %v872 = vadd.f32 %v833, %v865
        %v873 = vadd.f32 %v834, %v865
        %v874 = vadd.f32 %v835, %v865
        %v875 = vadd.f32 %v836, %v865
        %v876 = vadd.f32 %v837, %v865
        %v877 = vadd.f32 %v838, %v865
        %v878 = vadd.f32 %v839, %v865
        %v879 = vadd.f32 %v840, %v865
        %v880 = vadd.f32 %v841, %v865
        %v881 = vadd.f32 %v842, %v865
        %v882 = vadd.f32 %v843, %v865
        %v883 = vadd.f32 %v844, %v865
        %v884 = vadd.f32 %v845, %v865
        %v885 = vadd.f32 %v846, %v865
        %v886 = vadd.f32 %v847, %v865
        %v887 = vadd.f32 %v848, %v865
        %v888 = vadd.f32 %v849, %v865
        %v889 = vadd.f32 %v850, %v865
        %v890 = vadd.f32 %v851, %v865
        %v891 = vadd.f32 %v852, %v865
        %v892 = vadd.f32 %v853, %v865
        %v893 = vadd.f32 %v854, %v865
        %v894 = vadd.f32 %v855, %v865
        %v895 = vadd.f32 %v856, %v865
        %v896 = vadd.f32 %v857, %v865
        %v897 = vadd.f32 %v858, %v865
        %v898 = vadd.f32 %v859, %v865
        %v899 = vmax.f32 %v867, 0.0
        %v900 = vmax.f32 %v868, 0.0
        %v901 = vmax.f32 %v869, 0.0
        %v902 = vmax.f32 %v870, 0.0
        %v903 = vmax.f32 %v871, 0.0
        %v904 = vmax.f32 %v872, 0.0
        %v905 = vmax.f32 %v873, 0.0
        %v906 = vmax.f32 %v874, 0.0
        %v907 = vmax.f32 %v875, 0.0
        %v908 = vmax.f32 %v876, 0.0
        %v909 = vmax.f32 %v877, 0.0
        %v910 = vmax.f32 %v878, 0.0
        %v911 = vmax.f32 %v879, 0.0
        %v912 = vmax.f32 %v880, 0.0
        %v913 = vmax.f32 %v881, 0.0
        %v914 = vmax.f32 %v882, 0.0
        %v915 = vmax.f32 %v883, 0.0
        %v916 = vmax.f32 %v884, 0.0
        %v917 = vmax.f32 %v885, 0.0
        %v918 = vmax.f32 %v886, 0.0
        %v919 = vmax.f32 %v887, 0.0
        %v920 = vmax.f32 %v888, 0.0
        %v921 = vmax.f32 %v889, 0.0
        %v922 = vmax.f32 %v890, 0.0
        %v923 = vmax.f32 %v891, 0.0
        %v924 = vmax.f32 %v892, 0.0
        %v925 = vmax.f32 %v893, 0.0
        %v926 = vmax.f32 %v894, 0.0
        %v927 = vmax.f32 %v895, 0.0
        %v928 = vmax.f32 %v896, 0.0
        %v929 = vmax.f32 %v897, 0.0
        %v930 = vmax.f32 %v898, 0.0
        %v931 = vpack.c.bf16 %v900, %v899
        %v932 = vpack.c.bf16 %v902, %v901
        %v933 = vpack.c.bf16 %v904, %v903
        %v934 = vpack.c.bf16 %v906, %v905
        %v935 = vpack.c.bf16 %v908, %v907
        %v936 = vpack.c.bf16 %v910, %v909
        %v937 = vpack.c.bf16 %v912, %v911
        %v938 = vpack.c.bf16 %v914, %v913
        %v939 = vpack.c.bf16 %v916, %v915
        %v940 = vpack.c.bf16 %v918, %v917
        %v941 = vpack.c.bf16 %v920, %v919
        %v942 = vpack.c.bf16 %v922, %v921
        %v943 = vpack.c.bf16 %v924, %v923
        %v944 = vpack.c.bf16 %v926, %v925
        %v945 = vpack.c.bf16 %v928, %v927
        %v946 = vpack.c.bf16 %v930, %v929
        %v963 = vunpack.c.l.b16 %v931
        %v964 = vunpack.c.h.b16 %v931
        %v965 = vunpack.c.l.b16 %v932
        %v966 = vunpack.c.h.b16 %v932
        %v967 = vunpack.c.l.b16 %v933
        %v968 = vunpack.c.h.b16 %v933
        %v969 = vunpack.c.l.b16 %v934
        %v970 = vunpack.c.h.b16 %v934
        %v971 = vunpack.c.l.b16 %v935
        %v972 = vunpack.c.h.b16 %v935
        %v973 = vunpack.c.l.b16 %v936
        %v974 = vunpack.c.h.b16 %v936
        %v975 = vunpack.c.l.b16 %v937
        %v976 = vunpack.c.h.b16 %v937
        %v977 = vunpack.c.l.b16 %v938
        %v978 = vunpack.c.h.b16 %v938
        %v979 = vunpack.c.l.b16 %v939
        %v980 = vunpack.c.h.b16 %v939
        %v981 = vunpack.c.l.b16 %v940
        %v982 = vunpack.c.h.b16 %v940
        %v983 = vunpack.c.l.b16 %v941
        %v984 = vunpack.c.h.b16 %v941
        %v985 = vunpack.c.l.b16 %v942
        %v986 = vunpack.c.h.b16 %v942
        %v987 = vunpack.c.l.b16 %v943
        %v988 = vunpack.c.h.b16 %v943
        %v989 = vunpack.c.l.b16 %v944
        %v990 = vunpack.c.h.b16 %v944
        %v991 = vunpack.c.l.b16 %v945
        %v992 = vunpack.c.h.b16 %v945
        %v993 = vunpack.c.l.b16 %v946
        %v994 = vunpack.c.h.b16 %v946
        %v995 = vpack.c.b16 %v963, %v963
        %v996 = vpack.c.b16 %v964, %v964
        %v997 = vpack.c.b16 %v965, %v965
        %v998 = vpack.c.b16 %v966, %v966
        %v999 = vpack.c.b16 %v967, %v967
        %v1000 = vpack.c.b16 %v968, %v968
        %v1001 = vpack.c.b16 %v969, %v969
        %v1002 = vpack.c.b16 %v970, %v970
        %v1003 = vpack.c.b16 %v971, %v971
        %v1004 = vpack.c.b16 %v972, %v972
        %v1005 = vpack.c.b16 %v973, %v973
        %v1006 = vpack.c.b16 %v974, %v974
        %v1007 = vpack.c.b16 %v975, %v975
        %v1008 = vpack.c.b16 %v976, %v976
        %v1009 = vpack.c.b16 %v977, %v977
        %v1010 = vpack.c.b16 %v978, %v978
        %v1011 = vpack.c.b16 %v979, %v979
        %v1012 = vpack.c.b16 %v980, %v980
        %v1013 = vpack.c.b16 %v981, %v981
        %v1014 = vpack.c.b16 %v982, %v982
        %v1015 = vpack.c.b16 %v983, %v983
        %v1016 = vpack.c.b16 %v984, %v984
        %v1017 = vpack.c.b16 %v985, %v985
        %v1018 = vpack.c.b16 %v986, %v986
        %v1019 = vpack.c.b16 %v987, %v987
        %v1020 = vpack.c.b16 %v988, %v988
        %v1021 = vpack.c.b16 %v989, %v989
        %v1022 = vpack.c.b16 %v990, %v990
        %v1023 = vpack.c.b16 %v991, %v991
        %v1024 = vpack.c.b16 %v992, %v992
        %v1025 = vpack.c.b16 %v993, %v993
        %v1026 = vpack.c.b16 %v994, %v994
        %1059 = vst [vmem:[%s298] sm:$0xf] %v995
        %1060 = vst [vmem:[%s298 + $0x4] sm:$0xf] %v996
        %1061 = vst [vmem:[%s298 + $0x8] sm:$0xf] %v997
        %1062 = vst [vmem:[%s298 + $0xc] sm:$0xf] %v998
        %1063 = vst [vmem:[%s298 + $0x10] sm:$0xf] %v999
        %1064 = vst [vmem:[%s298 + $0x14] sm:$0xf] %v1000
        %1065 = vst [vmem:[%s298 + $0x18] sm:$0xf] %v1001
        %1066 = vst [vmem:[%s298 + $0x1c] sm:$0xf] %v1002
        %1067 = vst [vmem:[%s298 + $0x20] sm:$0xf] %v1003
        %1068 = vst [vmem:[%s298 + $0x24] sm:$0xf] %v1004
        %1069 = vst [vmem:[%s298 + $0x28] sm:$0xf] %v1005
        %1070 = vst [vmem:[%s298 + $0x2c] sm:$0xf] %v1006
        %1071 = vst [vmem:[%s298 + $0x30] sm:$0xf] %v1007
        %1072 = vst [vmem:[%s298 + $0x34] sm:$0xf] %v1008
        %1073 = vst [vmem:[%s298 + $0x38] sm:$0xf] %v1009
        %1074 = vst [vmem:[%s298 + $0x3c] sm:$0xf] %v1010
        %1075 = vst [vmem:[%s298 + $0x40] sm:$0xf] %v1011
        %1076 = vst [vmem:[%s298 + $0x44] sm:$0xf] %v1012
        %1077 = vst [vmem:[%s298 + $0x48] sm:$0xf] %v1013
        %1078 = vst [vmem:[%s298 + $0x4c] sm:$0xf] %v1014
        %1079 = vst [vmem:[%s298 + $0x50] sm:$0xf] %v1015
        %1080 = vst [vmem:[%s298 + $0x54] sm:$0xf] %v1016
        %1081 = vst [vmem:[%s298 + $0x58] sm:$0xf] %v1017
        %1082 = vst [vmem:[%s298 + $0x5c] sm:$0xf] %v1018
        %1083 = vst [vmem:[%s298 + $0x60] sm:$0xf] %v1019
        %1084 = vst [vmem:[%s298 + $0x64] sm:$0xf] %v1020
        %1085 = vst [vmem:[%s298 + $0x68] sm:$0xf] %v1021
        %1086 = vst [vmem:[%s298 + $0x6c] sm:$0xf] %v1022
        %1087 = vst [vmem:[%s298 + $0x70] sm:$0xf] %v1023
        %1088 = vst [vmem:[%s298 + $0x74] sm:$0xf] %v1024
        %1089 = vst [vmem:[%s298 + $0x78] sm:$0xf] %v1025
        %1090 = vst [vmem:[%s298 + $0x7c] sm:$0xf] %v1026
      $region44: #{resnet_block_forward.4} parent=35 // pred_fallthru
        _
      %s1091 = smul.u32 32, %s20
      %p1092 = scmp.lt.s32.totalorder %s1091, 63
      %s1093 = scalar_select %p1092, %s1091, 63
      %p1094 = scmp.lt.s32.totalorder %s21, 0
      %s1095 = scalar_select %p1094, %s21, 0
      %s1096 = sadd.s32 %s1095, %s1093
      %s1097 = smul.addr %s1096, 4
      %s1098 = scalar_lea.vmem %s4, %s1097
      // Predicated region
      $region45: #{resnet_block_forward.4} parent=35 // pred_check
        %p1099 = pneg %p162
      $region46: #{resnet_block_forward.4} parent=35 // pred_check_branch
        %1101 = sbr.rel (%p1099) target = $region48
      $region47: #{resnet_block_forward.4} parent=35 // pred_region
        %s1102 = smul.u32 32, %s20
      $region48: #{resnet_block_forward.4} parent=35 // pred_fallthru
        _
    $region36: #{resnet_block_forward.4} parent=5 // pred_fallthru
      _
    %p1103 = scmp.le.s32.totalorder 2, %s10
    // Predicated region
    $region49: #{resnet_block_forward.4} parent=5 // pred_check
      %p1104 = pneg %p1103
    $region50: #{resnet_block_forward.4} parent=5 // pred_check_branch
      %1106 = sbr.rel (%p1104) target = $region52
    $region51: #{resnet_block_forward.4} parent=5 // pred_region
      %s1107 = ssub.s32 %s10, 2
      // Predicated region
      $region53: #{resnet_block_forward.4} parent=51 // pred_check
        %p1108 = pneg %p168
      $region54: #{resnet_block_forward.4} parent=51 // pred_check_branch
        %1110 = sbr.rel (%p1108) target = $region56
      $region55: #{resnet_block_forward.4} parent=51 // pred_region
        %s1111 = smul.u32 32, %s23
        %p1112 = scmp.lt.s32.totalorder %s1111, 63
        %s1113 = scalar_select %p1112, %s1111, 63
        %p1114 = scmp.lt.s32.totalorder %s24, 0
        %s1115 = scalar_select %p1114, %s24, 0
        %s1116 = sadd.s32 %s1115, %s1113
        %s1117 = smul.addr %s1116, 4
        %s1118 = scalar_lea.vmem %s4, %s1117
      $region56: #{resnet_block_forward.4} parent=51 // pred_fallthru
        _
    $region52: #{resnet_block_forward.4} parent=5 // pred_fallthru
      _
  $region6: #{resnet_block_forward.4} parent=0 // loop_footer
    %s14 = sadd.s32 1, %s10
  $region7: #{resnet_block_forward.4} parent=0 // loop_footer_branch
    %9 = sbr.rel target = $region3
  $region8: #{resnet_block_forward.4} parent=0 // loop_exit
    _

// kernel: resnet_block_forward.6
$region0: #{resnet_block_forward.6}
  #allocation0 [shape = 'u32[]', space=smem, size = 0x4, offset = 0x4, fixed_abs, tag = 'smem constant byte address 0x4 - core index']
  #allocation1 [shape = 'u32[144,128]{1,0:T(1,128)}', space=vmem, size = 0x12000, scoped, tag = 'internal scratch']
  #allocation2 [shape = 'f32[256,128]{1,0:T(8,128)}', space=vmem, size = 0x20000, scoped, tag = 'scratch operand']
  %s0 = inlined_call_operand.vmem [shape: bf16[512,128], index: 0, kind: input, shape index: {}]
  %s1 = inlined_call_operand.vmem [shape: bf16[128,128], index: 1, kind: input, shape index: {}]
  %s2 = inlined_call_operand.vmem [shape: f32[1,128], index: 2, kind: input, shape index: {}]
  %s3 = inlined_call_operand.vmem [shape: f32[1,128], index: 3, kind: input, shape index: {}]
  %s4 = inlined_call_operand.vmem [shape: f32[512,128], index: 4, kind: output, shape index: {}]
  %s5 = sld [smem:[#allocation0]]
  $region57: #{resnet_block_forward.6} parent=0
    _
  %s7 = ssub.s32 1, %s5
  %s8 = scalar_select 0, %s7, %s5
  loop: start=0, step=1, limit=4
  $region2: #{resnet_block_forward.6} parent=0 // loop_pre_header
    _
  $region3: #{resnet_block_forward.6} parent=0 // loop_header
    %s10 = sphi 0, %s14
    %p11 = scmp.ge.s32.totalorder %s10, 4
    %s17 = sphi 0, %s36
    %s18 = sphi 0, %s32
    %s19 = sphi 0, %s28
    %s20 = sphi 0, %s17
    %s21 = sphi 0, %s18
    %s22 = sphi 0, %s19
    %s23 = sphi 0, %s20
    %s24 = sphi 0, %s21
    %s25 = sphi 0, %s22
    %s41 = sphi 0, %s43
    %s44 = sphi 0, %s41
    %s45 = sphi 0, %s44
    %s61 = sphi 0, %s45
    %s69 = sphi 0, %s71
    %s72 = sphi 0, %s69
    %s73 = sphi 0, %s72
    %s89 = sphi 0, %s73
    %s95 = sphi 0, %s97
    %s98 = sphi 0, %s95
    %s99 = sphi 0, %s98
    %s115 = sphi 0, %s99
    %s121 = sphi 0, %s123
    %s124 = sphi 0, %s121
    %s125 = sphi 0, %s124
    %s141 = sphi 0, %s125
    %s149 = sphi 0, %s151
    %s152 = sphi 0, %s149
    %s153 = sphi 0, %s152
    %s169 = sphi 0, %s153
  $region4: #{resnet_block_forward.6} parent=0 // loop_header_branch
    %13 = sbr.rel (%p11) target = $region8
  $region5: #{resnet_block_forward.6} parent=0 // loop_body
    %s15 = ssub.s32 %s10, 1
    %s16 = ssub.s32 %s10, 2
    %s26 = sadd.s32 1, %s19
    %p27 = scmp.ge.s32.totalorder %s26, 1
    %s28 = scalar_select %p27, 0, %s26
    %s29 = sadd.s32 1, %s18
    %s30 = scalar_select %p27, %s29, %s18
    %p31 = scmp.ge.s32.totalorder %s30, 1
    %s32 = scalar_select %p31, 0, %s30
    %s33 = sadd.s32 1, %s17
    %s34 = scalar_select %p31, %s33, %s17
    %p35 = scmp.ge.s32.totalorder %s34, 2
    %s36 = scalar_select %p35, 0, %s34
    %s37 = ssub.s32 %s17, %s36
    %s38 = ssub.s32 %s19, %s28
    %s39 = sor.u32 %s37, %s38
    %p40 = scmp.eq.s32.totalorder %s39, 0
    %s42 = sadd.s32 %s41, 1
    %s43 = scalar_select %p40, %s41, %s42
    %p46 = pneg %p40
    %p47 = scmp.eq.s32.totalorder %s10, 1
    %p48 = por %p46, %p47
    %p49 = scmp.ne.s32.totalorder %s41, %s44
    %p50 = scmp.eq.s32.totalorder %s10, 0
    %p51 = por %p49, %p50
    %p52 = scmp.ne.s32.totalorder %s41, %s44
    %p53 = scmp.eq.s32.totalorder %s15, 1
    %p54 = por %p52, %p53
    %p55 = scmp.ne.s32.totalorder %s44, %s45
    %p56 = scmp.eq.s32.totalorder %s15, 0
    %p57 = por %p55, %p56
    %p58 = scmp.ne.s32.totalorder %s44, %s45
    %p59 = scmp.eq.s32.totalorder %s16, 1
    %p60 = por %p58, %p59
    %p62 = scmp.ne.s32.totalorder %s45, %s61
    %p63 = scmp.eq.s32.totalorder %s16, 0
    %p64 = por %p62, %p63
    %s65 = ssub.s32 %s19, %s28
    %s66 = ssub.s32 %s18, %s32
    %s67 = sor.u32 %s65, %s66
    %p68 = scmp.eq.s32.totalorder %s67, 0
    %s70 = sadd.s32 %s69, 1
    %s71 = scalar_select %p68, %s69, %s70
    %p74 = pneg %p68
    %p75 = scmp.eq.s32.totalorder %s10, 1
    %p76 = por %p74, %p75
    %p77 = scmp.ne.s32.totalorder %s69, %s72
    %p78 = scmp.eq.s32.totalorder %s10, 0
    %p79 = por %p77, %p78
    %p80 = scmp.ne.s32.totalorder %s69, %s72
    %p81 = scmp.eq.s32.totalorder %s15, 1
    %p82 = por %p80, %p81
    %p83 = scmp.ne.s32.totalorder %s72, %s73
    %p84 = scmp.eq.s32.totalorder %s15, 0
    %p85 = por %p83, %p84
    %p86 = scmp.ne.s32.totalorder %s72, %s73
    %p87 = scmp.eq.s32.totalorder %s16, 1
    %p88 = por %p86, %p87
    %p90 = scmp.ne.s32.totalorder %s73, %s89
    %p91 = scmp.eq.s32.totalorder %s16, 0
    %p92 = por %p90, %p91
    %s93 = ssub.s32 %s18, %s32
    %p94 = scmp.eq.s32.totalorder %s93, 0
    %s96 = sadd.s32 %s95, 1
    %s97 = scalar_select %p94, %s95, %s96
    %p100 = pneg %p94
    %p101 = scmp.eq.s32.totalorder %s10, 1
    %p102 = por %p100, %p101
    %p103 = scmp.ne.s32.totalorder %s95, %s98
    %p104 = scmp.eq.s32.totalorder %s10, 0
    %p105 = por %p103, %p104
    %p106 = scmp.ne.s32.totalorder %s95, %s98
    %p107 = scmp.eq.s32.totalorder %s15, 1
    %p108 = por %p106, %p107
    %p109 = scmp.ne.s32.totalorder %s98, %s99
    %p110 = scmp.eq.s32.totalorder %s15, 0
    %p111 = por %p109, %p110
    %p112 = scmp.ne.s32.totalorder %s98, %s99
    %p113 = scmp.eq.s32.totalorder %s16, 1
    %p114 = por %p112, %p113
    %p116 = scmp.ne.s32.totalorder %s99, %s115
    %p117 = scmp.eq.s32.totalorder %s16, 0
    %p118 = por %p116, %p117
    %s119 = ssub.s32 %s18, %s32
    %p120 = scmp.eq.s32.totalorder %s119, 0
    %s122 = sadd.s32 %s121, 1
    %s123 = scalar_select %p120, %s121, %s122
    %p126 = pneg %p120
    %p127 = scmp.eq.s32.totalorder %s10, 1
    %p128 = por %p126, %p127
    %p129 = scmp.ne.s32.totalorder %s121, %s124
    %p130 = scmp.eq.s32.totalorder %s10, 0
    %p131 = por %p129, %p130
    %p132 = scmp.ne.s32.totalorder %s121, %s124
    %p133 = scmp.eq.s32.totalorder %s15, 1
    %p134 = por %p132, %p133
    %p135 = scmp.ne.s32.totalorder %s124, %s125
    %p136 = scmp.eq.s32.totalorder %s15, 0
    %p137 = por %p135, %p136
    %p138 = scmp.ne.s32.totalorder %s124, %s125
    %p139 = scmp.eq.s32.totalorder %s16, 1
    %p140 = por %p138, %p139
    %p142 = scmp.ne.s32.totalorder %s125, %s141
    %p143 = scmp.eq.s32.totalorder %s16, 0
    %p144 = por %p142, %p143
    %s145 = ssub.s32 %s17, %s36
    %s146 = ssub.s32 %s18, %s32
    %s147 = sor.u32 %s145, %s146
    %p148 = scmp.eq.s32.totalorder %s147, 0
    %s150 = sadd.s32 %s149, 1
    %s151 = scalar_select %p148, %s149, %s150
    %p154 = pneg %p148
    %p155 = scmp.eq.s32.totalorder %s10, 1
    %p156 = por %p154, %p155
    %p157 = scmp.ne.s32.totalorder %s149, %s152
    %p158 = scmp.eq.s32.totalorder %s10, 0
    %p159 = por %p157, %p158
    %p160 = scmp.ne.s32.totalorder %s149, %s152
    %p161 = scmp.eq.s32.totalorder %s15, 1
    %p162 = por %p160, %p161
    %p163 = scmp.ne.s32.totalorder %s152, %s153
    %p164 = scmp.eq.s32.totalorder %s15, 0
    %p165 = por %p163, %p164
    %p166 = scmp.ne.s32.totalorder %s152, %s153
    %p167 = scmp.eq.s32.totalorder %s16, 1
    %p168 = por %p166, %p167
    %p170 = scmp.ne.s32.totalorder %s153, %s169
    %p171 = scmp.eq.s32.totalorder %s16, 0
    %p172 = por %p170, %p171
    %p173 = scmp.le.s32.totalorder 1, %s10
    %p174 = scmp.lt.s32.totalorder %s10, 3
    %p175 = pnand %p173, %p174
    %p176 = pneg %p175
    // Predicated region
    $region9: #{resnet_block_forward.6} parent=5 // pred_check
      _
    $region10: #{resnet_block_forward.6} parent=5 // pred_check_branch
      %178 = sbr.rel (%p175) target = $region12
    $region11: #{resnet_block_forward.6} parent=5 // pred_region
      %s179 = ssub.s32 %s10, 1
      // Predicated region
      $region13: #{resnet_block_forward.6} parent=11 // pred_check
        %p180 = pneg %p85
      $region14: #{resnet_block_forward.6} parent=11 // pred_check_branch
        %182 = sbr.rel (%p180) target = $region16
      $region15: #{resnet_block_forward.6} parent=11 // pred_region
        %s183 = smul.u32 16, %s22
        %p184 = scmp.lt.s32.totalorder %s183, 15
        %s185 = scalar_select %p184, %s183, 15
        %p186 = scmp.lt.s32.totalorder %s21, 0
        %s187 = scalar_select %p186, %s21, 0
        %s188 = sadd.s32 %s187, %s185
        %s189 = smul.addr %s188, 4
        %s190 = scalar_lea.vmem %s1, %s189
        %s191 = smul.u32 16, %s22
      $region16: #{resnet_block_forward.6} parent=11 // pred_fallthru
        _
      // Predicated region
      $region17: #{resnet_block_forward.6} parent=11 // pred_check
        %p192 = pneg %p111
      $region18: #{resnet_block_forward.6} parent=11 // pred_check_branch
        %194 = sbr.rel (%p192) target = $region20
      $region19: #{resnet_block_forward.6} parent=11 // pred_region
        %p195 = scmp.lt.s32.totalorder %s21, 0
        %s196 = scalar_select %p195, %s21, 0
        %s197 = scalar_lea.vmem %s2, %s196
      $region20: #{resnet_block_forward.6} parent=11 // pred_fallthru
        _
      // Predicated region
      $region21: #{resnet_block_forward.6} parent=11 // pred_check
        %p198 = pneg %p137
      $region22: #{resnet_block_forward.6} parent=11 // pred_check_branch
        %200 = sbr.rel (%p198) target = $region24
      $region23: #{resnet_block_forward.6} parent=11 // pred_region
        %p201 = scmp.lt.s32.totalorder %s21, 0
        %s202 = scalar_select %p201, %s21, 0
        %s203 = scalar_lea.vmem %s3, %s202
      $region24: #{resnet_block_forward.6} parent=11 // pred_fallthru
        _
    $region12: #{resnet_block_forward.6} parent=5 // pred_fallthru
      _
    %p204 = scmp.lt.s32.totalorder %s10, 2
    // Predicated region
    $region25: #{resnet_block_forward.6} parent=5 // pred_check
      %p205 = pneg %p204
    $region26: #{resnet_block_forward.6} parent=5 // pred_check_branch
      %207 = sbr.rel (%p205) target = $region28
    $region27: #{resnet_block_forward.6} parent=5 // pred_region
      // Predicated region
      $region29: #{resnet_block_forward.6} parent=27 // pred_check
        %p208 = pneg %p51
      $region30: #{resnet_block_forward.6} parent=27 // pred_check_branch
        %210 = sbr.rel (%p208) target = $region32
      $region31: #{resnet_block_forward.6} parent=27 // pred_region
        %s211 = smul.u32 32, %s17
        %p212 = scmp.lt.s32.totalorder %s211, 63
        %s213 = scalar_select %p212, %s211, 63
        %p214 = scmp.lt.s32.totalorder %s19, 0
        %s215 = scalar_select %p214, %s19, 0
        %s216 = sadd.s32 %s215, %s213
        %s217 = smul.addr %s216, 4
        %s218 = scalar_lea.vmem %s0, %s217
        %s219 = smul.u32 32, %s17
      $region32: #{resnet_block_forward.6} parent=27 // pred_fallthru
        _
    $region28: #{resnet_block_forward.6} parent=5 // pred_fallthru
      _
    %p220 = scmp.le.s32.totalorder 1, %s10
    %p221 = scmp.lt.s32.totalorder %s10, 3
    %p222 = pnand %p220, %p221
    %p223 = pneg %p222
    // Predicated region
    $region33: #{resnet_block_forward.6} parent=5 // pred_check
      _
    $region34: #{resnet_block_forward.6} parent=5 // pred_check_branch
      %225 = sbr.rel (%p222) target = $region36
    $region35: #{resnet_block_forward.6} parent=5 // pred_region
      %s226 = ssub.s32 %s10, 1
      %s227 = smul.u32 32, %s20
      %p228 = scmp.lt.s32.totalorder %s227, 63
      %s229 = scalar_select %p228, %s227, 63
      %p230 = scmp.lt.s32.totalorder %s22, 0
      %s231 = scalar_select %p230, %s22, 0
      %s232 = sadd.s32 %s231, %s229
      %s233 = smul.addr %s232, 4
      %s234 = scalar_lea.vmem %s0, %s233
      %p235 = pneg %p57
      %p236 = pneg %p54
      %s237 = smul.u32 16, %s22
      %p238 = scmp.lt.s32.totalorder %s237, 15
      %s239 = scalar_select %p238, %s237, 15
      %p240 = scmp.lt.s32.totalorder %s21, 0
      %s241 = scalar_select %p240, %s21, 0
      %s242 = sadd.s32 %s241, %s239
      %s243 = smul.addr %s242, 4
      %s244 = scalar_lea.vmem %s1, %s243
      %p245 = pneg %p85
      %p246 = pneg %p82
      %p247 = scmp.lt.s32.totalorder %s21, 0
      %s248 = scalar_select %p247, %s21, 0
      %s249 = scalar_lea.vmem %s2, %s248
      %p250 = pneg %p111
      %p251 = pneg %p108
      %p252 = scmp.lt.s32.totalorder %s21, 0
      %s253 = scalar_select %p252, %s21, 0
      %s254 = scalar_lea.vmem %s3, %s253
      %p255 = pneg %p137
      %p256 = pneg %p134
      %p257 = pneg %p165
      %p258 = pneg %p162
      %s259 = smul.u32 32, %s20
      %p260 = scmp.lt.s32.totalorder %s259, 63
      %s261 = scalar_select %p260, %s259, 63
      %p262 = scmp.lt.s32.totalorder %s21, 0
      %s263 = scalar_select %p262, %s21, 0
      %s264 = sadd.s32 %s263, %s261
      %s265 = smul.addr %s264, 8
      %s266 = scalar_lea.vmem %s4, %s265
      %s267 = smul.u32 32, %s20
      %p268 = scmp.lt.s32.totalorder %s267, 63
      %s269 = scalar_select %p268, %s267, 63
      %p270 = scmp.lt.s32.totalorder %s22, 0
      %s271 = scalar_select %p270, %s22, 0
      %s272 = sadd.s32 %s271, %s269
      %s273 = smul.addr %s272, 4
      %s274 = scalar_lea.vmem %s0, %s273
      %s275 = smul.u32 32, %s20
      %s276 = smul.u32 16, %s22
      %p277 = scmp.lt.s32.totalorder %s276, 15
      %s278 = scalar_select %p277, %s276, 15
      %p279 = scmp.lt.s32.totalorder %s21, 0
      %s280 = scalar_select %p279, %s21, 0
      %s281 = sadd.s32 %s280, %s278
      %s282 = smul.addr %s281, 4
      %s283 = scalar_lea.vmem %s1, %s282
      %s284 = smul.u32 16, %s22
      %p285 = scmp.lt.s32.totalorder %s21, 0
      %s286 = scalar_select %p285, %s21, 0
      %s287 = scalar_lea.vmem %s2, %s286
      %p288 = scmp.lt.s32.totalorder %s21, 0
      %s289 = scalar_select %p288, %s21, 0
      %s290 = scalar_lea.vmem %s3, %s289
      %s291 = smul.u32 32, %s20
      %p292 = scmp.lt.s32.totalorder %s291, 63
      %s293 = scalar_select %p292, %s291, 63
      %p294 = scmp.lt.s32.totalorder %s21, 0
      %s295 = scalar_select %p294, %s21, 0
      %s296 = sadd.s32 %s295, %s293
      %s297 = smul.addr %s296, 8
      %s298 = scalar_lea.vmem %s4, %s297
      %s299 = smul.u32 32, %s20
      %p301 = scmp.eq.s32.totalorder %s22, 0
      // Predicated region
      $region37: #{resnet_block_forward.6} parent=35 // pred_check
        %p302 = pneg %p301
      $region38: #{resnet_block_forward.6} parent=35 // pred_check_branch
        %304 = sbr.rel (%p302) target = $region40
      $region39: #{resnet_block_forward.6} parent=35 // pred_region
        %305 = vst [vmem:[#allocation2] sm:$0xff] 0.0
        %306 = vst [vmem:[#allocation2 + $0x8] sm:$0xff] 0.0
        %307 = vst [vmem:[#allocation2 + $0x10] sm:$0xff] 0.0
        %308 = vst [vmem:[#allocation2 + $0x18] sm:$0xff] 0.0
        %309 = vst [vmem:[#allocation2 + $0x20] sm:$0xff] 0.0
        %310 = vst [vmem:[#allocation2 + $0x28] sm:$0xff] 0.0
        %311 = vst [vmem:[#allocation2 + $0x30] sm:$0xff] 0.0
        %312 = vst [vmem:[#allocation2 + $0x38] sm:$0xff] 0.0
        %313 = vst [vmem:[#allocation2 + $0x40] sm:$0xff] 0.0
        %314 = vst [vmem:[#allocation2 + $0x48] sm:$0xff] 0.0
        %315 = vst [vmem:[#allocation2 + $0x50] sm:$0xff] 0.0
        %316 = vst [vmem:[#allocation2 + $0x58] sm:$0xff] 0.0
        %317 = vst [vmem:[#allocation2 + $0x60] sm:$0xff] 0.0
        %318 = vst [vmem:[#allocation2 + $0x68] sm:$0xff] 0.0
        %319 = vst [vmem:[#allocation2 + $0x70] sm:$0xff] 0.0
        %320 = vst [vmem:[#allocation2 + $0x78] sm:$0xff] 0.0
        %321 = vst [vmem:[#allocation2 + $0x80] sm:$0xff] 0.0
        %322 = vst [vmem:[#allocation2 + $0x88] sm:$0xff] 0.0
        %323 = vst [vmem:[#allocation2 + $0x90] sm:$0xff] 0.0
        %324 = vst [vmem:[#allocation2 + $0x98] sm:$0xff] 0.0
        %325 = vst [vmem:[#allocation2 + $0xa0] sm:$0xff] 0.0
        %326 = vst [vmem:[#allocation2 + $0xa8] sm:$0xff] 0.0
        %327 = vst [vmem:[#allocation2 + $0xb0] sm:$0xff] 0.0
        %328 = vst [vmem:[#allocation2 + $0xb8] sm:$0xff] 0.0
        %329 = vst [vmem:[#allocation2 + $0xc0] sm:$0xff] 0.0
        %330 = vst [vmem:[#allocation2 + $0xc8] sm:$0xff] 0.0
        %331 = vst [vmem:[#allocation2 + $0xd0] sm:$0xff] 0.0
        %332 = vst [vmem:[#allocation2 + $0xd8] sm:$0xff] 0.0
        %333 = vst [vmem:[#allocation2 + $0xe0] sm:$0xff] 0.0
        %334 = vst [vmem:[#allocation2 + $0xe8] sm:$0xff] 0.0
        %335 = vst [vmem:[#allocation2 + $0xf0] sm:$0xff] 0.0
        %336 = vst [vmem:[#allocation2 + $0xf8] sm:$0xff] 0.0
      $region40: #{resnet_block_forward.6} parent=35 // pred_fallthru
        _
      %v337 = vld [vmem:[#allocation2] sm:$0xff]
      %v338 = vld [vmem:[#allocation2 + $0x8] sm:$0xff]
      %v339 = vld [vmem:[#allocation2 + $0x10] sm:$0xff]
      %v340 = vld [vmem:[#allocation2 + $0x18] sm:$0xff]
      %v341 = vld [vmem:[#allocation2 + $0x20] sm:$0xff]
      %v342 = vld [vmem:[#allocation2 + $0x28] sm:$0xff]
      %v343 = vld [vmem:[#allocation2 + $0x30] sm:$0xff]
      %v344 = vld [vmem:[#allocation2 + $0x38] sm:$0xff]
      %v345 = vld [vmem:[#allocation2 + $0x40] sm:$0xff]
      %v346 = vld [vmem:[#allocation2 + $0x48] sm:$0xff]
      %v347 = vld [vmem:[#allocation2 + $0x50] sm:$0xff]
      %v348 = vld [vmem:[#allocation2 + $0x58] sm:$0xff]
      %v349 = vld [vmem:[#allocation2 + $0x60] sm:$0xff]
      %v350 = vld [vmem:[#allocation2 + $0x68] sm:$0xff]
      %v351 = vld [vmem:[#allocation2 + $0x70] sm:$0xff]
      %v352 = vld [vmem:[#allocation2 + $0x78] sm:$0xff]
      %v353 = vld [vmem:[#allocation2 + $0x80] sm:$0xff]
      %v354 = vld [vmem:[#allocation2 + $0x88] sm:$0xff]
      %v355 = vld [vmem:[#allocation2 + $0x90] sm:$0xff]
      %v356 = vld [vmem:[#allocation2 + $0x98] sm:$0xff]
      %v357 = vld [vmem:[#allocation2 + $0xa0] sm:$0xff]
      %v358 = vld [vmem:[#allocation2 + $0xa8] sm:$0xff]
      %v359 = vld [vmem:[#allocation2 + $0xb0] sm:$0xff]
      %v360 = vld [vmem:[#allocation2 + $0xb8] sm:$0xff]
      %v361 = vld [vmem:[#allocation2 + $0xc0] sm:$0xff]
      %v362 = vld [vmem:[#allocation2 + $0xc8] sm:$0xff]
      %v363 = vld [vmem:[#allocation2 + $0xd0] sm:$0xff]
      %v364 = vld [vmem:[#allocation2 + $0xd8] sm:$0xff]
      %v365 = vld [vmem:[#allocation2 + $0xe0] sm:$0xff]
      %v366 = vld [vmem:[#allocation2 + $0xe8] sm:$0xff]
      %v367 = vld [vmem:[#allocation2 + $0xf0] sm:$0xff]
      %v368 = vld [vmem:[#allocation2 + $0xf8] sm:$0xff]
      %v369 = vld [vmem:[%s274] sm:$0xf]
      %v370 = vld [vmem:[%s274 + $0x4] sm:$0xf]
      %v371 = vld [vmem:[%s274 + $0x8] sm:$0xf]
      %v372 = vld [vmem:[%s274 + $0xc] sm:$0xf]
      %v373 = vld [vmem:[%s274 + $0x10] sm:$0xf]
      %v374 = vld [vmem:[%s274 + $0x14] sm:$0xf]
      %v375 = vld [vmem:[%s274 + $0x18] sm:$0xf]
      %v376 = vld [vmem:[%s274 + $0x1c] sm:$0xf]
      %v377 = vld [vmem:[%s274 + $0x20] sm:$0xf]
      %v378 = vld [vmem:[%s274 + $0x24] sm:$0xf]
      %v379 = vld [vmem:[%s274 + $0x28] sm:$0xf]
      %v380 = vld [vmem:[%s274 + $0x2c] sm:$0xf]
      %v381 = vld [vmem:[%s274 + $0x30] sm:$0xf]
      %v382 = vld [vmem:[%s274 + $0x34] sm:$0xf]
      %v383 = vld [vmem:[%s274 + $0x38] sm:$0xf]
      %v384 = vld [vmem:[%s274 + $0x3c] sm:$0xf]
      %v385 = vld [vmem:[%s274 + $0x40] sm:$0xf]
      %v386 = vld [vmem:[%s274 + $0x44] sm:$0xf]
      %v387 = vld [vmem:[%s274 + $0x48] sm:$0xf]
      %v388 = vld [vmem:[%s274 + $0x4c] sm:$0xf]
      %v389 = vld [vmem:[%s274 + $0x50] sm:$0xf]
      %v390 = vld [vmem:[%s274 + $0x54] sm:$0xf]
      %v391 = vld [vmem:[%s274 + $0x58] sm:$0xf]
      %v392 = vld [vmem:[%s274 + $0x5c] sm:$0xf]
      %v393 = vld [vmem:[%s274 + $0x60] sm:$0xf]
      %v394 = vld [vmem:[%s274 + $0x64] sm:$0xf]
      %v395 = vld [vmem:[%s274 + $0x68] sm:$0xf]
      %v396 = vld [vmem:[%s274 + $0x6c] sm:$0xf]
      %v397 = vld [vmem:[%s274 + $0x70] sm:$0xf]
      %v398 = vld [vmem:[%s274 + $0x74] sm:$0xf]
      %v399 = vld [vmem:[%s274 + $0x78] sm:$0xf]
      %v400 = vld [vmem:[%s274 + $0x7c] sm:$0xf]
      %v401 = vld [vmem:[%s283] sm:$0xf]
      %v402 = vld [vmem:[%s283 + $0x4] sm:$0xf]
      %v403 = vld [vmem:[%s283 + $0x8] sm:$0xf]
      %v404 = vld [vmem:[%s283 + $0xc] sm:$0xf]
      %v405 = vld [vmem:[%s283 + $0x10] sm:$0xf]
      %v406 = vld [vmem:[%s283 + $0x14] sm:$0xf]
      %v407 = vld [vmem:[%s283 + $0x18] sm:$0xf]
      %v408 = vld [vmem:[%s283 + $0x1c] sm:$0xf]
      %v409 = vld [vmem:[%s283 + $0x20] sm:$0xf]
      %v410 = vld [vmem:[%s283 + $0x24] sm:$0xf]
      %v411 = vld [vmem:[%s283 + $0x28] sm:$0xf]
      %v412 = vld [vmem:[%s283 + $0x2c] sm:$0xf]
      %v413 = vld [vmem:[%s283 + $0x30] sm:$0xf]
      %v414 = vld [vmem:[%s283 + $0x34] sm:$0xf]
      %v415 = vld [vmem:[%s283 + $0x38] sm:$0xf]
      %v416 = vld [vmem:[%s283 + $0x3c] sm:$0xf]
      %v449 = vunpack.c.l.b16 %v369
      %v450 = vunpack.c.l.b16 %v370
      %v451 = vunpack.c.l.b16 %v371
      %v452 = vunpack.c.l.b16 %v372
      %v453 = vunpack.c.l.b16 %v373
      %v454 = vunpack.c.l.b16 %v374
      %v455 = vunpack.c.l.b16 %v375
      %v456 = vunpack.c.l.b16 %v376
      %v457 = vunpack.c.l.b16 %v377
      %v458 = vunpack.c.l.b16 %v378
      %v459 = vunpack.c.l.b16 %v379
      %v460 = vunpack.c.l.b16 %v380
      %v461 = vunpack.c.l.b16 %v381
      %v462 = vunpack.c.l.b16 %v382
      %v463 = vunpack.c.l.b16 %v383
      %v464 = vunpack.c.l.b16 %v384
      %v465 = vunpack.c.l.b16 %v385
      %v466 = vunpack.c.l.b16 %v386
      %v467 = vunpack.c.l.b16 %v387
      %v468 = vunpack.c.l.b16 %v388
      %v469 = vunpack.c.l.b16 %v389
      %v470 = vunpack.c.l.b16 %v390
      %v471 = vunpack.c.l.b16 %v391
      %v472 = vunpack.c.l.b16 %v392
      %v473 = vunpack.c.l.b16 %v393
      %v474 = vunpack.c.l.b16 %v394
      %v475 = vunpack.c.l.b16 %v395
      %v476 = vunpack.c.l.b16 %v396
      %v477 = vunpack.c.l.b16 %v397
      %v478 = vunpack.c.l.b16 %v398
      %v479 = vunpack.c.l.b16 %v399
      %v480 = vunpack.c.l.b16 %v400
      %v481 = vpack.c.b16 %v450, %v449
      %v482 = vpack.c.b16 %v452, %v451
      %v483 = vpack.c.b16 %v454, %v453
      %v484 = vpack.c.b16 %v456, %v455
      %v485 = vpack.c.b16 %v458, %v457
      %v486 = vpack.c.b16 %v460, %v459
      %v487 = vpack.c.b16 %v462, %v461
      %v488 = vpack.c.b16 %v464, %v463
      %v489 = vpack.c.b16 %v466, %v465
      %v490 = vpack.c.b16 %v468, %v467
      %v491 = vpack.c.b16 %v470, %v469
      %v492 = vpack.c.b16 %v472, %v471
      %v493 = vpack.c.b16 %v474, %v473
      %v494 = vpack.c.b16 %v476, %v475
      %v495 = vpack.c.b16 %v478, %v477
      %v496 = vpack.c.b16 %v480, %v479
      %v529 = vunpack.c.l.b16 %v401
      %v530 = vunpack.c.l.b16 %v402
      %v531 = vunpack.c.l.b16 %v403
      %v532 = vunpack.c.l.b16 %v404
      %v533 = vunpack.c.l.b16 %v405
      %v534 = vunpack.c.l.b16 %v406
      %v535 = vunpack.c.l.b16 %v407
      %v536 = vunpack.c.l.b16 %v408
      %v537 = vunpack.c.l.b16 %v409
      %v538 = vunpack.c.l.b16 %v410
      %v539 = vunpack.c.l.b16 %v411
      %v540 = vunpack.c.l.b16 %v412
      %v541 = vunpack.c.l.b16 %v413
      %v542 = vunpack.c.l.b16 %v414
      %v543 = vunpack.c.l.b16 %v415
      %v544 = vunpack.c.l.b16 %v416
      %v545 = vpack.c.b16 %v530, %v529
      %v546 = vpack.c.b16 %v532, %v531
      %v547 = vpack.c.b16 %v534, %v533
      %v548 = vpack.c.b16 %v536, %v535
      %v549 = vpack.c.b16 %v538, %v537
      %v550 = vpack.c.b16 %v540, %v539
      %v551 = vpack.c.b16 %v542, %v541
      %v552 = vpack.c.b16 %v544, %v543
      %561 = vmatprep.subr.bf16.mxu0 0
      %562 = vmatpush1.bf16.msra.mxu0 %v545
      %563 = vmatprep.subr.bf16.mxu0 0
      %564 = vmatpush1.bf16.msra.mxu0 %v546
      %565 = vmatprep.subr.bf16.mxu0 0
      %566 = vmatpush1.bf16.msra.mxu0 %v547
      %567 = vmatprep.subr.bf16.mxu0 0
      %568 = vmatpush1.bf16.msra.mxu0 %v548
      %569 = vmatprep.subr.bf16.mxu0 0
      %570 = vmatpush1.bf16.msra.mxu0 %v549
      %571 = vmatprep.subr.bf16.mxu0 0
      %572 = vmatpush1.bf16.msra.mxu0 %v550
      %573 = vmatprep.subr.bf16.mxu0 0
      %574 = vmatpush1.bf16.msra.mxu0 %v551
      %575 = vmatprep.subr.bf16.mxu0 0
      %576 = vmatpush1.bf16.msra.mxu0 %v552
      %577 = vmatprep.subr.bf16.mxu0 0
      %578 = vmatpush1.bf16.msra.mxu0 0
      %579 = vmatprep.subr.bf16.mxu0 0
      %580 = vmatpush1.bf16.msra.mxu0 0
      %581 = vmatprep.subr.bf16.mxu0 0
      %582 = vmatpush1.bf16.msra.mxu0 0
      %583 = vmatprep.subr.bf16.mxu0 0
      %584 = vmatpush1.bf16.msra.mxu0 0
      %585 = vmatprep.subr.bf16.mxu0 0
      %586 = vmatpush1.bf16.msra.mxu0 0
      %587 = vmatprep.subr.bf16.mxu0 0
      %588 = vmatpush1.bf16.msra.mxu0 0
      %589 = vmatprep.subr.bf16.mxu0 0
      %590 = vmatpush1.bf16.msra.mxu0 0
      %591 = vmatprep.subr.bf16.mxu0 0
      %592 = vmatpush1.bf16.msra.mxu0 0
      %593 = vmatprep.mubr.bf16.mxu0 0
      %594 = vmatmul.mubr.bf16.gmra.mrb[0].mxu0 %v481
      %v595 = vpop.f32.mrb[0].mxu0
      %v596 = vadd.f32 0.0, %v595
      %v597 = vpop.f32.mrb[0].mxu0
      %v598 = vpop.f32.mrb[0].mxu0
      %v599 = vadd.f32 0.0, %v598
      %v600 = vpop.f32.mrb[0].mxu0
      %601 = vmatprep.mubr.bf16.mxu0 0
      %602 = vmatmul.mubr.bf16.gmra.mrb[0].mxu0 %v482
      %v603 = vpop.f32.mrb[0].mxu0
      %v604 = vadd.f32 0.0, %v603
      %v605 = vpop.f32.mrb[0].mxu0
      %v606 = vpop.f32.mrb[0].mxu0
      %v607 = vadd.f32 0.0, %v606
      %v608 = vpop.f32.mrb[0].mxu0
      %609 = vmatprep.mubr.bf16.mxu0 0
      %610 = vmatmul.mubr.bf16.gmra.mrb[0].mxu0 %v483
      %v611 = vpop.f32.mrb[0].mxu0
      %v612 = vadd.f32 0.0, %v611
      %v613 = vpop.f32.mrb[0].mxu0
      %v614 = vpop.f32.mrb[0].mxu0
      %v615 = vadd.f32 0.0, %v614
      %v616 = vpop.f32.mrb[0].mxu0
      %617 = vmatprep.mubr.bf16.mxu0 0
      %618 = vmatmul.mubr.bf16.gmra.mrb[0].mxu0 %v484
      %v619 = vpop.f32.mrb[0].mxu0
      %v620 = vadd.f32 0.0, %v619
      %v621 = vpop.f32.mrb[0].mxu0
      %v622 = vpop.f32.mrb[0].mxu0
      %v623 = vadd.f32 0.0, %v622
      %v624 = vpop.f32.mrb[0].mxu0
      %625 = vmatprep.mubr.bf16.mxu0 0
      %626 = vmatmul.mubr.bf16.gmra.mrb[0].mxu0 %v485
      %v627 = vpop.f32.mrb[0].mxu0
      %v628 = vadd.f32 0.0, %v627
      %v629 = vpop.f32.mrb[0].mxu0
      %v630 = vpop.f32.mrb[0].mxu0
      %v631 = vadd.f32 0.0, %v630
      %v632 = vpop.f32.mrb[0].mxu0
      %633 = vmatprep.mubr.bf16.mxu0 0
      %634 = vmatmul.mubr.bf16.gmra.mrb[0].mxu0 %v486
      %v635 = vpop.f32.mrb[0].mxu0
      %v636 = vadd.f32 0.0, %v635
      %v637 = vpop.f32.mrb[0].mxu0
      %v638 = vpop.f32.mrb[0].mxu0
      %v639 = vadd.f32 0.0, %v638
      %v640 = vpop.f32.mrb[0].mxu0
      %641 = vmatprep.mubr.bf16.mxu0 0
      %642 = vmatmul.mubr.bf16.gmra.mrb[0].mxu0 %v487
      %v643 = vpop.f32.mrb[0].mxu0
      %v644 = vadd.f32 0.0, %v643
      %v645 = vpop.f32.mrb[0].mxu0
      %v646 = vpop.f32.mrb[0].mxu0
      %v647 = vadd.f32 0.0, %v646
      %v648 = vpop.f32.mrb[0].mxu0
      %649 = vmatprep.mubr.bf16.mxu0 0
      %650 = vmatmul.mubr.bf16.gmra.mrb[0].mxu0 %v488
      %v651 = vpop.f32.mrb[0].mxu0
      %v652 = vadd.f32 0.0, %v651
      %v653 = vpop.f32.mrb[0].mxu0
      %v654 = vpop.f32.mrb[0].mxu0
      %v655 = vadd.f32 0.0, %v654
      %v656 = vpop.f32.mrb[0].mxu0
      %657 = vmatprep.mubr.bf16.mxu0 0
      %658 = vmatmul.mubr.bf16.gmra.mrb[0].mxu0 %v489
      %v659 = vpop.f32.mrb[0].mxu0
      %v660 = vadd.f32 0.0, %v659
      %v661 = vpop.f32.mrb[0].mxu0
      %v662 = vpop.f32.mrb[0].mxu0
      %v663 = vadd.f32 0.0, %v662
      %v664 = vpop.f32.mrb[0].mxu0
      %665 = vmatprep.mubr.bf16.mxu0 0
      %666 = vmatmul.mubr.bf16.gmra.mrb[0].mxu0 %v490
      %v667 = vpop.f32.mrb[0].mxu0
      %v668 = vadd.f32 0.0, %v667
      %v669 = vpop.f32.mrb[0].mxu0
      %v670 = vpop.f32.mrb[0].mxu0
      %v671 = vadd.f32 0.0, %v670
      %v672 = vpop.f32.mrb[0].mxu0
      %673 = vmatprep.mubr.bf16.mxu0 0
      %674 = vmatmul.mubr.bf16.gmra.mrb[0].mxu0 %v491
      %v675 = vpop.f32.mrb[0].mxu0
      %v676 = vadd.f32 0.0, %v675
      %v677 = vpop.f32.mrb[0].mxu0
      %v678 = vpop.f32.mrb[0].mxu0
      %v679 = vadd.f32 0.0, %v678
      %v680 = vpop.f32.mrb[0].mxu0
      %681 = vmatprep.mubr.bf16.mxu0 0
      %682 = vmatmul.mubr.bf16.gmra.mrb[0].mxu0 %v492
      %v683 = vpop.f32.mrb[0].mxu0
      %v684 = vadd.f32 0.0, %v683
      %v685 = vpop.f32.mrb[0].mxu0
      %v686 = vpop.f32.mrb[0].mxu0
      %v687 = vadd.f32 0.0, %v686
      %v688 = vpop.f32.mrb[0].mxu0
      %689 = vmatprep.mubr.bf16.mxu0 0
      %690 = vmatmul.mubr.bf16.gmra.mrb[0].mxu0 %v493
      %v691 = vpop.f32.mrb[0].mxu0
      %v692 = vadd.f32 0.0, %v691
      %v693 = vpop.f32.mrb[0].mxu0
      %v694 = vpop.f32.mrb[0].mxu0
      %v695 = vadd.f32 0.0, %v694
      %v696 = vpop.f32.mrb[0].mxu0
      %697 = vmatprep.mubr.bf16.mxu0 0
      %698 = vmatmul.mubr.bf16.gmra.mrb[0].mxu0 %v494
      %v699 = vpop.f32.mrb[0].mxu0
      %v700 = vadd.f32 0.0, %v699
      %v701 = vpop.f32.mrb[0].mxu0
      %v702 = vpop.f32.mrb[0].mxu0
      %v703 = vadd.f32 0.0, %v702
      %v704 = vpop.f32.mrb[0].mxu0
      %705 = vmatprep.mubr.bf16.mxu0 0
      %706 = vmatmul.mubr.bf16.gmra.mrb[0].mxu0 %v495
      %v707 = vpop.f32.mrb[0].mxu0
      %v708 = vadd.f32 0.0, %v707
      %v709 = vpop.f32.mrb[0].mxu0
      %v710 = vpop.f32.mrb[0].mxu0
      %v711 = vadd.f32 0.0, %v710
      %v712 = vpop.f32.mrb[0].mxu0
      %713 = vmatprep.mubr.bf16.mxu0 0
      %714 = vmatmul.mubr.bf16.gmra.mrb[0].mxu0 %v496
      %v715 = vpop.f32.mrb[0].mxu0
      %v716 = vadd.f32 0.0, %v715
      %v717 = vpop.f32.mrb[0].mxu0
      %v718 = vpop.f32.mrb[0].mxu0
      %v719 = vadd.f32 0.0, %v718
      %v720 = vpop.f32.mrb[0].mxu0
      %721 = vdwg.mxu0
      %v722 = vadd.f32 %v337, %v596
      %v723 = vadd.f32 %v338, %v599
      %v724 = vadd.f32 %v339, %v604
      %v725 = vadd.f32 %v340, %v607
      %v726 = vadd.f32 %v341, %v612
      %v727 = vadd.f32 %v342, %v615
      %v728 = vadd.f32 %v343, %v620
      %v729 = vadd.f32 %v344, %v623
      %v730 = vadd.f32 %v345, %v628
      %v731 = vadd.f32 %v346, %v631
      %v732 = vadd.f32 %v347, %v636
      %v733 = vadd.f32 %v348, %v639
      %v734 = vadd.f32 %v349, %v644
      %v735 = vadd.f32 %v350, %v647
      %v736 = vadd.f32 %v351, %v652
      %v737 = vadd.f32 %v352, %v655
      %v738 = vadd.f32 %v353, %v660
      %v739 = vadd.f32 %v354, %v663
      %v740 = vadd.f32 %v355, %v668
      %v741 = vadd.f32 %v356, %v671
      %v742 = vadd.f32 %v357, %v676
      %v743 = vadd.f32 %v358, %v679
      %v744 = vadd.f32 %v359, %v684
      %v745 = vadd.f32 %v360, %v687
      %v746 = vadd.f32 %v361, %v692
      %v747 = vadd.f32 %v362, %v695
      %v748 = vadd.f32 %v363, %v700
      %v749 = vadd.f32 %v364, %v703
      %v750 = vadd.f32 %v365, %v708
      %v751 = vadd.f32 %v366, %v711
      %v752 = vadd.f32 %v367, %v716
      %v753 = vadd.f32 %v368, %v719
      %754 = vst [vmem:[#allocation2] sm:$0xff] %v722
      %755 = vst [vmem:[#allocation2 + $0x8] sm:$0xff] %v723
      %756 = vst [vmem:[#allocation2 + $0x10] sm:$0xff] %v724
      %757 = vst [vmem:[#allocation2 + $0x18] sm:$0xff] %v725
      %758 = vst [vmem:[#allocation2 + $0x20] sm:$0xff] %v726
      %759 = vst [vmem:[#allocation2 + $0x28] sm:$0xff] %v727
      %760 = vst [vmem:[#allocation2 + $0x30] sm:$0xff] %v728
      %761 = vst [vmem:[#allocation2 + $0x38] sm:$0xff] %v729
      %762 = vst [vmem:[#allocation2 + $0x40] sm:$0xff] %v730
      %763 = vst [vmem:[#allocation2 + $0x48] sm:$0xff] %v731
      %764 = vst [vmem:[#allocation2 + $0x50] sm:$0xff] %v732
      %765 = vst [vmem:[#allocation2 + $0x58] sm:$0xff] %v733
      %766 = vst [vmem:[#allocation2 + $0x60] sm:$0xff] %v734
      %767 = vst [vmem:[#allocation2 + $0x68] sm:$0xff] %v735
      %768 = vst [vmem:[#allocation2 + $0x70] sm:$0xff] %v736
      %769 = vst [vmem:[#allocation2 + $0x78] sm:$0xff] %v737
      %770 = vst [vmem:[#allocation2 + $0x80] sm:$0xff] %v738
      %771 = vst [vmem:[#allocation2 + $0x88] sm:$0xff] %v739
      %772 = vst [vmem:[#allocation2 + $0x90] sm:$0xff] %v740
      %773 = vst [vmem:[#allocation2 + $0x98] sm:$0xff] %v741
      %774 = vst [vmem:[#allocation2 + $0xa0] sm:$0xff] %v742
      %775 = vst [vmem:[#allocation2 + $0xa8] sm:$0xff] %v743
      %776 = vst [vmem:[#allocation2 + $0xb0] sm:$0xff] %v744
      %777 = vst [vmem:[#allocation2 + $0xb8] sm:$0xff] %v745
      %778 = vst [vmem:[#allocation2 + $0xc0] sm:$0xff] %v746
      %779 = vst [vmem:[#allocation2 + $0xc8] sm:$0xff] %v747
      %780 = vst [vmem:[#allocation2 + $0xd0] sm:$0xff] %v748
      %781 = vst [vmem:[#allocation2 + $0xd8] sm:$0xff] %v749
      %782 = vst [vmem:[#allocation2 + $0xe0] sm:$0xff] %v750
      %783 = vst [vmem:[#allocation2 + $0xe8] sm:$0xff] %v751
      %784 = vst [vmem:[#allocation2 + $0xf0] sm:$0xff] %v752
      %785 = vst [vmem:[#allocation2 + $0xf8] sm:$0xff] %v753
      // Predicated region
      $region41: #{resnet_block_forward.6} parent=35 // pred_check
        %p786 = pneg %p301
      $region42: #{resnet_block_forward.6} parent=35 // pred_check_branch
        %788 = sbr.rel (%p786) target = $region44
      $region43: #{resnet_block_forward.6} parent=35 // pred_region
        %v789 = vld [vmem:[#allocation2] sm:$0xff]
        %v790 = vld [vmem:[#allocation2 + $0x8] sm:$0xff]
        %v791 = vld [vmem:[#allocation2 + $0x10] sm:$0xff]
        %v792 = vld [vmem:[#allocation2 + $0x18] sm:$0xff]
        %v793 = vld [vmem:[#allocation2 + $0x20] sm:$0xff]
        %v794 = vld [vmem:[#allocation2 + $0x28] sm:$0xff]
        %v795 = vld [vmem:[#allocation2 + $0x30] sm:$0xff]
        %v796 = vld [vmem:[#allocation2 + $0x38] sm:$0xff]
        %v797 = vld [vmem:[#allocation2 + $0x40] sm:$0xff]
        %v798 = vld [vmem:[#allocation2 + $0x48] sm:$0xff]
        %v799 = vld [vmem:[#allocation2 + $0x50] sm:$0xff]
        %v800 = vld [vmem:[#allocation2 + $0x58] sm:$0xff]
        %v801 = vld [vmem:[#allocation2 + $0x60] sm:$0xff]
        %v802 = vld [vmem:[#allocation2 + $0x68] sm:$0xff]
        %v803 = vld [vmem:[#allocation2 + $0x70] sm:$0xff]
        %v804 = vld [vmem:[#allocation2 + $0x78] sm:$0xff]
        %v805 = vld [vmem:[#allocation2 + $0x80] sm:$0xff]
        %v806 = vld [vmem:[#allocation2 + $0x88] sm:$0xff]
        %v807 = vld [vmem:[#allocation2 + $0x90] sm:$0xff]
        %v808 = vld [vmem:[#allocation2 + $0x98] sm:$0xff]
        %v809 = vld [vmem:[#allocation2 + $0xa0] sm:$0xff]
        %v810 = vld [vmem:[#allocation2 + $0xa8] sm:$0xff]
        %v811 = vld [vmem:[#allocation2 + $0xb0] sm:$0xff]
        %v812 = vld [vmem:[#allocation2 + $0xb8] sm:$0xff]
        %v813 = vld [vmem:[#allocation2 + $0xc0] sm:$0xff]
        %v814 = vld [vmem:[#allocation2 + $0xc8] sm:$0xff]
        %v815 = vld [vmem:[#allocation2 + $0xd0] sm:$0xff]
        %v816 = vld [vmem:[#allocation2 + $0xd8] sm:$0xff]
        %v817 = vld [vmem:[#allocation2 + $0xe0] sm:$0xff]
        %v818 = vld [vmem:[#allocation2 + $0xe8] sm:$0xff]
        %v819 = vld [vmem:[#allocation2 + $0xf0] sm:$0xff]
        %v820 = vld [vmem:[#allocation2 + $0xf8] sm:$0xff]
        %v821 = vld [vmem:[%s287] sm:$0x1]
        %v823 = vlaneseq
        %v824 = vshrl.u32 %v823, 7
        %v825 = vsub.s32 0, %v824
        %v826 = vrot.slane %v821, %v825
        %v828 = vmul.f32 %v789, %v826
        %v829 = vmul.f32 %v790, %v826
        %v830 = vmul.f32 %v791, %v826
        %v831 = vmul.f32 %v792, %v826
        %v832 = vmul.f32 %v793, %v826
        %v833 = vmul.f32 %v794, %v826
        %v834 = vmul.f32 %v795, %v826
        %v835 = vmul.f32 %v796, %v826
        %v836 = vmul.f32 %v797, %v826
        %v837 = vmul.f32 %v798, %v826
        %v838 = vmul.f32 %v799, %v826
        %v839 = vmul.f32 %v800, %v826
        %v840 = vmul.f32 %v801, %v826
        %v841 = vmul.f32 %v802, %v826
        %v842 = vmul.f32 %v803, %v826
        %v843 = vmul.f32 %v804, %v826
        %v844 = vmul.f32 %v805, %v826
        %v845 = vmul.f32 %v806, %v826
        %v846 = vmul.f32 %v807, %v826
        %v847 = vmul.f32 %v808, %v826
        %v848 = vmul.f32 %v809, %v826
        %v849 = vmul.f32 %v810, %v826
        %v850 = vmul.f32 %v811, %v826
        %v851 = vmul.f32 %v812, %v826
        %v852 = vmul.f32 %v813, %v826
        %v853 = vmul.f32 %v814, %v826
        %v854 = vmul.f32 %v815, %v826
        %v855 = vmul.f32 %v816, %v826
        %v856 = vmul.f32 %v817, %v826
        %v857 = vmul.f32 %v818, %v826
        %v858 = vmul.f32 %v819, %v826
        %v859 = vmul.f32 %v820, %v826
        %v860 = vld [vmem:[%s290] sm:$0x1]
        %v862 = vlaneseq
        %v863 = vshrl.u32 %v862, 7
        %v864 = vsub.s32 0, %v863
        %v865 = vrot.slane %v860, %v864
        %v867 = vadd.f32 %v828, %v865
        %v868 = vadd.f32 %v829, %v865
        %v869 = vadd.f32 %v830, %v865
        %v870 = vadd.f32 %v831, %v865
        %v871 = vadd.f32 %v832, %v865
        %v872 = vadd.f32 %v833, %v865
        %v873 = vadd.f32 %v834, %v865
        %v874 = vadd.f32 %v835, %v865
        %v875 = vadd.f32 %v836, %v865
        %v876 = vadd.f32 %v837, %v865
        %v877 = vadd.f32 %v838, %v865
        %v878 = vadd.f32 %v839, %v865
        %v879 = vadd.f32 %v840, %v865
        %v880 = vadd.f32 %v841, %v865
        %v881 = vadd.f32 %v842, %v865
        %v882 = vadd.f32 %v843, %v865
        %v883 = vadd.f32 %v844, %v865
        %v884 = vadd.f32 %v845, %v865
        %v885 = vadd.f32 %v846, %v865
        %v886 = vadd.f32 %v847, %v865
        %v887 = vadd.f32 %v848, %v865
        %v888 = vadd.f32 %v849, %v865
        %v889 = vadd.f32 %v850, %v865
        %v890 = vadd.f32 %v851, %v865
        %v891 = vadd.f32 %v852, %v865
        %v892 = vadd.f32 %v853, %v865
        %v893 = vadd.f32 %v854, %v865
        %v894 = vadd.f32 %v855, %v865
        %v895 = vadd.f32 %v856, %v865
        %v896 = vadd.f32 %v857, %v865
        %v897 = vadd.f32 %v858, %v865
        %v898 = vadd.f32 %v859, %v865
        %899 = vst [vmem:[%s298] sm:$0xff] %v867
        %900 = vst [vmem:[%s298 + $0x8] sm:$0xff] %v868
        %901 = vst [vmem:[%s298 + $0x10] sm:$0xff] %v869
        %902 = vst [vmem:[%s298 + $0x18] sm:$0xff] %v870
        %903 = vst [vmem:[%s298 + $0x20] sm:$0xff] %v871
        %904 = vst [vmem:[%s298 + $0x28] sm:$0xff] %v872
        %905 = vst [vmem:[%s298 + $0x30] sm:$0xff] %v873
        %906 = vst [vmem:[%s298 + $0x38] sm:$0xff] %v874
        %907 = vst [vmem:[%s298 + $0x40] sm:$0xff] %v875
        %908 = vst [vmem:[%s298 + $0x48] sm:$0xff] %v876
        %909 = vst [vmem:[%s298 + $0x50] sm:$0xff] %v877
        %910 = vst [vmem:[%s298 + $0x58] sm:$0xff] %v878
        %911 = vst [vmem:[%s298 + $0x60] sm:$0xff] %v879
        %912 = vst [vmem:[%s298 + $0x68] sm:$0xff] %v880
        %913 = vst [vmem:[%s298 + $0x70] sm:$0xff] %v881
        %914 = vst [vmem:[%s298 + $0x78] sm:$0xff] %v882
        %915 = vst [vmem:[%s298 + $0x80] sm:$0xff] %v883
        %916 = vst [vmem:[%s298 + $0x88] sm:$0xff] %v884
        %917 = vst [vmem:[%s298 + $0x90] sm:$0xff] %v885
        %918 = vst [vmem:[%s298 + $0x98] sm:$0xff] %v886
        %919 = vst [vmem:[%s298 + $0xa0] sm:$0xff] %v887
        %920 = vst [vmem:[%s298 + $0xa8] sm:$0xff] %v888
        %921 = vst [vmem:[%s298 + $0xb0] sm:$0xff] %v889
        %922 = vst [vmem:[%s298 + $0xb8] sm:$0xff] %v890
        %923 = vst [vmem:[%s298 + $0xc0] sm:$0xff] %v891
        %924 = vst [vmem:[%s298 + $0xc8] sm:$0xff] %v892
        %925 = vst [vmem:[%s298 + $0xd0] sm:$0xff] %v893
        %926 = vst [vmem:[%s298 + $0xd8] sm:$0xff] %v894
        %927 = vst [vmem:[%s298 + $0xe0] sm:$0xff] %v895
        %928 = vst [vmem:[%s298 + $0xe8] sm:$0xff] %v896
        %929 = vst [vmem:[%s298 + $0xf0] sm:$0xff] %v897
        %930 = vst [vmem:[%s298 + $0xf8] sm:$0xff] %v898
      $region44: #{resnet_block_forward.6} parent=35 // pred_fallthru
        _
      %s931 = smul.u32 32, %s20
      %p932 = scmp.lt.s32.totalorder %s931, 63
      %s933 = scalar_select %p932, %s931, 63
      %p934 = scmp.lt.s32.totalorder %s21, 0
      %s935 = scalar_select %p934, %s21, 0
      %s936 = sadd.s32 %s935, %s933
      %s937 = smul.addr %s936, 8
      %s938 = scalar_lea.vmem %s4, %s937
      // Predicated region
      $region45: #{resnet_block_forward.6} parent=35 // pred_check
        %p939 = pneg %p162
      $region46: #{resnet_block_forward.6} parent=35 // pred_check_branch
        %941 = sbr.rel (%p939) target = $region48
      $region47: #{resnet_block_forward.6} parent=35 // pred_region
        %s942 = smul.u32 32, %s20
      $region48: #{resnet_block_forward.6} parent=35 // pred_fallthru
        _
    $region36: #{resnet_block_forward.6} parent=5 // pred_fallthru
      _
    %p943 = scmp.le.s32.totalorder 2, %s10
    // Predicated region
    $region49: #{resnet_block_forward.6} parent=5 // pred_check
      %p944 = pneg %p943
    $region50: #{resnet_block_forward.6} parent=5 // pred_check_branch
      %946 = sbr.rel (%p944) target = $region52
    $region51: #{resnet_block_forward.6} parent=5 // pred_region
      %s947 = ssub.s32 %s10, 2
      // Predicated region
      $region53: #{resnet_block_forward.6} parent=51 // pred_check
        %p948 = pneg %p168
      $region54: #{resnet_block_forward.6} parent=51 // pred_check_branch
        %950 = sbr.rel (%p948) target = $region56
      $region55: #{resnet_block_forward.6} parent=51 // pred_region
        %s951 = smul.u32 32, %s23
        %p952 = scmp.lt.s32.totalorder %s951, 63
        %s953 = scalar_select %p952, %s951, 63
        %p954 = scmp.lt.s32.totalorder %s24, 0
        %s955 = scalar_select %p954, %s24, 0
        %s956 = sadd.s32 %s955, %s953
        %s957 = smul.addr %s956, 8
        %s958 = scalar_lea.vmem %s4, %s957
      $region56: #{resnet_block_forward.6} parent=51 // pred_fallthru
        _
    $region52: #{resnet_block_forward.6} parent=5 // pred_fallthru
      _
  $region6: #{resnet_block_forward.6} parent=0 // loop_footer
    %s14 = sadd.s32 1, %s10
  $region7: #{resnet_block_forward.6} parent=0 // loop_footer_branch
    %9 = sbr.rel target = $region3
  $region8: #{resnet_block_forward.6} parent=0 // loop_exit
    _

// kernel: resnet_block_forward.5
$region0: #{resnet_block_forward.5}
  #allocation0 [shape = 'u32[]', space=smem, size = 0x4, offset = 0x4, fixed_abs, tag = 'smem constant byte address 0x4 - core index']
  #allocation1 [shape = 'u32[144,128]{1,0:T(1,128)}', space=vmem, size = 0x12000, scoped, tag = 'internal scratch']
  #allocation2 [shape = 'f32[64,128]{1,0:T(8,128)}', space=vmem, size = 0x8000, scoped, tag = 'scratch operand']
  %s0 = inlined_call_operand.vmem [shape: bf16[128,2048], index: 0, kind: input, shape index: {}]
  %s1 = inlined_call_operand.vmem [shape: bf16[2048,128], index: 1, kind: input, shape index: {}]
  %s2 = inlined_call_operand.vmem [shape: f32[1,128], index: 2, kind: input, shape index: {}]
  %s3 = inlined_call_operand.vmem [shape: f32[1,128], index: 3, kind: input, shape index: {}]
  %s4 = inlined_call_operand.vmem [shape: bf16[128,128], index: 4, kind: output, shape index: {}]
  %s5 = sld [smem:[#allocation0]]
  $region80: #{resnet_block_forward.5} parent=0
    _
  %s7 = ssub.s32 1, %s5
  %s8 = scalar_select 0, %s7, %s5
  $region1: #{resnet_block_forward.5} parent=0
    #allocation3 [shape = 'u8[262144]{0}', space=vmem, size = 0x40000, scoped, tag = 'input window, operand 0']
    loop: start=0, step=1, limit=6
    $region2: #{resnet_block_forward.5} parent=1 // loop_pre_header
      _
    $region3: #{resnet_block_forward.5} parent=1 // loop_header
      %s10 = sphi 0, %s14
      %p11 = scmp.ge.s32.totalorder %s10, 6
      %s17 = sphi 0, %s36
      %s18 = sphi 0, %s32
      %s19 = sphi 0, %s28
      %s20 = sphi 0, %s17
      %s21 = sphi 0, %s18
      %s22 = sphi 0, %s19
      %s23 = sphi 0, %s20
      %s24 = sphi 0, %s21
      %s25 = sphi 0, %s22
      %s41 = sphi 0, %s43
      %s44 = sphi 0, %s41
      %s45 = sphi 0, %s44
      %s61 = sphi 0, %s45
      %s69 = sphi 0, %s71
      %s72 = sphi 0, %s69
      %s73 = sphi 0, %s72
      %s89 = sphi 0, %s73
      %s95 = sphi 0, %s97
      %s98 = sphi 0, %s95
      %s99 = sphi 0, %s98
      %s115 = sphi 0, %s99
      %s121 = sphi 0, %s123
      %s124 = sphi 0, %s121
      %s125 = sphi 0, %s124
      %s141 = sphi 0, %s125
      %s149 = sphi 0, %s151
      %s152 = sphi 0, %s149
      %s153 = sphi 0, %s152
      %s169 = sphi 0, %s153
    $region4: #{resnet_block_forward.5} parent=1 // loop_header_branch
      %13 = sbr.rel (%p11) target = $region8
    $region5: #{resnet_block_forward.5} parent=1 // loop_body
      %s15 = ssub.s32 %s10, 1
      %s16 = ssub.s32 %s10, 2
      %s26 = sadd.s32 1, %s19
      %p27 = scmp.ge.s32.totalorder %s26, 2
      %s28 = scalar_select %p27, 0, %s26
      %s29 = sadd.s32 1, %s18
      %s30 = scalar_select %p27, %s29, %s18
      %p31 = scmp.ge.s32.totalorder %s30, 1
      %s32 = scalar_select %p31, 0, %s30
      %s33 = sadd.s32 1, %s17
      %s34 = scalar_select %p31, %s33, %s17
      %p35 = scmp.ge.s32.totalorder %s34, 2
      %s36 = scalar_select %p35, 0, %s34
      %s37 = ssub.s32 %s17, %s36
      %s38 = ssub.s32 %s19, %s28
      %s39 = sor.u32 %s37, %s38
      %p40 = scmp.eq.s32.totalorder %s39, 0
      %s42 = sadd.s32 %s41, 1
      %s43 = scalar_select %p40, %s41, %s42
      %p46 = pneg %p40
      %p47 = scmp.eq.s32.totalorder %s10, 3
      %p48 = por %p46, %p47
      %p49 = scmp.ne.s32.totalorder %s41, %s44
      %p50 = scmp.eq.s32.totalorder %s10, 0
      %p51 = por %p49, %p50
      %p52 = scmp.ne.s32.totalorder %s41, %s44
      %p53 = scmp.eq.s32.totalorder %s15, 3
      %p54 = por %p52, %p53
      %p55 = scmp.ne.s32.totalorder %s44, %s45
      %p56 = scmp.eq.s32.totalorder %s15, 0
      %p57 = por %p55, %p56
      %p58 = scmp.ne.s32.totalorder %s44, %s45
      %p59 = scmp.eq.s32.totalorder %s16, 3
      %p60 = por %p58, %p59
      %p62 = scmp.ne.s32.totalorder %s45, %s61
      %p63 = scmp.eq.s32.totalorder %s16, 0
      %p64 = por %p62, %p63
      %s65 = ssub.s32 %s19, %s28
      %s66 = ssub.s32 %s18, %s32
      %s67 = sor.u32 %s65, %s66
      %p68 = scmp.eq.s32.totalorder %s67, 0
      %s70 = sadd.s32 %s69, 1
      %s71 = scalar_select %p68, %s69, %s70
      %p74 = pneg %p68
      %p75 = scmp.eq.s32.totalorder %s10, 3
      %p76 = por %p74, %p75
      %p77 = scmp.ne.s32.totalorder %s69, %s72
      %p78 = scmp.eq.s32.totalorder %s10, 0
      %p79 = por %p77, %p78
      %p80 = scmp.ne.s32.totalorder %s69, %s72
      %p81 = scmp.eq.s32.totalorder %s15, 3
      %p82 = por %p80, %p81
      %p83 = scmp.ne.s32.totalorder %s72, %s73
      %p84 = scmp.eq.s32.totalorder %s15, 0
      %p85 = por %p83, %p84
      %p86 = scmp.ne.s32.totalorder %s72, %s73
      %p87 = scmp.eq.s32.totalorder %s16, 3
      %p88 = por %p86, %p87
      %p90 = scmp.ne.s32.totalorder %s73, %s89
      %p91 = scmp.eq.s32.totalorder %s16, 0
      %p92 = por %p90, %p91
      %s93 = ssub.s32 %s18, %s32
      %p94 = scmp.eq.s32.totalorder %s93, 0
      %s96 = sadd.s32 %s95, 1
      %s97 = scalar_select %p94, %s95, %s96
      %p100 = pneg %p94
      %p101 = scmp.eq.s32.totalorder %s10, 3
      %p102 = por %p100, %p101
      %p103 = scmp.ne.s32.totalorder %s95, %s98
      %p104 = scmp.eq.s32.totalorder %s10, 0
      %p105 = por %p103, %p104
      %p106 = scmp.ne.s32.totalorder %s95, %s98
      %p107 = scmp.eq.s32.totalorder %s15, 3
      %p108 = por %p106, %p107
      %p109 = scmp.ne.s32.totalorder %s98, %s99
      %p110 = scmp.eq.s32.totalorder %s15, 0
      %p111 = por %p109, %p110
      %p112 = scmp.ne.s32.totalorder %s98, %s99
      %p113 = scmp.eq.s32.totalorder %s16, 3
      %p114 = por %p112, %p113
      %p116 = scmp.ne.s32.totalorder %s99, %s115
      %p117 = scmp.eq.s32.totalorder %s16, 0
      %p118 = por %p116, %p117
      %s119 = ssub.s32 %s18, %s32
      %p120 = scmp.eq.s32.totalorder %s119, 0
      %s122 = sadd.s32 %s121, 1
      %s123 = scalar_select %p120, %s121, %s122
      %p126 = pneg %p120
      %p127 = scmp.eq.s32.totalorder %s10, 3
      %p128 = por %p126, %p127
      %p129 = scmp.ne.s32.totalorder %s121, %s124
      %p130 = scmp.eq.s32.totalorder %s10, 0
      %p131 = por %p129, %p130
      %p132 = scmp.ne.s32.totalorder %s121, %s124
      %p133 = scmp.eq.s32.totalorder %s15, 3
      %p134 = por %p132, %p133
      %p135 = scmp.ne.s32.totalorder %s124, %s125
      %p136 = scmp.eq.s32.totalorder %s15, 0
      %p137 = por %p135, %p136
      %p138 = scmp.ne.s32.totalorder %s124, %s125
      %p139 = scmp.eq.s32.totalorder %s16, 3
      %p140 = por %p138, %p139
      %p142 = scmp.ne.s32.totalorder %s125, %s141
      %p143 = scmp.eq.s32.totalorder %s16, 0
      %p144 = por %p142, %p143
      %s145 = ssub.s32 %s17, %s36
      %s146 = ssub.s32 %s18, %s32
      %s147 = sor.u32 %s145, %s146
      %p148 = scmp.eq.s32.totalorder %s147, 0
      %s150 = sadd.s32 %s149, 1
      %s151 = scalar_select %p148, %s149, %s150
      %p154 = pneg %p148
      %p155 = scmp.eq.s32.totalorder %s10, 3
      %p156 = por %p154, %p155
      %p157 = scmp.ne.s32.totalorder %s149, %s152
      %p158 = scmp.eq.s32.totalorder %s10, 0
      %p159 = por %p157, %p158
      %p160 = scmp.ne.s32.totalorder %s149, %s152
      %p161 = scmp.eq.s32.totalorder %s15, 3
      %p162 = por %p160, %p161
      %p163 = scmp.ne.s32.totalorder %s152, %s153
      %p164 = scmp.eq.s32.totalorder %s15, 0
      %p165 = por %p163, %p164
      %p166 = scmp.ne.s32.totalorder %s152, %s153
      %p167 = scmp.eq.s32.totalorder %s16, 3
      %p168 = por %p166, %p167
      %p170 = scmp.ne.s32.totalorder %s153, %s169
      %p171 = scmp.eq.s32.totalorder %s16, 0
      %p172 = por %p170, %p171
      %p173 = scmp.le.s32.totalorder 1, %s10
      %p174 = scmp.lt.s32.totalorder %s10, 5
      %p175 = pnand %p173, %p174
      %p176 = pneg %p175
      // Predicated region
      $region9: #{resnet_block_forward.5} parent=5 // pred_check
        _
      $region10: #{resnet_block_forward.5} parent=5 // pred_check_branch
        %178 = sbr.rel (%p175) target = $region12
      $region11: #{resnet_block_forward.5} parent=5 // pred_region
        %s179 = ssub.s32 %s10, 1
        // Predicated region
        $region13: #{resnet_block_forward.5} parent=11 // pred_check
          %p180 = pneg %p111
        $region14: #{resnet_block_forward.5} parent=11 // pred_check_branch
          %182 = sbr.rel (%p180) target = $region16
        $region15: #{resnet_block_forward.5} parent=11 // pred_region
          %p183 = scmp.lt.s32.totalorder %s21, 0
          %s184 = scalar_select %p183, %s21, 0
          %s185 = scalar_lea.vmem %s2, %s184
        $region16: #{resnet_block_forward.5} parent=11 // pred_fallthru
          _
        // Predicated region
        $region17: #{resnet_block_forward.5} parent=11 // pred_check
          %p186 = pneg %p137
        $region18: #{resnet_block_forward.5} parent=11 // pred_check_branch
          %188 = sbr.rel (%p186) target = $region20
        $region19: #{resnet_block_forward.5} parent=11 // pred_region
          %p189 = scmp.lt.s32.totalorder %s21, 0
          %s190 = scalar_select %p189, %s21, 0
          %s191 = scalar_lea.vmem %s3, %s190
        $region20: #{resnet_block_forward.5} parent=11 // pred_fallthru
          _
      $region12: #{resnet_block_forward.5} parent=5 // pred_fallthru
        _
      %p192 = scmp.lt.s32.totalorder %s10, 4
      // Predicated region
      $region21: #{resnet_block_forward.5} parent=5 // pred_check
        %p193 = pneg %p192
      $region22: #{resnet_block_forward.5} parent=5 // pred_check_branch
        %195 = sbr.rel (%p193) target = $region24
      $region23: #{resnet_block_forward.5} parent=5 // pred_region
        // Predicated region
        $region25: #{resnet_block_forward.5} parent=23 // pred_check
          %p196 = pneg %p51
        $region26: #{resnet_block_forward.5} parent=23 // pred_check_branch
          %198 = sbr.rel (%p196) target = $region28
        $region27: #{resnet_block_forward.5} parent=23 // pred_region
          %s199 = sand.u32 %s41, 1
          %s200 = sand.u32 %s41, 1
          %s201 = smul.addr %s200, 256
          %s202 = scalar_lea.vmem [#allocation3], %s201
          %s203 = smul.u32 8, %s17
          %s204 = smul.u32 8, %s19
          %s205 = smul.addr %s203, 16
          %s206 = sadd.s32 %s204, %s205
          %s207 = smul.addr %s206, 4
          %s208 = scalar_lea.vmem %s0, %s207
          // Predicated region
          $region29: #{resnet_block_forward.5} parent=27 // pred_check
            _
          $region30: #{resnet_block_forward.5} parent=27 // pred_check_branch
            %210 = sbr.rel (0) target = $region32
          $region31: #{resnet_block_forward.5} parent=27 // pred_region
            // Predicated region
            $region33: #{resnet_block_forward.5} parent=31 // pred_check
              _
            $region34: #{resnet_block_forward.5} parent=31 // pred_check_branch
              %212 = sbr.rel (0) target = $region36
            $region35: #{resnet_block_forward.5} parent=31 // pred_region
              loop: start=0, step=1, limit=1
              $region37: #{resnet_block_forward.5} parent=35 // loop_pre_header
                _
              $region38: #{resnet_block_forward.5} parent=35 // loop_header
                %s214 = sphi 0, %s218
                %p215 = scmp.ge.s32.totalorder %s214, 1
                %s219 = sphi %s208, %s208
                %s220 = sphi %s202, %s202
              $region39: #{resnet_block_forward.5} parent=35 // loop_header_branch
                %217 = sbr.rel (%p215) target = $region43
              $region40: #{resnet_block_forward.5} parent=35 // loop_body
                %v221 = vld [vmem:[%s219] sm:$0xff]
                %222 = vst [vmem:[%s220] sm:$0xff] %v221
                %v223 = vld [vmem:[%s219 + $0x8] sm:$0xff]
                %224 = vst [vmem:[%s220 + $0x8] sm:$0xff] %v223
                %v225 = vld [vmem:[%s219 + $0x10] sm:$0xff]
                %226 = vst [vmem:[%s220 + $0x10] sm:$0xff] %v225
                %v227 = vld [vmem:[%s219 + $0x18] sm:$0xff]
                %228 = vst [vmem:[%s220 + $0x18] sm:$0xff] %v227
                %v229 = vld [vmem:[%s219 + $0x40] sm:$0xff]
                %230 = vst [vmem:[%s220 + $0x20] sm:$0xff] %v229
                %v231 = vld [vmem:[%s219 + $0x48] sm:$0xff]
                %232 = vst [vmem:[%s220 + $0x28] sm:$0xff] %v231
                %v233 = vld [vmem:[%s219 + $0x50] sm:$0xff]
                %234 = vst [vmem:[%s220 + $0x30] sm:$0xff] %v233
                %v235 = vld [vmem:[%s219 + $0x58] sm:$0xff]
                %236 = vst [vmem:[%s220 + $0x38] sm:$0xff] %v235
                %v237 = vld [vmem:[%s219 + $0x80] sm:$0xff]
                %238 = vst [vmem:[%s220 + $0x40] sm:$0xff] %v237
                %v239 = vld [vmem:[%s219 + $0x88] sm:$0xff]
                %240 = vst [vmem:[%s220 + $0x48] sm:$0xff] %v239
                %v241 = vld [vmem:[%s219 + $0x90] sm:$0xff]
                %242 = vst [vmem:[%s220 + $0x50] sm:$0xff] %v241
                %v243 = vld [vmem:[%s219 + $0x98] sm:$0xff]
                %244 = vst [vmem:[%s220 + $0x58] sm:$0xff] %v243
                %v245 = vld [vmem:[%s219 + $0xc0] sm:$0xff]
                %246 = vst [vmem:[%s220 + $0x60] sm:$0xff] %v245
                %v247 = vld [vmem:[%s219 + $0xc8] sm:$0xff]
                %248 = vst [vmem:[%s220 + $0x68] sm:$0xff] %v247
                %v249 = vld [vmem:[%s219 + $0xd0] sm:$0xff]
                %250 = vst [vmem:[%s220 + $0x70] sm:$0xff] %v249
                %v251 = vld [vmem:[%s219 + $0xd8] sm:$0xff]
                %252 = vst [vmem:[%s220 + $0x78] sm:$0xff] %v251
                %v253 = vld [vmem:[%s219 + $0x100] sm:$0xff]
                %254 = vst [vmem:[%s220 + $0x80] sm:$0xff] %v253
                %v255 = vld [vmem:[%s219 + $0x108] sm:$0xff]
                %256 = vst [vmem:[%s220 + $0x88] sm:$0xff] %v255
                %v257 = vld [vmem:[%s219 + $0x110] sm:$0xff]
                %258 = vst [vmem:[%s220 + $0x90] sm:$0xff] %v257
                %v259 = vld [vmem:[%s219 + $0x118] sm:$0xff]
                %260 = vst [vmem:[%s220 + $0x98] sm:$0xff] %v259
                %v261 = vld [vmem:[%s219 + $0x140] sm:$0xff]
                %262 = vst [vmem:[%s220 + $0xa0] sm:$0xff] %v261
                %v263 = vld [vmem:[%s219 + $0x148] sm:$0xff]
                %264 = vst [vmem:[%s220 + $0xa8] sm:$0xff] %v263
                %v265 = vld [vmem:[%s219 + $0x150] sm:$0xff]
                %266 = vst [vmem:[%s220 + $0xb0] sm:$0xff] %v265
                %v267 = vld [vmem:[%s219 + $0x158] sm:$0xff]
                %268 = vst [vmem:[%s220 + $0xb8] sm:$0xff] %v267
                %v269 = vld [vmem:[%s219 + $0x180] sm:$0xff]
                %270 = vst [vmem:[%s220 + $0xc0] sm:$0xff] %v269
                %v271 = vld [vmem:[%s219 + $0x188] sm:$0xff]
                %272 = vst [vmem:[%s220 + $0xc8] sm:$0xff] %v271
                %v273 = vld [vmem:[%s219 + $0x190] sm:$0xff]
                %274 = vst [vmem:[%s220 + $0xd0] sm:$0xff] %v273
                %v275 = vld [vmem:[%s219 + $0x198] sm:$0xff]
                %276 = vst [vmem:[%s220 + $0xd8] sm:$0xff] %v275
                %v277 = vld [vmem:[%s219 + $0x1c0] sm:$0xff]
                %278 = vst [vmem:[%s220 + $0xe0] sm:$0xff] %v277
                %v279 = vld [vmem:[%s219 + $0x1c8] sm:$0xff]
                %280 = vst [vmem:[%s220 + $0xe8] sm:$0xff] %v279
                %v281 = vld [vmem:[%s219 + $0x1d0] sm:$0xff]
                %282 = vst [vmem:[%s220 + $0xf0] sm:$0xff] %v281
                %v283 = vld [vmem:[%s219 + $0x1d8] sm:$0xff]
                %284 = vst [vmem:[%s220 + $0xf8] sm:$0xff] %v283
              $region41: #{resnet_block_forward.5} parent=35 // loop_footer
                %s218 = sadd.s32 1, %s214
              $region42: #{resnet_block_forward.5} parent=35 // loop_footer_branch
                %213 = sbr.rel target = $region38
              $region43: #{resnet_block_forward.5} parent=35 // loop_exit
                _
            $region36: #{resnet_block_forward.5} parent=31 // pred_fallthru
              _
            // Predicated region
            $region44: #{resnet_block_forward.5} parent=31 // pred_check
              _
            $region45: #{resnet_block_forward.5} parent=31 // pred_check_branch
              %286 = sbr.rel target = $region47
            $region46: #{resnet_block_forward.5} parent=31 // pred_region
              _
            $region47: #{resnet_block_forward.5} parent=31 // pred_fallthru
              _
          $region32: #{resnet_block_forward.5} parent=27 // pred_fallthru
            _
          %287 = vnop
        $region28: #{resnet_block_forward.5} parent=23 // pred_fallthru
          _
        // Predicated region
        $region48: #{resnet_block_forward.5} parent=23 // pred_check
          %p288 = pneg %p79
        $region49: #{resnet_block_forward.5} parent=23 // pred_check_branch
          %290 = sbr.rel (%p288) target = $region51
        $region50: #{resnet_block_forward.5} parent=23 // pred_region
          %s291 = smul.u32 128, %s19
          %p292 = scmp.lt.s32.totalorder %s291, 255
          %s293 = scalar_select %p292, %s291, 255
          %p294 = scmp.lt.s32.totalorder %s18, 0
          %s295 = scalar_select %p294, %s18, 0
          %s296 = sadd.s32 %s295, %s293
          %s297 = smul.addr %s296, 4
          %s298 = scalar_lea.vmem %s1, %s297
          %s299 = smul.u32 128, %s19
        $region51: #{resnet_block_forward.5} parent=23 // pred_fallthru
          _
      $region24: #{resnet_block_forward.5} parent=5 // pred_fallthru
        _
      %p300 = scmp.le.s32.totalorder 1, %s10
      %p301 = scmp.lt.s32.totalorder %s10, 5
      %p302 = pnand %p300, %p301
      %p303 = pneg %p302
      // Predicated region
      $region52: #{resnet_block_forward.5} parent=5 // pred_check
        _
      $region53: #{resnet_block_forward.5} parent=5 // pred_check_branch
        %305 = sbr.rel (%p302) target = $region55
      $region54: #{resnet_block_forward.5} parent=5 // pred_region
        %s306 = ssub.s32 %s10, 1
        %s307 = sand.u32 %s44, 1
        %s308 = sand.u32 %s44, 1
        %s309 = smul.addr %s308, 256
        %s310 = scalar_lea.vmem [#allocation3], %s309
        // Predicated region
        $region56: #{resnet_block_forward.5} parent=54 // pred_check
          %p311 = pneg %p57
        $region57: #{resnet_block_forward.5} parent=54 // pred_check_branch
          %313 = sbr.rel (%p311) target = $region59
        $region58: #{resnet_block_forward.5} parent=54 // pred_region
          _
        $region59: #{resnet_block_forward.5} parent=54 // pred_fallthru
          _
        %s314 = sand.u32 %s44, 1
        %s315 = sand.u32 %s44, 1
        %s316 = smul.addr %s315, 256
        %s317 = scalar_lea.vmem [#allocation3], %s316
        %p318 = pneg %p57
        %p319 = pneg %p54
        %s320 = smul.u32 128, %s22
        %p321 = scmp.lt.s32.totalorder %s320, 255
        %s322 = scalar_select %p321, %s320, 255
        %p323 = scmp.lt.s32.totalorder %s21, 0
        %s324 = scalar_select %p323, %s21, 0
        %s325 = sadd.s32 %s324, %s322
        %s326 = smul.addr %s325, 4
        %s327 = scalar_lea.vmem %s1, %s326
        %p328 = pneg %p85
        %p329 = pneg %p82
        %p330 = scmp.lt.s32.totalorder %s21, 0
        %s331 = scalar_select %p330, %s21, 0
        %s332 = scalar_lea.vmem %s2, %s331
        %p333 = pneg %p111
        %p334 = pneg %p108
        %p335 = scmp.lt.s32.totalorder %s21, 0
        %s336 = scalar_select %p335, %s21, 0
        %s337 = scalar_lea.vmem %s3, %s336
        %p338 = pneg %p137
        %p339 = pneg %p134
        %p340 = pneg %p165
        %p341 = pneg %p162
        %s342 = smul.u32 8, %s20
        %p343 = scmp.lt.s32.totalorder %s342, 15
        %s344 = scalar_select %p343, %s342, 15
        %p345 = scmp.lt.s32.totalorder %s21, 0
        %s346 = scalar_select %p345, %s21, 0
        %s347 = sadd.s32 %s346, %s344
        %s348 = smul.addr %s347, 4
        %s349 = scalar_lea.vmem %s4, %s348
        %s350 = smul.u32 8, %s20
        %s351 = smul.u32 8, %s22
        %s352 = smul.u32 128, %s22
        %p353 = scmp.lt.s32.totalorder %s352, 255
        %s354 = scalar_select %p353, %s352, 255
        %p355 = scmp.lt.s32.totalorder %s21, 0
        %s356 = scalar_select %p355, %s21, 0
        %s357 = sadd.s32 %s356, %s354
        %s358 = smul.addr %s357, 4
        %s359 = scalar_lea.vmem %s1, %s358
        %s360 = smul.u32 128, %s22
        %p361 = scmp.lt.s32.totalorder %s21, 0
        %s362 = scalar_select %p361, %s21, 0
        %s363 = scalar_lea.vmem %s2, %s362
        %p364 = scmp.lt.s32.totalorder %s21, 0
        %s365 = scalar_select %p364, %s21, 0
        %s366 = scalar_lea.vmem %s3, %s365
        %s367 = smul.u32 8, %s20
        %p368 = scmp.lt.s32.totalorder %s367, 15
        %s369 = scalar_select %p368, %s367, 15
        %p370 = scmp.lt.s32.totalorder %s21, 0
        %s371 = scalar_select %p370, %s21, 0
        %s372 = sadd.s32 %s371, %s369
        %s373 = smul.addr %s372, 4
        %s374 = scalar_lea.vmem %s4, %s373
        %s375 = smul.u32 8, %s20
        %p377 = scmp.eq.s32.totalorder %s22, 0
        // Predicated region
        $region60: #{resnet_block_forward.5} parent=54 // pred_check
          %p378 = pneg %p377
        $region61: #{resnet_block_forward.5} parent=54 // pred_check_branch
          %380 = sbr.rel (%p378) target = $region63
        $region62: #{resnet_block_forward.5} parent=54 // pred_region
          %381 = vst [vmem:[#allocation2] sm:$0xff] 0.0
          %382 = vst [vmem:[#allocation2 + $0x8] sm:$0xff] 0.0
          %383 = vst [vmem:[#allocation2 + $0x10] sm:$0xff] 0.0
          %384 = vst [vmem:[#allocation2 + $0x18] sm:$0xff] 0.0
          %385 = vst [vmem:[#allocation2 + $0x20] sm:$0xff] 0.0
          %386 = vst [vmem:[#allocation2 + $0x28] sm:$0xff] 0.0
          %387 = vst [vmem:[#allocation2 + $0x30] sm:$0xff] 0.0
          %388 = vst [vmem:[#allocation2 + $0x38] sm:$0xff] 0.0
        $region63: #{resnet_block_forward.5} parent=54 // pred_fallthru
          _
        %v389 = vld [vmem:[#allocation2] sm:$0xff]
        %v390 = vld [vmem:[#allocation2 + $0x8] sm:$0xff]
        %v391 = vld [vmem:[#allocation2 + $0x10] sm:$0xff]
        %v392 = vld [vmem:[#allocation2 + $0x18] sm:$0xff]
        %v393 = vld [vmem:[#allocation2 + $0x20] sm:$0xff]
        %v394 = vld [vmem:[#allocation2 + $0x28] sm:$0xff]
        %v395 = vld [vmem:[#allocation2 + $0x30] sm:$0xff]
        %v396 = vld [vmem:[#allocation2 + $0x38] sm:$0xff]
        %v397 = vld [vmem:[%s310] sm:$0xff]
        %v398 = vld [vmem:[%s310 + $0x8] sm:$0xff]
        %v399 = vld [vmem:[%s310 + $0x10] sm:$0xff]
        %v400 = vld [vmem:[%s310 + $0x18] sm:$0xff]
        %v401 = vld [vmem:[%s310 + $0x20] sm:$0xff]
        %v402 = vld [vmem:[%s310 + $0x28] sm:$0xff]
        %v403 = vld [vmem:[%s310 + $0x30] sm:$0xff]
        %v404 = vld [vmem:[%s310 + $0x38] sm:$0xff]
        %v405 = vld [vmem:[%s310 + $0x40] sm:$0xff]
        %v406 = vld [vmem:[%s310 + $0x48] sm:$0xff]
        %v407 = vld [vmem:[%s310 + $0x50] sm:$0xff]
        %v408 = vld [vmem:[%s310 + $0x58] sm:$0xff]
        %v409 = vld [vmem:[%s310 + $0x60] sm:$0xff]
        %v410 = vld [vmem:[%s310 + $0x68] sm:$0xff]
        %v411 = vld [vmem:[%s310 + $0x70] sm:$0xff]
        %v412 = vld [vmem:[%s310 + $0x78] sm:$0xff]
        %v413 = vld [vmem:[%s310 + $0x80] sm:$0xff]
        %v414 = vld [vmem:[%s310 + $0x88] sm:$0xff]
        %v415 = vld [vmem:[%s310 + $0x90] sm:$0xff]
        %v416 = vld [vmem:[%s310 + $0x98] sm:$0xff]
        %v417 = vld [vmem:[%s310 + $0xa0] sm:$0xff]
        %v418 = vld [vmem:[%s310 + $0xa8] sm:$0xff]
        %v419 = vld [vmem:[%s310 + $0xb0] sm:$0xff]
        %v420 = vld [vmem:[%s310 + $0xb8] sm:$0xff]
        %v421 = vld [vmem:[%s310 + $0xc0] sm:$0xff]
        %v422 = vld [vmem:[%s310 + $0xc8] sm:$0xff]
        %v423 = vld [vmem:[%s310 + $0xd0] sm:$0xff]
        %v424 = vld [vmem:[%s310 + $0xd8] sm:$0xff]
        %v425 = vld [vmem:[%s310 + $0xe0] sm:$0xff]
        %v426 = vld [vmem:[%s310 + $0xe8] sm:$0xff]
        %v427 = vld [vmem:[%s310 + $0xf0] sm:$0xff]
        %v428 = vld [vmem:[%s310 + $0xf8] sm:$0xff]
        %v429 = vld [vmem:[%s359] sm:$0xf]
        %v430 = vld [vmem:[%s359 + $0x4] sm:$0xf]
        %v431 = vld [vmem:[%s359 + $0x8] sm:$0xf]
        %v432 = vld [vmem:[%s359 + $0xc] sm:$0xf]
        %v433 = vld [vmem:[%s359 + $0x10] sm:$0xf]
        %v434 = vld [vmem:[%s359 + $0x14] sm:$0xf]
        %v435 = vld [vmem:[%s359 + $0x18] sm:$0xf]
        %v436 = vld [vmem:[%s359 + $0x1c] sm:$0xf]
        %v437 = vld [vmem:[%s359 + $0x20] sm:$0xf]
        %v438 = vld [vmem:[%s359 + $0x24] sm:$0xf]
        %v439 = vld [vmem:[%s359 + $0x28] sm:$0xf]
        %v440 = vld [vmem:[%s359 + $0x2c] sm:$0xf]
        %v441 = vld [vmem:[%s359 + $0x30] sm:$0xf]
        %v442 = vld [vmem:[%s359 + $0x34] sm:$0xf]
        %v443 = vld [vmem:[%s359 + $0x38] sm:$0xf]
        %v444 = vld [vmem:[%s359 + $0x3c] sm:$0xf]
        %v445 = vld [vmem:[%s359 + $0x40] sm:$0xf]
        %v446 = vld [vmem:[%s359 + $0x44] sm:$0xf]
        %v447 = vld [vmem:[%s359 + $0x48] sm:$0xf]
        %v448 = vld [vmem:[%s359 + $0x4c] sm:$0xf]
        %v449 = vld [vmem:[%s359 + $0x50] sm:$0xf]
        %v450 = vld [vmem:[%s359 + $0x54] sm:$0xf]
        %v451 = vld [vmem:[%s359 + $0x58] sm:$0xf]
        %v452 = vld [vmem:[%s359 + $0x5c] sm:$0xf]
        %v453 = vld [vmem:[%s359 + $0x60] sm:$0xf]
        %v454 = vld [vmem:[%s359 + $0x64] sm:$0xf]
        %v455 = vld [vmem:[%s359 + $0x68] sm:$0xf]
        %v456 = vld [vmem:[%s359 + $0x6c] sm:$0xf]
        %v457 = vld [vmem:[%s359 + $0x70] sm:$0xf]
        %v458 = vld [vmem:[%s359 + $0x74] sm:$0xf]
        %v459 = vld [vmem:[%s359 + $0x78] sm:$0xf]
        %v460 = vld [vmem:[%s359 + $0x7c] sm:$0xf]
        %v461 = vld [vmem:[%s359 + $0x80] sm:$0xf]
        %v462 = vld [vmem:[%s359 + $0x84] sm:$0xf]
        %v463 = vld [vmem:[%s359 + $0x88] sm:$0xf]
        %v464 = vld [vmem:[%s359 + $0x8c] sm:$0xf]
        %v465 = vld [vmem:[%s359 + $0x90] sm:$0xf]
        %v466 = vld [vmem:[%s359 + $0x94] sm:$0xf]
        %v467 = vld [vmem:[%s359 + $0x98] sm:$0xf]
        %v468 = vld [vmem:[%s359 + $0x9c] sm:$0xf]
        %v469 = vld [vmem:[%s359 + $0xa0] sm:$0xf]
        %v470 = vld [vmem:[%s359 + $0xa4] sm:$0xf]
        %v471 = vld [vmem:[%s359 + $0xa8] sm:$0xf]
        %v472 = vld [vmem:[%s359 + $0xac] sm:$0xf]
        %v473 = vld [vmem:[%s359 + $0xb0] sm:$0xf]
        %v474 = vld [vmem:[%s359 + $0xb4] sm:$0xf]
        %v475 = vld [vmem:[%s359 + $0xb8] sm:$0xf]
        %v476 = vld [vmem:[%s359 + $0xbc] sm:$0xf]
        %v477 = vld [vmem:[%s359 + $0xc0] sm:$0xf]
        %v478 = vld [vmem:[%s359 + $0xc4] sm:$0xf]
        %v479 = vld [vmem:[%s359 + $0xc8] sm:$0xf]
        %v480 = vld [vmem:[%s359 + $0xcc] sm:$0xf]
        %v481 = vld [vmem:[%s359 + $0xd0] sm:$0xf]
        %v482 = vld [vmem:[%s359 + $0xd4] sm:$0xf]
        %v483 = vld [vmem:[%s359 + $0xd8] sm:$0xf]
        %v484 = vld [vmem:[%s359 + $0xdc] sm:$0xf]
        %v485 = vld [vmem:[%s359 + $0xe0] sm:$0xf]
        %v486 = vld [vmem:[%s359 + $0xe4] sm:$0xf]
        %v487 = vld [vmem:[%s359 + $0xe8] sm:$0xf]
        %v488 = vld [vmem:[%s359 + $0xec] sm:$0xf]
        %v489 = vld [vmem:[%s359 + $0xf0] sm:$0xf]
        %v490 = vld [vmem:[%s359 + $0xf4] sm:$0xf]
        %v491 = vld [vmem:[%s359 + $0xf8] sm:$0xf]
        %v492 = vld [vmem:[%s359 + $0xfc] sm:$0xf]
        %v493 = vld [vmem:[%s359 + $0x100] sm:$0xf]
        %v494 = vld [vmem:[%s359 + $0x104] sm:$0xf]
        %v495 = vld [vmem:[%s359 + $0x108] sm:$0xf]
        %v496 = vld [vmem:[%s359 + $0x10c] sm:$0xf]
        %v497 = vld [vmem:[%s359 + $0x110] sm:$0xf]
        %v498 = vld [vmem:[%s359 + $0x114] sm:$0xf]
        %v499 = vld [vmem:[%s359 + $0x118] sm:$0xf]
        %v500 = vld [vmem:[%s359 + $0x11c] sm:$0xf]
        %v501 = vld [vmem:[%s359 + $0x120] sm:$0xf]
        %v502 = vld [vmem:[%s359 + $0x124] sm:$0xf]
        %v503 = vld [vmem:[%s359 + $0x128] sm:$0xf]
        %v504 = vld [vmem:[%s359 + $0x12c] sm:$0xf]
        %v505 = vld [vmem:[%s359 + $0x130] sm:$0xf]
        %v506 = vld [vmem:[%s359 + $0x134] sm:$0xf]
        %v507 = vld [vmem:[%s359 + $0x138] sm:$0xf]
        %v508 = vld [vmem:[%s359 + $0x13c] sm:$0xf]
        %v509 = vld [vmem:[%s359 + $0x140] sm:$0xf]
        %v510 = vld [vmem:[%s359 + $0x144] sm:$0xf]
        %v511 = vld [vmem:[%s359 + $0x148] sm:$0xf]
        %v512 = vld [vmem:[%s359 + $0x14c] sm:$0xf]
        %v513 = vld [vmem:[%s359 + $0x150] sm:$0xf]
        %v514 = vld [vmem:[%s359 + $0x154] sm:$0xf]
        %v515 = vld [vmem:[%s359 + $0x158] sm:$0xf]
        %v516 = vld [vmem:[%s359 + $0x15c] sm:$0xf]
        %v517 = vld [vmem:[%s359 + $0x160] sm:$0xf]
        %v518 = vld [vmem:[%s359 + $0x164] sm:$0xf]
        %v519 = vld [vmem:[%s359 + $0x168] sm:$0xf]
        %v520 = vld [vmem:[%s359 + $0x16c] sm:$0xf]
        %v521 = vld [vmem:[%s359 + $0x170] sm:$0xf]
        %v522 = vld [vmem:[%s359 + $0x174] sm:$0xf]
        %v523 = vld [vmem:[%s359 + $0x178] sm:$0xf]
        %v524 = vld [vmem:[%s359 + $0x17c] sm:$0xf]
        %v525 = vld [vmem:[%s359 + $0x180] sm:$0xf]
        %v526 = vld [vmem:[%s359 + $0x184] sm:$0xf]
        %v527 = vld [vmem:[%s359 + $0x188] sm:$0xf]
        %v528 = vld [vmem:[%s359 + $0x18c] sm:$0xf]
        %v529 = vld [vmem:[%s359 + $0x190] sm:$0xf]
        %v530 = vld [vmem:[%s359 + $0x194] sm:$0xf]
        %v531 = vld [vmem:[%s359 + $0x198] sm:$0xf]
        %v532 = vld [vmem:[%s359 + $0x19c] sm:$0xf]
        %v533 = vld [vmem:[%s359 + $0x1a0] sm:$0xf]
        %v534 = vld [vmem:[%s359 + $0x1a4] sm:$0xf]
        %v535 = vld [vmem:[%s359 + $0x1a8] sm:$0xf]
        %v536 = vld [vmem:[%s359 + $0x1ac] sm:$0xf]
        %v537 = vld [vmem:[%s359 + $0x1b0] sm:$0xf]
        %v538 = vld [vmem:[%s359 + $0x1b4] sm:$0xf]
        %v539 = vld [vmem:[%s359 + $0x1b8] sm:$0xf]
        %v540 = vld [vmem:[%s359 + $0x1bc] sm:$0xf]
        %v541 = vld [vmem:[%s359 + $0x1c0] sm:$0xf]
        %v542 = vld [vmem:[%s359 + $0x1c4] sm:$0xf]
        %v543 = vld [vmem:[%s359 + $0x1c8] sm:$0xf]
        %v544 = vld [vmem:[%s359 + $0x1cc] sm:$0xf]
        %v545 = vld [vmem:[%s359 + $0x1d0] sm:$0xf]
        %v546 = vld [vmem:[%s359 + $0x1d4] sm:$0xf]
        %v547 = vld [vmem:[%s359 + $0x1d8] sm:$0xf]
        %v548 = vld [vmem:[%s359 + $0x1dc] sm:$0xf]
        %v549 = vld [vmem:[%s359 + $0x1e0] sm:$0xf]
        %v550 = vld [vmem:[%s359 + $0x1e4] sm:$0xf]
        %v551 = vld [vmem:[%s359 + $0x1e8] sm:$0xf]
        %v552 = vld [vmem:[%s359 + $0x1ec] sm:$0xf]
        %v553 = vld [vmem:[%s359 + $0x1f0] sm:$0xf]
        %v554 = vld [vmem:[%s359 + $0x1f4] sm:$0xf]
        %v555 = vld [vmem:[%s359 + $0x1f8] sm:$0xf]
        %v556 = vld [vmem:[%s359 + $0x1fc] sm:$0xf]
        %v589 = vunpack.c.l.b16 %v397
        %v590 = vunpack.c.h.b16 %v397
        %v591 = vunpack.c.l.b16 %v398
        %v592 = vunpack.c.h.b16 %v398
        %v593 = vunpack.c.l.b16 %v399
        %v594 = vunpack.c.h.b16 %v399
        %v595 = vunpack.c.l.b16 %v400
        %v596 = vunpack.c.h.b16 %v400
        %v597 = vunpack.c.l.b16 %v401
        %v598 = vunpack.c.h.b16 %v401
        %v599 = vunpack.c.l.b16 %v402
        %v600 = vunpack.c.h.b16 %v402
        %v601 = vunpack.c.l.b16 %v403
        %v602 = vunpack.c.h.b16 %v403
        %v603 = vunpack.c.l.b16 %v404
        %v604 = vunpack.c.h.b16 %v404
        %v605 = vunpack.c.l.b16 %v405
        %v606 = vunpack.c.h.b16 %v405
        %v607 = vunpack.c.l.b16 %v406
        %v608 = vunpack.c.h.b16 %v406
        %v609 = vunpack.c.l.b16 %v407
        %v610 = vunpack.c.h.b16 %v407
        %v611 = vunpack.c.l.b16 %v408
        %v612 = vunpack.c.h.b16 %v408
        %v613 = vunpack.c.l.b16 %v409
        %v614 = vunpack.c.h.b16 %v409
        %v615 = vunpack.c.l.b16 %v410
        %v616 = vunpack.c.h.b16 %v410
        %v617 = vunpack.c.l.b16 %v411
        %v618 = vunpack.c.h.b16 %v411
        %v619 = vunpack.c.l.b16 %v412
        %v620 = vunpack.c.h.b16 %v412
        %v621 = vunpack.c.l.b16 %v413
        %v622 = vunpack.c.h.b16 %v413
        %v623 = vunpack.c.l.b16 %v414
        %v624 = vunpack.c.h.b16 %v414
        %v625 = vunpack.c.l.b16 %v415
        %v626 = vunpack.c.h.b16 %v415
        %v627 = vunpack.c.l.b16 %v416
        %v628 = vunpack.c.h.b16 %v416
        %v629 = vunpack.c.l.b16 %v417
        %v630 = vunpack.c.h.b16 %v417
        %v631 = vunpack.c.l.b16 %v418
        %v632 = vunpack.c.h.b16 %v418
        %v633 = vunpack.c.l.b16 %v419
        %v634 = vunpack.c.h.b16 %v419
        %v635 = vunpack.c.l.b16 %v420
        %v636 = vunpack.c.h.b16 %v420
        %v637 = vunpack.c.l.b16 %v421
        %v638 = vunpack.c.h.b16 %v421
        %v639 = vunpack.c.l.b16 %v422
        %v640 = vunpack.c.h.b16 %v422
        %v641 = vunpack.c.l.b16 %v423
        %v642 = vunpack.c.h.b16 %v423
        %v643 = vunpack.c.l.b16 %v424
        %v644 = vunpack.c.h.b16 %v424
        %v645 = vunpack.c.l.b16 %v425
        %v646 = vunpack.c.h.b16 %v425
        %v647 = vunpack.c.l.b16 %v426
        %v648 = vunpack.c.h.b16 %v426
        %v649 = vunpack.c.l.b16 %v427
        %v650 = vunpack.c.h.b16 %v427
        %v651 = vunpack.c.l.b16 %v428
        %v652 = vunpack.c.h.b16 %v428
        %v653 = vpack.c.b16 %v597, %v589
        %v654 = vpack.c.b16 %v598, %v590
        %v655 = vpack.c.b16 %v599, %v591
        %v656 = vpack.c.b16 %v600, %v592
        %v657 = vpack.c.b16 %v601, %v593
        %v658 = vpack.c.b16 %v602, %v594
        %v659 = vpack.c.b16 %v603, %v595
        %v660 = vpack.c.b16 %v604, %v596
        %v661 = vpack.c.b16 %v613, %v605
        %v662 = vpack.c.b16 %v614, %v606
        %v663 = vpack.c.b16 %v615, %v607
        %v664 = vpack.c.b16 %v616, %v608
        %v665 = vpack.c.b16 %v617, %v609
        %v666 = vpack.c.b16 %v618, %v610
        %v667 = vpack.c.b16 %v619, %v611
        %v668 = vpack.c.b16 %v620, %v612
        %v669 = vpack.c.b16 %v629, %v621
        %v670 = vpack.c.b16 %v630, %v622
        %v671 = vpack.c.b16 %v631, %v623
        %v672 = vpack.c.b16 %v632, %v624
        %v673 = vpack.c.b16 %v633, %v625
        %v674 = vpack.c.b16 %v634, %v626
        %v675 = vpack.c.b16 %v635, %v627
        %v676 = vpack.c.b16 %v636, %v628
        %v677 = vpack.c.b16 %v645, %v637
        %v678 = vpack.c.b16 %v646, %v638
        %v679 = vpack.c.b16 %v647, %v639
        %v680 = vpack.c.b16 %v648, %v640
        %v681 = vpack.c.b16 %v649, %v641
        %v682 = vpack.c.b16 %v650, %v642
        %v683 = vpack.c.b16 %v651, %v643
        %v684 = vpack.c.b16 %v652, %v644
        %v845 = vunpack.c.l.b16 %v429
        %v846 = vunpack.c.l.b16 %v430
        %v847 = vunpack.c.l.b16 %v431
        %v848 = vunpack.c.l.b16 %v432
        %v849 = vunpack.c.l.b16 %v433
        %v850 = vunpack.c.l.b16 %v434
        %v851 = vunpack.c.l.b16 %v435
        %v852 = vunpack.c.l.b16 %v436
        %v853 = vunpack.c.l.b16 %v437
        %v854 = vunpack.c.l.b16 %v438
        %v855 = vunpack.c.l.b16 %v439
        %v856 = vunpack.c.l.b16 %v440
        %v857 = vunpack.c.l.b16 %v441
        %v858 = vunpack.c.l.b16 %v442
        %v859 = vunpack.c.l.b16 %v443
        %v860 = vunpack.c.l.b16 %v444
        %v861 = vunpack.c.l.b16 %v445
        %v862 = vunpack.c.l.b16 %v446
        %v863 = vunpack.c.l.b16 %v447
        %v864 = vunpack.c.l.b16 %v448
        %v865 = vunpack.c.l.b16 %v449
        %v866 = vunpack.c.l.b16 %v450
        %v867 = vunpack.c.l.b16 %v451
        %v868 = vunpack.c.l.b16 %v452
        %v869 = vunpack.c.l.b16 %v453
        %v870 = vunpack.c.l.b16 %v454
        %v871 = vunpack.c.l.b16 %v455
        %v872 = vunpack.c.l.b16 %v456
        %v873 = vunpack.c.l.b16 %v457
        %v874 = vunpack.c.l.b16 %v458
        %v875 = vunpack.c.l.b16 %v459
        %v876 = vunpack.c.l.b16 %v460
        %v877 = vunpack.c.l.b16 %v461
        %v878 = vunpack.c.l.b16 %v462
        %v879 = vunpack.c.l.b16 %v463
        %v880 = vunpack.c.l.b16 %v464
        %v881 = vunpack.c.l.b16 %v465
        %v882 = vunpack.c.l.b16 %v466
        %v883 = vunpack.c.l.b16 %v467
        %v884 = vunpack.c.l.b16 %v468
        %v885 = vunpack.c.l.b16 %v469
        %v886 = vunpack.c.l.b16 %v470
        %v887 = vunpack.c.l.b16 %v471
        %v888 = vunpack.c.l.b16 %v472
        %v889 = vunpack.c.l.b16 %v473
        %v890 = vunpack.c.l.b16 %v474
        %v891 = vunpack.c.l.b16 %v475
        %v892 = vunpack.c.l.b16 %v476
        %v893 = vunpack.c.l.b16 %v477
        %v894 = vunpack.c.l.b16 %v478
        %v895 = vunpack.c.l.b16 %v479
        %v896 = vunpack.c.l.b16 %v480
        %v897 = vunpack.c.l.b16 %v481
        %v898 = vunpack.c.l.b16 %v482
        %v899 = vunpack.c.l.b16 %v483
        %v900 = vunpack.c.l.b16 %v484
        %v901 = vunpack.c.l.b16 %v485
        %v902 = vunpack.c.l.b16 %v486
        %v903 = vunpack.c.l.b16 %v487
        %v904 = vunpack.c.l.b16 %v488
        %v905 = vunpack.c.l.b16 %v489
        %v906 = vunpack.c.l.b16 %v490
        %v907 = vunpack.c.l.b16 %v491
        %v908 = vunpack.c.l.b16 %v492
        %v909 = vunpack.c.l.b16 %v493
        %v910 = vunpack.c.l.b16 %v494
        %v911 = vunpack.c.l.b16 %v495
        %v912 = vunpack.c.l.b16 %v496
        %v913 = vunpack.c.l.b16 %v497
        %v914 = vunpack.c.l.b16 %v498
        %v915 = vunpack.c.l.b16 %v499
        %v916 = vunpack.c.l.b16 %v500
        %v917 = vunpack.c.l.b16 %v501
        %v918 = vunpack.c.l.b16 %v502
        %v919 = vunpack.c.l.b16 %v503
        %v920 = vunpack.c.l.b16 %v504
        %v921 = vunpack.c.l.b16 %v505
        %v922 = vunpack.c.l.b16 %v506
        %v923 = vunpack.c.l.b16 %v507
        %v924 = vunpack.c.l.b16 %v508
        %v925 = vunpack.c.l.b16 %v509
        %v926 = vunpack.c.l.b16 %v510
        %v927 = vunpack.c.l.b16 %v511
        %v928 = vunpack.c.l.b16 %v512
        %v929 = vunpack.c.l.b16 %v513
        %v930 = vunpack.c.l.b16 %v514
        %v931 = vunpack.c.l.b16 %v515
        %v932 = vunpack.c.l.b16 %v516
        %v933 = vunpack.c.l.b16 %v517
        %v934 = vunpack.c.l.b16 %v518
        %v935 = vunpack.c.l.b16 %v519
        %v936 = vunpack.c.l.b16 %v520
        %v937 = vunpack.c.l.b16 %v521
        %v938 = vunpack.c.l.b16 %v522
        %v939 = vunpack.c.l.b16 %v523
        %v940 = vunpack.c.l.b16 %v524
        %v941 = vunpack.c.l.b16 %v525
        %v942 = vunpack.c.l.b16 %v526
        %v943 = vunpack.c.l.b16 %v527
        %v944 = vunpack.c.l.b16 %v528
        %v945 = vunpack.c.l.b16 %v529
        %v946 = vunpack.c.l.b16 %v530
        %v947 = vunpack.c.l.b16 %v531
        %v948 = vunpack.c.l.b16 %v532
        %v949 = vunpack.c.l.b16 %v533
        %v950 = vunpack.c.l.b16 %v534
        %v951 = vunpack.c.l.b16 %v535
        %v952 = vunpack.c.l.b16 %v536
        %v953 = vunpack.c.l.b16 %v537
        %v954 = vunpack.c.l.b16 %v538
        %v955 = vunpack.c.l.b16 %v539
        %v956 = vunpack.c.l.b16 %v540
        %v957 = vunpack.c.l.b16 %v541
        %v958 = vunpack.c.l.b16 %v542
        %v959 = vunpack.c.l.b16 %v543
        %v960 = vunpack.c.l.b16 %v544
        %v961 = vunpack.c.l.b16 %v545
        %v962 = vunpack.c.l.b16 %v546
        %v963 = vunpack.c.l.b16 %v547
        %v964 = vunpack.c.l.b16 %v548
        %v965 = vunpack.c.l.b16 %v549
        %v966 = vunpack.c.l.b16 %v550
        %v967 = vunpack.c.l.b16 %v551
        %v968 = vunpack.c.l.b16 %v552
        %v969 = vunpack.c.l.b16 %v553
        %v970 = vunpack.c.l.b16 %v554
        %v971 = vunpack.c.l.b16 %v555
        %v972 = vunpack.c.l.b16 %v556
        %v973 = vpack.c.b16 %v846, %v845
        %v974 = vpack.c.b16 %v848, %v847
        %v975 = vpack.c.b16 %v850, %v849
        %v976 = vpack.c.b16 %v852, %v851
        %v977 = vpack.c.b16 %v854, %v853
        %v978 = vpack.c.b16 %v856, %v855
        %v979 = vpack.c.b16 %v858, %v857
        %v980 = vpack.c.b16 %v860, %v859
        %v981 = vpack.c.b16 %v862, %v861
        %v982 = vpack.c.b16 %v864, %v863
        %v983 = vpack.c.b16 %v866, %v865
        %v984 = vpack.c.b16 %v868, %v867
        %v985 = vpack.c.b16 %v870, %v869
        %v986 = vpack.c.b16 %v872, %v871
        %v987 = vpack.c.b16 %v874, %v873
        %v988 = vpack.c.b16 %v876, %v875
        %v989 = vpack.c.b16 %v878, %v877
        %v990 = vpack.c.b16 %v880, %v879
        %v991 = vpack.c.b16 %v882, %v881
        %v992 = vpack.c.b16 %v884, %v883
        %v993 = vpack.c.b16 %v886, %v885
        %v994 = vpack.c.b16 %v888, %v887
        %v995 = vpack.c.b16 %v890, %v889
        %v996 = vpack.c.b16 %v892, %v891
        %v997 = vpack.c.b16 %v894, %v893
        %v998 = vpack.c.b16 %v896, %v895
        %v999 = vpack.c.b16 %v898, %v897
        %v1000 = vpack.c.b16 %v900, %v899
        %v1001 = vpack.c.b16 %v902, %v901
        %v1002 = vpack.c.b16 %v904, %v903
        %v1003 = vpack.c.b16 %v906, %v905
        %v1004 = vpack.c.b16 %v908, %v907
        %v1005 = vpack.c.b16 %v910, %v909
        %v1006 = vpack.c.b16 %v912, %v911
        %v1007 = vpack.c.b16 %v914, %v913
        %v1008 = vpack.c.b16 %v916, %v915
        %v1009 = vpack.c.b16 %v918, %v917
        %v1010 = vpack.c.b16 %v920, %v919
        %v1011 = vpack.c.b16 %v922, %v921
        %v1012 = vpack.c.b16 %v924, %v923
        %v1013 = vpack.c.b16 %v926, %v925
        %v1014 = vpack.c.b16 %v928, %v927
        %v1015 = vpack.c.b16 %v930, %v929
        %v1016 = vpack.c.b16 %v932, %v931
        %v1017 = vpack.c.b16 %v934, %v933
        %v1018 = vpack.c.b16 %v936, %v935
        %v1019 = vpack.c.b16 %v938, %v937
        %v1020 = vpack.c.b16 %v940, %v939
        %v1021 = vpack.c.b16 %v942, %v941
        %v1022 = vpack.c.b16 %v944, %v943
        %v1023 = vpack.c.b16 %v946, %v945
        %v1024 = vpack.c.b16 %v948, %v947
        %v1025 = vpack.c.b16 %v950, %v949
        %v1026 = vpack.c.b16 %v952, %v951
        %v1027 = vpack.c.b16 %v954, %v953
        %v1028 = vpack.c.b16 %v956, %v955
        %v1029 = vpack.c.b16 %v958, %v957
        %v1030 = vpack.c.b16 %v960, %v959
        %v1031 = vpack.c.b16 %v962, %v961
        %v1032 = vpack.c.b16 %v964, %v963
        %v1033 = vpack.c.b16 %v966, %v965
        %v1034 = vpack.c.b16 %v968, %v967
        %v1035 = vpack.c.b16 %v970, %v969
        %v1036 = vpack.c.b16 %v972, %v971
        %1101 = vmatprep.subr.bf16.mxu0 0
        %1102 = vmatpush1.bf16.msra.mxu0 %v973
        %1103 = vmatprep.subr.bf16.mxu0 0
        %1104 = vmatpush1.bf16.msra.mxu0 %v974
        %1105 = vmatprep.subr.bf16.mxu0 0
        %1106 = vmatpush1.bf16.msra.mxu0 %v975
        %1107 = vmatprep.subr.bf16.mxu0 0
        %1108 = vmatpush1.bf16.msra.mxu0 %v976
        %1109 = vmatprep.subr.bf16.mxu0 0
        %1110 = vmatpush1.bf16.msra.mxu0 %v977
        %1111 = vmatprep.subr.bf16.mxu0 0
        %1112 = vmatpush1.bf16.msra.mxu0 %v978
        %1113 = vmatprep.subr.bf16.mxu0 0
        %1114 = vmatpush1.bf16.msra.mxu0 %v979
        %1115 = vmatprep.subr.bf16.mxu0 0
        %1116 = vmatpush1.bf16.msra.mxu0 %v980
        %1117 = vmatprep.subr.bf16.mxu0 0
        %1118 = vmatpush1.bf16.msra.mxu0 %v981
        %1119 = vmatprep.subr.bf16.mxu0 0
        %1120 = vmatpush1.bf16.msra.mxu0 %v982
        %1121 = vmatprep.subr.bf16.mxu0 0
        %1122 = vmatpush1.bf16.msra.mxu0 %v983
        %1123 = vmatprep.subr.bf16.mxu0 0
        %1124 = vmatpush1.bf16.msra.mxu0 %v984
        %1125 = vmatprep.subr.bf16.mxu0 0
        %1126 = vmatpush1.bf16.msra.mxu0 %v985
        %1127 = vmatprep.subr.bf16.mxu0 0
        %1128 = vmatpush1.bf16.msra.mxu0 %v986
        %1129 = vmatprep.subr.bf16.mxu0 0
        %1130 = vmatpush1.bf16.msra.mxu0 %v987
        %1131 = vmatprep.subr.bf16.mxu0 0
        %1132 = vmatpush1.bf16.msra.mxu0 %v988
        %1133 = vmatprep.mubr.bf16.mxu0 %v654
        %1134 = vmatmul.mubr.bf16.gmra.mrb[0].mxu0 %v653
        %v1135 = vpop.f32.mrb[0].mxu0
        %v1136 = vadd.f32 0.0, %v1135
        %v1137 = vpop.f32.mrb[0].mxu0
        %v1138 = vpop.f32.mrb[0].mxu0
        %v1139 = vadd.f32 0.0, %v1138
        %v1140 = vpop.f32.mrb[0].mxu0
        %1141 = vmatprep.mubr.bf16.mxu0 %v662
        %1142 = vmatmul.mubr.bf16.gmra.mrb[0].mxu0 %v661
        %v1143 = vpop.f32.mrb[0].mxu0
        %v1144 = vadd.f32 0.0, %v1143
        %v1145 = vpop.f32.mrb[0].mxu0
        %v1146 = vpop.f32.mrb[0].mxu0
        %v1147 = vadd.f32 0.0, %v1146
        %v1148 = vpop.f32.mrb[0].mxu0
        %1149 = vmatprep.mubr.bf16.mxu0 %v670
        %1150 = vmatmul.mubr.bf16.gmra.mrb[0].mxu0 %v669
        %v1151 = vpop.f32.mrb[0].mxu0
        %v1152 = vadd.f32 0.0, %v1151
        %v1153 = vpop.f32.mrb[0].mxu0
        %v1154 = vpop.f32.mrb[0].mxu0
        %v1155 = vadd.f32 0.0, %v1154
        %v1156 = vpop.f32.mrb[0].mxu0
        %1157 = vmatprep.mubr.bf16.mxu0 %v678
        %1158 = vmatmul.mubr.bf16.gmra.mrb[0].mxu0 %v677
        %v1159 = vpop.f32.mrb[0].mxu0
        %v1160 = vadd.f32 0.0, %v1159
        %v1161 = vpop.f32.mrb[0].mxu0
        %v1162 = vpop.f32.mrb[0].mxu0
        %v1163 = vadd.f32 0.0, %v1162
        %v1164 = vpop.f32.mrb[0].mxu0
        %1165 = vdwg.mxu0
        %1166 = vmatprep.subr.bf16.mxu0 0
        %1167 = vmatpush1.bf16.msra.mxu0 %v989
        %1168 = vmatprep.subr.bf16.mxu0 0
        %1169 = vmatpush1.bf16.msra.mxu0 %v990
        %1170 = vmatprep.subr.bf16.mxu0 0
        %1171 = vmatpush1.bf16.msra.mxu0 %v991
        %1172 = vmatprep.subr.bf16.mxu0 0
        %1173 = vmatpush1.bf16.msra.mxu0 %v992
        %1174 = vmatprep.subr.bf16.mxu0 0
        %1175 = vmatpush1.bf16.msra.mxu0 %v993
        %1176 = vmatprep.subr.bf16.mxu0 0
        %1177 = vmatpush1.bf16.msra.mxu0 %v994
        %1178 = vmatprep.subr.bf16.mxu0 0
        %1179 = vmatpush1.bf16.msra.mxu0 %v995
        %1180 = vmatprep.subr.bf16.mxu0 0
        %1181 = vmatpush1.bf16.msra.mxu0 %v996
        %1182 = vmatprep.subr.bf16.mxu0 0
        %1183 = vmatpush1.bf16.msra.mxu0 %v997
        %1184 = vmatprep.subr.bf16.mxu0 0
        %1185 = vmatpush1.bf16.msra.mxu0 %v998
        %1186 = vmatprep.subr.bf16.mxu0 0
        %1187 = vmatpush1.bf16.msra.mxu0 %v999
        %1188 = vmatprep.subr.bf16.mxu0 0
        %1189 = vmatpush1.bf16.msra.mxu0 %v1000
        %1190 = vmatprep.subr.bf16.mxu0 0
        %1191 = vmatpush1.bf16.msra.mxu0 %v1001
        %1192 = vmatprep.subr.bf16.mxu0 0
        %1193 = vmatpush1.bf16.msra.mxu0 %v1002
        %1194 = vmatprep.subr.bf16.mxu0 0
        %1195 = vmatpush1.bf16.msra.mxu0 %v1003
        %1196 = vmatprep.subr.bf16.mxu0 0
        %1197 = vmatpush1.bf16.msra.mxu0 %v1004
        %1198 = vmatprep.mubr.bf16.mxu0 %v656
        %1199 = vmatmul.mubr.bf16.gmra.mrb[0].mxu0 %v655
        %v1200 = vpop.f32.mrb[0].mxu0
        %v1201 = vadd.f32 %v1136, %v1200
        %v1202 = vpop.f32.mrb[0].mxu0
        %v1203 = vpop.f32.mrb[0].mxu0
        %v1204 = vadd.f32 %v1139, %v1203
        %v1205 = vpop.f32.mrb[0].mxu0
        %1206 = vmatprep.mubr.bf16.mxu0 %v664
        %1207 = vmatmul.mubr.bf16.gmra.mrb[0].mxu0 %v663
        %v1208 = vpop.f32.mrb[0].mxu0
        %v1209 = vadd.f32 %v1144, %v1208
        %v1210 = vpop.f32.mrb[0].mxu0
        %v1211 = vpop.f32.mrb[0].mxu0
        %v1212 = vadd.f32 %v1147, %v1211
        %v1213 = vpop.f32.mrb[0].mxu0
        %1214 = vmatprep.mubr.bf16.mxu0 %v672
        %1215 = vmatmul.mubr.bf16.gmra.mrb[0].mxu0 %v671
        %v1216 = vpop.f32.mrb[0].mxu0
        %v1217 = vadd.f32 %v1152, %v1216
        %v1218 = vpop.f32.mrb[0].mxu0
        %v1219 = vpop.f32.mrb[0].mxu0
        %v1220 = vadd.f32 %v1155, %v1219
        %v1221 = vpop.f32.mrb[0].mxu0
        %1222 = vmatprep.mubr.bf16.mxu0 %v680
        %1223 = vmatmul.mubr.bf16.gmra.mrb[0].mxu0 %v679
        %v1224 = vpop.f32.mrb[0].mxu0
        %v1225 = vadd.f32 %v1160, %v1224
        %v1226 = vpop.f32.mrb[0].mxu0
        %v1227 = vpop.f32.mrb[0].mxu0
        %v1228 = vadd.f32 %v1163, %v1227
        %v1229 = vpop.f32.mrb[0].mxu0
        %1230 = vdwg.mxu0
        %1231 = vmatprep.subr.bf16.mxu0 0
        %1232 = vmatpush1.bf16.msra.mxu0 %v1005
        %1233 = vmatprep.subr.bf16.mxu0 0
        %1234 = vmatpush1.bf16.msra.mxu0 %v1006
        %1235 = vmatprep.subr.bf16.mxu0 0
        %1236 = vmatpush1.bf16.msra.mxu0 %v1007
        %1237 = vmatprep.subr.bf16.mxu0 0
        %1238 = vmatpush1.bf16.msra.mxu0 %v1008
        %1239 = vmatprep.subr.bf16.mxu0 0
        %1240 = vmatpush1.bf16.msra.mxu0 %v1009
        %1241 = vmatprep.subr.bf16.mxu0 0
        %1242 = vmatpush1.bf16.msra.mxu0 %v1010
        %1243 = vmatprep.subr.bf16.mxu0 0
        %1244 = vmatpush1.bf16.msra.mxu0 %v1011
        %1245 = vmatprep.subr.bf16.mxu0 0
        %1246 = vmatpush1.bf16.msra.mxu0 %v1012
        %1247 = vmatprep.subr.bf16.mxu0 0
        %1248 = vmatpush1.bf16.msra.mxu0 %v1013
        %1249 = vmatprep.subr.bf16.mxu0 0
        %1250 = vmatpush1.bf16.msra.mxu0 %v1014
        %1251 = vmatprep.subr.bf16.mxu0 0
        %1252 = vmatpush1.bf16.msra.mxu0 %v1015
        %1253 = vmatprep.subr.bf16.mxu0 0
        %1254 = vmatpush1.bf16.msra.mxu0 %v1016
        %1255 = vmatprep.subr.bf16.mxu0 0
        %1256 = vmatpush1.bf16.msra.mxu0 %v1017
        %1257 = vmatprep.subr.bf16.mxu0 0
        %1258 = vmatpush1.bf16.msra.mxu0 %v1018
        %1259 = vmatprep.subr.bf16.mxu0 0
        %1260 = vmatpush1.bf16.msra.mxu0 %v1019
        %1261 = vmatprep.subr.bf16.mxu0 0
        %1262 = vmatpush1.bf16.msra.mxu0 %v1020
        %1263 = vmatprep.mubr.bf16.mxu0 %v658
        %1264 = vmatmul.mubr.bf16.gmra.mrb[0].mxu0 %v657
        %v1265 = vpop.f32.mrb[0].mxu0
        %v1266 = vadd.f32 %v1201, %v1265
        %v1267 = vpop.f32.mrb[0].mxu0
        %v1268 = vpop.f32.mrb[0].mxu0
        %v1269 = vadd.f32 %v1204, %v1268
        %v1270 = vpop.f32.mrb[0].mxu0
        %1271 = vmatprep.mubr.bf16.mxu0 %v666
        %1272 = vmatmul.mubr.bf16.gmra.mrb[0].mxu0 %v665
        %v1273 = vpop.f32.mrb[0].mxu0
        %v1274 = vadd.f32 %v1209, %v1273
        %v1275 = vpop.f32.mrb[0].mxu0
        %v1276 = vpop.f32.mrb[0].mxu0
        %v1277 = vadd.f32 %v1212, %v1276
        %v1278 = vpop.f32.mrb[0].mxu0
        %1279 = vmatprep.mubr.bf16.mxu0 %v674
        %1280 = vmatmul.mubr.bf16.gmra.mrb[0].mxu0 %v673
        %v1281 = vpop.f32.mrb[0].mxu0
        %v1282 = vadd.f32 %v1217, %v1281
        %v1283 = vpop.f32.mrb[0].mxu0
        %v1284 = vpop.f32.mrb[0].mxu0
        %v1285 = vadd.f32 %v1220, %v1284
        %v1286 = vpop.f32.mrb[0].mxu0
        %1287 = vmatprep.mubr.bf16.mxu0 %v682
        %1288 = vmatmul.mubr.bf16.gmra.mrb[0].mxu0 %v681
        %v1289 = vpop.f32.mrb[0].mxu0
        %v1290 = vadd.f32 %v1225, %v1289
        %v1291 = vpop.f32.mrb[0].mxu0
        %v1292 = vpop.f32.mrb[0].mxu0
        %v1293 = vadd.f32 %v1228, %v1292
        %v1294 = vpop.f32.mrb[0].mxu0
        %1295 = vdwg.mxu0
        %1296 = vmatprep.subr.bf16.mxu0 0
        %1297 = vmatpush1.bf16.msra.mxu0 %v1021
        %1298 = vmatprep.subr.bf16.mxu0 0
        %1299 = vmatpush1.bf16.msra.mxu0 %v1022
        %1300 = vmatprep.subr.bf16.mxu0 0
        %1301 = vmatpush1.bf16.msra.mxu0 %v1023
        %1302 = vmatprep.subr.bf16.mxu0 0
        %1303 = vmatpush1.bf16.msra.mxu0 %v1024
        %1304 = vmatprep.subr.bf16.mxu0 0
        %1305 = vmatpush1.bf16.msra.mxu0 %v1025
        %1306 = vmatprep.subr.bf16.mxu0 0
        %1307 = vmatpush1.bf16.msra.mxu0 %v1026
        %1308 = vmatprep.subr.bf16.mxu0 0
        %1309 = vmatpush1.bf16.msra.mxu0 %v1027
        %1310 = vmatprep.subr.bf16.mxu0 0
        %1311 = vmatpush1.bf16.msra.mxu0 %v1028
        %1312 = vmatprep.subr.bf16.mxu0 0
        %1313 = vmatpush1.bf16.msra.mxu0 %v1029
        %1314 = vmatprep.subr.bf16.mxu0 0
        %1315 = vmatpush1.bf16.msra.mxu0 %v1030
        %1316 = vmatprep.subr.bf16.mxu0 0
        %1317 = vmatpush1.bf16.msra.mxu0 %v1031
        %1318 = vmatprep.subr.bf16.mxu0 0
        %1319 = vmatpush1.bf16.msra.mxu0 %v1032
        %1320 = vmatprep.subr.bf16.mxu0 0
        %1321 = vmatpush1.bf16.msra.mxu0 %v1033
        %1322 = vmatprep.subr.bf16.mxu0 0
        %1323 = vmatpush1.bf16.msra.mxu0 %v1034
        %1324 = vmatprep.subr.bf16.mxu0 0
        %1325 = vmatpush1.bf16.msra.mxu0 %v1035
        %1326 = vmatprep.subr.bf16.mxu0 0
        %1327 = vmatpush1.bf16.msra.mxu0 %v1036
        %1328 = vmatprep.mubr.bf16.mxu0 %v660
        %1329 = vmatmul.mubr.bf16.gmra.mrb[0].mxu0 %v659
        %v1330 = vpop.f32.mrb[0].mxu0
        %v1331 = vadd.f32 %v1266, %v1330
        %v1332 = vpop.f32.mrb[0].mxu0
        %v1333 = vpop.f32.mrb[0].mxu0
        %v1334 = vadd.f32 %v1269, %v1333
        %v1335 = vpop.f32.mrb[0].mxu0
        %1336 = vmatprep.mubr.bf16.mxu0 %v668
        %1337 = vmatmul.mubr.bf16.gmra.mrb[0].mxu0 %v667
        %v1338 = vpop.f32.mrb[0].mxu0
        %v1339 = vadd.f32 %v1274, %v1338
        %v1340 = vpop.f32.mrb[0].mxu0
        %v1341 = vpop.f32.mrb[0].mxu0
        %v1342 = vadd.f32 %v1277, %v1341
        %v1343 = vpop.f32.mrb[0].mxu0
        %1344 = vmatprep.mubr.bf16.mxu0 %v676
        %1345 = vmatmul.mubr.bf16.gmra.mrb[0].mxu0 %v675
        %v1346 = vpop.f32.mrb[0].mxu0
        %v1347 = vadd.f32 %v1282, %v1346
        %v1348 = vpop.f32.mrb[0].mxu0
        %v1349 = vpop.f32.mrb[0].mxu0
        %v1350 = vadd.f32 %v1285, %v1349
        %v1351 = vpop.f32.mrb[0].mxu0
        %1352 = vmatprep.mubr.bf16.mxu0 %v684
        %1353 = vmatmul.mubr.bf16.gmra.mrb[0].mxu0 %v683
        %v1354 = vpop.f32.mrb[0].mxu0
        %v1355 = vadd.f32 %v1290, %v1354
        %v1356 = vpop.f32.mrb[0].mxu0
        %v1357 = vpop.f32.mrb[0].mxu0
        %v1358 = vadd.f32 %v1293, %v1357
        %v1359 = vpop.f32.mrb[0].mxu0
        %1360 = vdwg.mxu0
        %v1361 = vadd.f32 %v389, %v1331
        %v1362 = vadd.f32 %v390, %v1334
        %v1363 = vadd.f32 %v391, %v1339
        %v1364 = vadd.f32 %v392, %v1342
        %v1365 = vadd.f32 %v393, %v1347
        %v1366 = vadd.f32 %v394, %v1350
        %v1367 = vadd.f32 %v395, %v1355
        %v1368 = vadd.f32 %v396, %v1358
        %1369 = vst [vmem:[#allocation2] sm:$0xff] %v1361
        %1370 = vst [vmem:[#allocation2 + $0x8] sm:$0xff] %v1362
        %1371 = vst [vmem:[#allocation2 + $0x10] sm:$0xff] %v1363
        %1372 = vst [vmem:[#allocation2 + $0x18] sm:$0xff] %v1364
        %1373 = vst [vmem:[#allocation2 + $0x20] sm:$0xff] %v1365
        %1374 = vst [vmem:[#allocation2 + $0x28] sm:$0xff] %v1366
        %1375 = vst [vmem:[#allocation2 + $0x30] sm:$0xff] %v1367
        %1376 = vst [vmem:[#allocation2 + $0x38] sm:$0xff] %v1368
        %p1377 = scmp.eq.s32.totalorder %s22, 1
        // Predicated region
        $region64: #{resnet_block_forward.5} parent=54 // pred_check
          %p1378 = pneg %p1377
        $region65: #{resnet_block_forward.5} parent=54 // pred_check_branch
          %1380 = sbr.rel (%p1378) target = $region67
        $region66: #{resnet_block_forward.5} parent=54 // pred_region
          %v1381 = vld [vmem:[#allocation2] sm:$0xff]
          %v1382 = vld [vmem:[#allocation2 + $0x8] sm:$0xff]
          %v1383 = vld [vmem:[#allocation2 + $0x10] sm:$0xff]
          %v1384 = vld [vmem:[#allocation2 + $0x18] sm:$0xff]
          %v1385 = vld [vmem:[#allocation2 + $0x20] sm:$0xff]
          %v1386 = vld [vmem:[#allocation2 + $0x28] sm:$0xff]
          %v1387 = vld [vmem:[#allocation2 + $0x30] sm:$0xff]
          %v1388 = vld [vmem:[#allocation2 + $0x38] sm:$0xff]
          %v1389 = vld [vmem:[%s363] sm:$0x1]
          %v1391 = vlaneseq
          %v1392 = vshrl.u32 %v1391, 7
          %v1393 = vsub.s32 0, %v1392
          %v1394 = vrot.slane %v1389, %v1393
          %v1396 = vmul.f32 %v1381, %v1394
          %v1397 = vmul.f32 %v1382, %v1394
          %v1398 = vmul.f32 %v1383, %v1394
          %v1399 = vmul.f32 %v1384, %v1394
          %v1400 = vmul.f32 %v1385, %v1394
          %v1401 = vmul.f32 %v1386, %v1394
          %v1402 = vmul.f32 %v1387, %v1394
          %v1403 = vmul.f32 %v1388, %v1394
          %v1404 = vld [vmem:[%s366] sm:$0x1]
          %v1406 = vlaneseq
          %v1407 = vshrl.u32 %v1406, 7
          %v1408 = vsub.s32 0, %v1407
          %v1409 = vrot.slane %v1404, %v1408
          %v1411 = vadd.f32 %v1396, %v1409
          %v1412 = vadd.f32 %v1397, %v1409
          %v1413 = vadd.f32 %v1398, %v1409
          %v1414 = vadd.f32 %v1399, %v1409
          %v1415 = vadd.f32 %v1400, %v1409
          %v1416 = vadd.f32 %v1401, %v1409
          %v1417 = vadd.f32 %v1402, %v1409
          %v1418 = vadd.f32 %v1403, %v1409
          %v1419 = vmax.f32 %v1411, 0.0
          %v1420 = vmax.f32 %v1412, 0.0
          %v1421 = vmax.f32 %v1413, 0.0
          %v1422 = vmax.f32 %v1414, 0.0
          %v1423 = vmax.f32 %v1415, 0.0
          %v1424 = vmax.f32 %v1416, 0.0
          %v1425 = vmax.f32 %v1417, 0.0
          %v1426 = vmax.f32 %v1418, 0.0
          %v1427 = vpack.c.bf16 %v1420, %v1419
          %v1428 = vpack.c.bf16 %v1422, %v1421
          %v1429 = vpack.c.bf16 %v1424, %v1423
          %v1430 = vpack.c.bf16 %v1426, %v1425
          %v1435 = vunpack.c.l.b16 %v1427
          %v1436 = vunpack.c.h.b16 %v1427
          %v1437 = vunpack.c.l.b16 %v1428
          %v1438 = vunpack.c.h.b16 %v1428
          %v1439 = vunpack.c.l.b16 %v1429
          %v1440 = vunpack.c.h.b16 %v1429
          %v1441 = vunpack.c.l.b16 %v1430
          %v1442 = vunpack.c.h.b16 %v1430
          %v1443 = vpack.c.b16 %v1435, %v1435
          %v1444 = vpack.c.b16 %v1436, %v1436
          %v1445 = vpack.c.b16 %v1437, %v1437
          %v1446 = vpack.c.b16 %v1438, %v1438
          %v1447 = vpack.c.b16 %v1439, %v1439
          %v1448 = vpack.c.b16 %v1440, %v1440
          %v1449 = vpack.c.b16 %v1441, %v1441
          %v1450 = vpack.c.b16 %v1442, %v1442
          %1459 = vst [vmem:[%s374] sm:$0xf] %v1443
          %1460 = vst [vmem:[%s374 + $0x4] sm:$0xf] %v1444
          %1461 = vst [vmem:[%s374 + $0x8] sm:$0xf] %v1445
          %1462 = vst [vmem:[%s374 + $0xc] sm:$0xf] %v1446
          %1463 = vst [vmem:[%s374 + $0x10] sm:$0xf] %v1447
          %1464 = vst [vmem:[%s374 + $0x14] sm:$0xf] %v1448
          %1465 = vst [vmem:[%s374 + $0x18] sm:$0xf] %v1449
          %1466 = vst [vmem:[%s374 + $0x1c] sm:$0xf] %v1450
        $region67: #{resnet_block_forward.5} parent=54 // pred_fallthru
          _
        %s1467 = smul.u32 8, %s20
        %p1468 = scmp.lt.s32.totalorder %s1467, 15
        %s1469 = scalar_select %p1468, %s1467, 15
        %p1470 = scmp.lt.s32.totalorder %s21, 0
        %s1471 = scalar_select %p1470, %s21, 0
        %s1472 = sadd.s32 %s1471, %s1469
        %s1473 = smul.addr %s1472, 4
        %s1474 = scalar_lea.vmem %s4, %s1473
        // Predicated region
        $region68: #{resnet_block_forward.5} parent=54 // pred_check
          %p1475 = pneg %p162
        $region69: #{resnet_block_forward.5} parent=54 // pred_check_branch
          %1477 = sbr.rel (%p1475) target = $region71
        $region70: #{resnet_block_forward.5} parent=54 // pred_region
          %s1478 = smul.u32 8, %s20
        $region71: #{resnet_block_forward.5} parent=54 // pred_fallthru
          _
      $region55: #{resnet_block_forward.5} parent=5 // pred_fallthru
        _
      %p1479 = scmp.le.s32.totalorder 2, %s10
      // Predicated region
      $region72: #{resnet_block_forward.5} parent=5 // pred_check
        %p1480 = pneg %p1479
      $region73: #{resnet_block_forward.5} parent=5 // pred_check_branch
        %1482 = sbr.rel (%p1480) target = $region75
      $region74: #{resnet_block_forward.5} parent=5 // pred_region
        %s1483 = ssub.s32 %s10, 2
        // Predicated region
        $region76: #{resnet_block_forward.5} parent=74 // pred_check
          %p1484 = pneg %p168
        $region77: #{resnet_block_forward.5} parent=74 // pred_check_branch
          %1486 = sbr.rel (%p1484) target = $region79
        $region78: #{resnet_block_forward.5} parent=74 // pred_region
          %s1487 = smul.u32 8, %s23
          %p1488 = scmp.lt.s32.totalorder %s1487, 15
          %s1489 = scalar_select %p1488, %s1487, 15
          %p1490 = scmp.lt.s32.totalorder %s24, 0
          %s1491 = scalar_select %p1490, %s24, 0
          %s1492 = sadd.s32 %s1491, %s1489
          %s1493 = smul.addr %s1492, 4
          %s1494 = scalar_lea.vmem %s4, %s1493
        $region79: #{resnet_block_forward.5} parent=74 // pred_fallthru
          _
      $region75: #{resnet_block_forward.5} parent=5 // pred_fallthru
        _
    $region6: #{resnet_block_forward.5} parent=1 // loop_footer
      %s14 = sadd.s32 1, %s10
    $region7: #{resnet_block_forward.5} parent=1 // loop_footer_branch
      %9 = sbr.rel target = $region3
    $region8: #{resnet_block_forward.5} parent=1 // loop_exit
      _

// kernel: resnet_block_forward.7
$region0: #{resnet_block_forward.7}
  #allocation0 [shape = 'u32[]', space=smem, size = 0x4, offset = 0x4, fixed_abs, tag = 'smem constant byte address 0x4 - core index']
  #allocation1 [shape = 'u32[144,128]{1,0:T(1,128)}', space=vmem, size = 0x12000, scoped, tag = 'internal scratch']
  #allocation2 [shape = 'f32[64,128]{1,0:T(8,128)}', space=vmem, size = 0x8000, scoped, tag = 'scratch operand']
  %s0 = inlined_call_operand.vmem [shape: bf16[128,128], index: 0, kind: input, shape index: {}]
  %s1 = inlined_call_operand.vmem [shape: bf16[128,128], index: 1, kind: input, shape index: {}]
  %s2 = inlined_call_operand.vmem [shape: f32[1,128], index: 2, kind: input, shape index: {}]
  %s3 = inlined_call_operand.vmem [shape: f32[1,128], index: 3, kind: input, shape index: {}]
  %s4 = inlined_call_operand.vmem [shape: f32[128,128], index: 4, kind: input, shape index: {}]
  %s5 = inlined_call_operand.hbm [shape: f32[128,128], index: 5, kind: output, shape index: {}]
  %s6 = sld [smem:[#allocation0]]
  $region61: #{resnet_block_forward.7} parent=0
    _
  %s8 = ssub.s32 1, %s6
  %s9 = scalar_select 0, %s8, %s6
  $region1: #{resnet_block_forward.7} parent=0
    #allocation3 [shape = 'u8[65536]{0}', space=vmem, size = 0x10000, scoped, tag = 'output window, operand 0']
    #allocation4 [shape = 's32[2]{0}', space=sflag, size = 0x8, scoped, tag = 'scoped memory for resnet_block_forward.7']
    %10 = vsyncpa [#allocation4], 0
    %s11 = scalar_lea.sflag [#allocation4], 1
    %12 = vsyncpa %s11, 0
    loop: start=0, step=1, limit=4
    $region2: #{resnet_block_forward.7} parent=1 // loop_pre_header
      _
    $region3: #{resnet_block_forward.7} parent=1 // loop_header
      %s14 = sphi 0, %s18
      %p15 = scmp.ge.s32.totalorder %s14, 4
      %s21 = sphi 0, %s40
      %s22 = sphi 0, %s36
      %s23 = sphi 0, %s32
      %s24 = sphi 0, %s21
      %s25 = sphi 0, %s22
      %s26 = sphi 0, %s23
      %s27 = sphi 0, %s24
      %s28 = sphi 0, %s25
      %s29 = sphi 0, %s26
      %s45 = sphi 0, %s47
      %s48 = sphi 0, %s45
      %s49 = sphi 0, %s48
      %s65 = sphi 0, %s49
      %s73 = sphi 0, %s75
      %s76 = sphi 0, %s73
      %s77 = sphi 0, %s76
      %s93 = sphi 0, %s77
      %s99 = sphi 0, %s101
      %s102 = sphi 0, %s99
      %s103 = sphi 0, %s102
      %s119 = sphi 0, %s103
      %s125 = sphi 0, %s127
      %s128 = sphi 0, %s125
      %s129 = sphi 0, %s128
      %s145 = sphi 0, %s129
      %s153 = sphi 0, %s155
      %s156 = sphi 0, %s153
      %s157 = sphi 0, %s156
      %s173 = sphi 0, %s157
      %s181 = sphi 0, %s183
      %s184 = sphi 0, %s181
      %s185 = sphi 0, %s184
      %s201 = sphi 0, %s185
    $region4: #{resnet_block_forward.7} parent=1 // loop_header_branch
      %17 = sbr.rel (%p15) target = $region8
    $region5: #{resnet_block_forward.7} parent=1 // loop_body
      %s19 = ssub.s32 %s14, 1
      %s20 = ssub.s32 %s14, 2
      %s30 = sadd.s32 1, %s23
      %p31 = scmp.ge.s32.totalorder %s30, 1
      %s32 = scalar_select %p31, 0, %s30
      %s33 = sadd.s32 1, %s22
      %s34 = scalar_select %p31, %s33, %s22
      %p35 = scmp.ge.s32.totalorder %s34, 1
      %s36 = scalar_select %p35, 0, %s34
      %s37 = sadd.s32 1, %s21
      %s38 = scalar_select %p35, %s37, %s21
      %p39 = scmp.ge.s32.totalorder %s38, 2
      %s40 = scalar_select %p39, 0, %s38
      %s41 = ssub.s32 %s21, %s40
      %s42 = ssub.s32 %s23, %s32
      %s43 = sor.u32 %s41, %s42
      %p44 = scmp.eq.s32.totalorder %s43, 0
      %s46 = sadd.s32 %s45, 1
      %s47 = scalar_select %p44, %s45, %s46
      %p50 = pneg %p44
      %p51 = scmp.eq.s32.totalorder %s14, 1
      %p52 = por %p50, %p51
      %p53 = scmp.ne.s32.totalorder %s45, %s48
      %p54 = scmp.eq.s32.totalorder %s14, 0
      %p55 = por %p53, %p54
      %p56 = scmp.ne.s32.totalorder %s45, %s48
      %p57 = scmp.eq.s32.totalorder %s19, 1
      %p58 = por %p56, %p57
      %p59 = scmp.ne.s32.totalorder %s48, %s49
      %p60 = scmp.eq.s32.totalorder %s19, 0
      %p61 = por %p59, %p60
      %p62 = scmp.ne.s32.totalorder %s48, %s49
      %p63 = scmp.eq.s32.totalorder %s20, 1
      %p64 = por %p62, %p63
      %p66 = scmp.ne.s32.totalorder %s49, %s65
      %p67 = scmp.eq.s32.totalorder %s20, 0
      %p68 = por %p66, %p67
      %s69 = ssub.s32 %s23, %s32
      %s70 = ssub.s32 %s22, %s36
      %s71 = sor.u32 %s69, %s70
      %p72 = scmp.eq.s32.totalorder %s71, 0
      %s74 = sadd.s32 %s73, 1
      %s75 = scalar_select %p72, %s73, %s74
      %p78 = pneg %p72
      %p79 = scmp.eq.s32.totalorder %s14, 1
      %p80 = por %p78, %p79
      %p81 = scmp.ne.s32.totalorder %s73, %s76
      %p82 = scmp.eq.s32.totalorder %s14, 0
      %p83 = por %p81, %p82
      %p84 = scmp.ne.s32.totalorder %s73, %s76
      %p85 = scmp.eq.s32.totalorder %s19, 1
      %p86 = por %p84, %p85
      %p87 = scmp.ne.s32.totalorder %s76, %s77
      %p88 = scmp.eq.s32.totalorder %s19, 0
      %p89 = por %p87, %p88
      %p90 = scmp.ne.s32.totalorder %s76, %s77
      %p91 = scmp.eq.s32.totalorder %s20, 1
      %p92 = por %p90, %p91
      %p94 = scmp.ne.s32.totalorder %s77, %s93
      %p95 = scmp.eq.s32.totalorder %s20, 0
      %p96 = por %p94, %p95
      %s97 = ssub.s32 %s22, %s36
      %p98 = scmp.eq.s32.totalorder %s97, 0
      %s100 = sadd.s32 %s99, 1
      %s101 = scalar_select %p98, %s99, %s100
      %p104 = pneg %p98
      %p105 = scmp.eq.s32.totalorder %s14, 1
      %p106 = por %p104, %p105
      %p107 = scmp.ne.s32.totalorder %s99, %s102
      %p108 = scmp.eq.s32.totalorder %s14, 0
      %p109 = por %p107, %p108
      %p110 = scmp.ne.s32.totalorder %s99, %s102
      %p111 = scmp.eq.s32.totalorder %s19, 1
      %p112 = por %p110, %p111
      %p113 = scmp.ne.s32.totalorder %s102, %s103
      %p114 = scmp.eq.s32.totalorder %s19, 0
      %p115 = por %p113, %p114
      %p116 = scmp.ne.s32.totalorder %s102, %s103
      %p117 = scmp.eq.s32.totalorder %s20, 1
      %p118 = por %p116, %p117
      %p120 = scmp.ne.s32.totalorder %s103, %s119
      %p121 = scmp.eq.s32.totalorder %s20, 0
      %p122 = por %p120, %p121
      %s123 = ssub.s32 %s22, %s36
      %p124 = scmp.eq.s32.totalorder %s123, 0
      %s126 = sadd.s32 %s125, 1
      %s127 = scalar_select %p124, %s125, %s126
      %p130 = pneg %p124
      %p131 = scmp.eq.s32.totalorder %s14, 1
      %p132 = por %p130, %p131
      %p133 = scmp.ne.s32.totalorder %s125, %s128
      %p134 = scmp.eq.s32.totalorder %s14, 0
      %p135 = por %p133, %p134
      %p136 = scmp.ne.s32.totalorder %s125, %s128
      %p137 = scmp.eq.s32.totalorder %s19, 1
      %p138 = por %p136, %p137
      %p139 = scmp.ne.s32.totalorder %s128, %s129
      %p140 = scmp.eq.s32.totalorder %s19, 0
      %p141 = por %p139, %p140
      %p142 = scmp.ne.s32.totalorder %s128, %s129
      %p143 = scmp.eq.s32.totalorder %s20, 1
      %p144 = por %p142, %p143
      %p146 = scmp.ne.s32.totalorder %s129, %s145
      %p147 = scmp.eq.s32.totalorder %s20, 0
      %p148 = por %p146, %p147
      %s149 = ssub.s32 %s21, %s40
      %s150 = ssub.s32 %s22, %s36
      %s151 = sor.u32 %s149, %s150
      %p152 = scmp.eq.s32.totalorder %s151, 0
      %s154 = sadd.s32 %s153, 1
      %s155 = scalar_select %p152, %s153, %s154
      %p158 = pneg %p152
      %p159 = scmp.eq.s32.totalorder %s14, 1
      %p160 = por %p158, %p159
      %p161 = scmp.ne.s32.totalorder %s153, %s156
      %p162 = scmp.eq.s32.totalorder %s14, 0
      %p163 = por %p161, %p162
      %p164 = scmp.ne.s32.totalorder %s153, %s156
      %p165 = scmp.eq.s32.totalorder %s19, 1
      %p166 = por %p164, %p165
      %p167 = scmp.ne.s32.totalorder %s156, %s157
      %p168 = scmp.eq.s32.totalorder %s19, 0
      %p169 = por %p167, %p168
      %p170 = scmp.ne.s32.totalorder %s156, %s157
      %p171 = scmp.eq.s32.totalorder %s20, 1
      %p172 = por %p170, %p171
      %p174 = scmp.ne.s32.totalorder %s157, %s173
      %p175 = scmp.eq.s32.totalorder %s20, 0
      %p176 = por %p174, %p175
      %s177 = ssub.s32 %s21, %s40
      %s178 = ssub.s32 %s22, %s36
      %s179 = sor.u32 %s177, %s178
      %p180 = scmp.eq.s32.totalorder %s179, 0
      %s182 = sadd.s32 %s181, 1
      %s183 = scalar_select %p180, %s181, %s182
      %p186 = pneg %p180
      %p187 = scmp.eq.s32.totalorder %s14, 1
      %p188 = por %p186, %p187
      %p189 = scmp.ne.s32.totalorder %s181, %s184
      %p190 = scmp.eq.s32.totalorder %s14, 0
      %p191 = por %p189, %p190
      %p192 = scmp.ne.s32.totalorder %s181, %s184
      %p193 = scmp.eq.s32.totalorder %s19, 1
      %p194 = por %p192, %p193
      %p195 = scmp.ne.s32.totalorder %s184, %s185
      %p196 = scmp.eq.s32.totalorder %s19, 0
      %p197 = por %p195, %p196
      %p198 = scmp.ne.s32.totalorder %s184, %s185
      %p199 = scmp.eq.s32.totalorder %s20, 1
      %p200 = por %p198, %p199
      %p202 = scmp.ne.s32.totalorder %s185, %s201
      %p203 = scmp.eq.s32.totalorder %s20, 0
      %p204 = por %p202, %p203
      %p205 = scmp.le.s32.totalorder 1, %s14
      %p206 = scmp.lt.s32.totalorder %s14, 3
      %p207 = pnand %p205, %p206
      %p208 = pneg %p207
      // Predicated region
      $region9: #{resnet_block_forward.7} parent=5 // pred_check
        _
      $region10: #{resnet_block_forward.7} parent=5 // pred_check_branch
        %210 = sbr.rel (%p207) target = $region12
      $region11: #{resnet_block_forward.7} parent=5 // pred_region
        %s211 = ssub.s32 %s14, 1
        // Predicated region
        $region13: #{resnet_block_forward.7} parent=11 // pred_check
          %p212 = pneg %p89
        $region14: #{resnet_block_forward.7} parent=11 // pred_check_branch
          %214 = sbr.rel (%p212) target = $region16
        $region15: #{resnet_block_forward.7} parent=11 // pred_region
          %s215 = smul.u32 16, %s26
          %p216 = scmp.lt.s32.totalorder %s215, 15
          %s217 = scalar_select %p216, %s215, 15
          %p218 = scmp.lt.s32.totalorder %s25, 0
          %s219 = scalar_select %p218, %s25, 0
          %s220 = sadd.s32 %s219, %s217
          %s221 = smul.addr %s220, 4
          %s222 = scalar_lea.vmem %s1, %s221
          %s223 = smul.u32 16, %s26
        $region16: #{resnet_block_forward.7} parent=11 // pred_fallthru
          _
        // Predicated region
        $region17: #{resnet_block_forward.7} parent=11 // pred_check
          %p224 = pneg %p115
        $region18: #{resnet_block_forward.7} parent=11 // pred_check_branch
          %226 = sbr.rel (%p224) target = $region20
        $region19: #{resnet_block_forward.7} parent=11 // pred_region
          %p227 = scmp.lt.s32.totalorder %s25, 0
          %s228 = scalar_select %p227, %s25, 0
          %s229 = scalar_lea.vmem %s2, %s228
        $region20: #{resnet_block_forward.7} parent=11 // pred_fallthru
          _
        // Predicated region
        $region21: #{resnet_block_forward.7} parent=11 // pred_check
          %p230 = pneg %p141
        $region22: #{resnet_block_forward.7} parent=11 // pred_check_branch
          %232 = sbr.rel (%p230) target = $region24
        $region23: #{resnet_block_forward.7} parent=11 // pred_region
          %p233 = scmp.lt.s32.totalorder %s25, 0
          %s234 = scalar_select %p233, %s25, 0
          %s235 = scalar_lea.vmem %s3, %s234
        $region24: #{resnet_block_forward.7} parent=11 // pred_fallthru
          _
      $region12: #{resnet_block_forward.7} parent=5 // pred_fallthru
        _
      %p236 = scmp.lt.s32.totalorder %s14, 2
      // Predicated region
      $region25: #{resnet_block_forward.7} parent=5 // pred_check
        %p237 = pneg %p236
      $region26: #{resnet_block_forward.7} parent=5 // pred_check_branch
        %239 = sbr.rel (%p237) target = $region28
      $region27: #{resnet_block_forward.7} parent=5 // pred_region
        // Predicated region
        $region29: #{resnet_block_forward.7} parent=27 // pred_check
          %p240 = pneg %p55
        $region30: #{resnet_block_forward.7} parent=27 // pred_check_branch
          %242 = sbr.rel (%p240) target = $region32
        $region31: #{resnet_block_forward.7} parent=27 // pred_region
          %s243 = smul.u32 8, %s21
          %p244 = scmp.lt.s32.totalorder %s243, 15
          %s245 = scalar_select %p244, %s243, 15
          %p246 = scmp.lt.s32.totalorder %s23, 0
          %s247 = scalar_select %p246, %s23, 0
          %s248 = sadd.s32 %s247, %s245
          %s249 = smul.addr %s248, 4
          %s250 = scalar_lea.vmem %s0, %s249
          %s251 = smul.u32 8, %s21
        $region32: #{resnet_block_forward.7} parent=27 // pred_fallthru
          _
        // Predicated region
        $region33: #{resnet_block_forward.7} parent=27 // pred_check
          %p252 = pneg %p163
        $region34: #{resnet_block_forward.7} parent=27 // pred_check_branch
          %254 = sbr.rel (%p252) target = $region36
        $region35: #{resnet_block_forward.7} parent=27 // pred_region
          %s255 = smul.u32 8, %s21
          %p256 = scmp.lt.s32.totalorder %s255, 15
          %s257 = scalar_select %p256, %s255, 15
          %p258 = scmp.lt.s32.totalorder %s22, 0
          %s259 = scalar_select %p258, %s22, 0
          %s260 = sadd.s32 %s259, %s257
          %s261 = smul.addr %s260, 8
          %s262 = scalar_lea.vmem %s4, %s261
          %s263 = smul.u32 8, %s21
        $region36: #{resnet_block_forward.7} parent=27 // pred_fallthru
          _
      $region28: #{resnet_block_forward.7} parent=5 // pred_fallthru
        _
      %p264 = scmp.le.s32.totalorder 1, %s14
      %p265 = scmp.lt.s32.totalorder %s14, 3
      %p266 = pnand %p264, %p265
      %p267 = pneg %p266
      // Predicated region
      $region37: #{resnet_block_forward.7} parent=5 // pred_check
        _
      $region38: #{resnet_block_forward.7} parent=5 // pred_check_branch
        %269 = sbr.rel (%p266) target = $region40
      $region39: #{resnet_block_forward.7} parent=5 // pred_region
        %s270 = ssub.s32 %s14, 1
        %s271 = smul.u32 8, %s24
        %p272 = scmp.lt.s32.totalorder %s271, 15
        %s273 = scalar_select %p272, %s271, 15
        %p274 = scmp.lt.s32.totalorder %s26, 0
        %s275 = scalar_select %p274, %s26, 0
        %s276 = sadd.s32 %s275, %s273
        %s277 = smul.addr %s276, 4
        %s278 = scalar_lea.vmem %s0, %s277
        %p279 = pneg %p61
        %p280 = pneg %p58
        %s281 = smul.u32 16, %s26
        %p282 = scmp.lt.s32.totalorder %s281, 15
        %s283 = scalar_select %p282, %s281, 15
        %p284 = scmp.lt.s32.totalorder %s25, 0
        %s285 = scalar_select %p284, %s25, 0
        %s286 = sadd.s32 %s285, %s283
        %s287 = smul.addr %s286, 4
        %s288 = scalar_lea.vmem %s1, %s287
        %p289 = pneg %p89
        %p290 = pneg %p86
        %p291 = scmp.lt.s32.totalorder %s25, 0
        %s292 = scalar_select %p291, %s25, 0
        %s293 = scalar_lea.vmem %s2, %s292
        %p294 = pneg %p115
        %p295 = pneg %p112
        %p296 = scmp.lt.s32.totalorder %s25, 0
        %s297 = scalar_select %p296, %s25, 0
        %s298 = scalar_lea.vmem %s3, %s297
        %p299 = pneg %p141
        %p300 = pneg %p138
        %s301 = smul.u32 8, %s24
        %p302 = scmp.lt.s32.totalorder %s301, 15
        %s303 = scalar_select %p302, %s301, 15
        %p304 = scmp.lt.s32.totalorder %s25, 0
        %s305 = scalar_select %p304, %s25, 0
        %s306 = sadd.s32 %s305, %s303
        %s307 = smul.addr %s306, 8
        %s308 = scalar_lea.vmem %s4, %s307
        %p309 = pneg %p169
        %p310 = pneg %p166
        %p311 = pneg %p197
        %p312 = pneg %p194
        %s313 = sand.u32 %s184, 1
        %s314 = scalar_lea.sflag [#allocation4], %s313
        %s315 = sand.u32 %s184, 1
        %s316 = smul.addr %s315, 64
        %s317 = scalar_lea.vmem [#allocation3], %s316
        %s318 = smul.u32 8, %s24
        %p319 = scmp.lt.s32.totalorder %s318, 15
        %s320 = scalar_select %p319, %s318, 15
        %p321 = scmp.lt.s32.totalorder %s26, 0
        %s322 = scalar_select %p321, %s26, 0
        %s323 = sadd.s32 %s322, %s320
        %s324 = smul.addr %s323, 4
        %s325 = scalar_lea.vmem %s0, %s324
        %s326 = smul.u32 8, %s24
        %s327 = smul.u32 16, %s26
        %p328 = scmp.lt.s32.totalorder %s327, 15
        %s329 = scalar_select %p328, %s327, 15
        %p330 = scmp.lt.s32.totalorder %s25, 0
        %s331 = scalar_select %p330, %s25, 0
        %s332 = sadd.s32 %s331, %s329
        %s333 = smul.addr %s332, 4
        %s334 = scalar_lea.vmem %s1, %s333
        %s335 = smul.u32 16, %s26
        %p336 = scmp.lt.s32.totalorder %s25, 0
        %s337 = scalar_select %p336, %s25, 0
        %s338 = scalar_lea.vmem %s2, %s337
        %p339 = scmp.lt.s32.totalorder %s25, 0
        %s340 = scalar_select %p339, %s25, 0
        %s341 = scalar_lea.vmem %s3, %s340
        %s342 = smul.u32 8, %s24
        %p343 = scmp.lt.s32.totalorder %s342, 15
        %s344 = scalar_select %p343, %s342, 15
        %p345 = scmp.lt.s32.totalorder %s25, 0
        %s346 = scalar_select %p345, %s25, 0
        %s347 = sadd.s32 %s346, %s344
        %s348 = smul.addr %s347, 8
        %s349 = scalar_lea.vmem %s4, %s348
        %s350 = smul.u32 8, %s24
        %s351 = smul.u32 8, %s24
        %p353 = scmp.eq.s32.totalorder %s26, 0
        // Predicated region
        $region41: #{resnet_block_forward.7} parent=39 // pred_check
          %p354 = pneg %p353
        $region42: #{resnet_block_forward.7} parent=39 // pred_check_branch
          %356 = sbr.rel (%p354) target = $region44
        $region43: #{resnet_block_forward.7} parent=39 // pred_region
          %357 = vst [vmem:[#allocation2] sm:$0xff] 0.0
          %358 = vst [vmem:[#allocation2 + $0x8] sm:$0xff] 0.0
          %359 = vst [vmem:[#allocation2 + $0x10] sm:$0xff] 0.0
          %360 = vst [vmem:[#allocation2 + $0x18] sm:$0xff] 0.0
          %361 = vst [vmem:[#allocation2 + $0x20] sm:$0xff] 0.0
          %362 = vst [vmem:[#allocation2 + $0x28] sm:$0xff] 0.0
          %363 = vst [vmem:[#allocation2 + $0x30] sm:$0xff] 0.0
          %364 = vst [vmem:[#allocation2 + $0x38] sm:$0xff] 0.0
        $region44: #{resnet_block_forward.7} parent=39 // pred_fallthru
          _
        %v365 = vld [vmem:[#allocation2] sm:$0xff]
        %v366 = vld [vmem:[#allocation2 + $0x8] sm:$0xff]
        %v367 = vld [vmem:[#allocation2 + $0x10] sm:$0xff]
        %v368 = vld [vmem:[#allocation2 + $0x18] sm:$0xff]
        %v369 = vld [vmem:[#allocation2 + $0x20] sm:$0xff]
        %v370 = vld [vmem:[#allocation2 + $0x28] sm:$0xff]
        %v371 = vld [vmem:[#allocation2 + $0x30] sm:$0xff]
        %v372 = vld [vmem:[#allocation2 + $0x38] sm:$0xff]
        %v373 = vld [vmem:[%s325] sm:$0xf]
        %v374 = vld [vmem:[%s325 + $0x4] sm:$0xf]
        %v375 = vld [vmem:[%s325 + $0x8] sm:$0xf]
        %v376 = vld [vmem:[%s325 + $0xc] sm:$0xf]
        %v377 = vld [vmem:[%s325 + $0x10] sm:$0xf]
        %v378 = vld [vmem:[%s325 + $0x14] sm:$0xf]
        %v379 = vld [vmem:[%s325 + $0x18] sm:$0xf]
        %v380 = vld [vmem:[%s325 + $0x1c] sm:$0xf]
        %v381 = vld [vmem:[%s334] sm:$0xf]
        %v382 = vld [vmem:[%s334 + $0x4] sm:$0xf]
        %v383 = vld [vmem:[%s334 + $0x8] sm:$0xf]
        %v384 = vld [vmem:[%s334 + $0xc] sm:$0xf]
        %v385 = vld [vmem:[%s334 + $0x10] sm:$0xf]
        %v386 = vld [vmem:[%s334 + $0x14] sm:$0xf]
        %v387 = vld [vmem:[%s334 + $0x18] sm:$0xf]
        %v388 = vld [vmem:[%s334 + $0x1c] sm:$0xf]
        %v389 = vld [vmem:[%s334 + $0x20] sm:$0xf]
        %v390 = vld [vmem:[%s334 + $0x24] sm:$0xf]
        %v391 = vld [vmem:[%s334 + $0x28] sm:$0xf]
        %v392 = vld [vmem:[%s334 + $0x2c] sm:$0xf]
        %v393 = vld [vmem:[%s334 + $0x30] sm:$0xf]
        %v394 = vld [vmem:[%s334 + $0x34] sm:$0xf]
        %v395 = vld [vmem:[%s334 + $0x38] sm:$0xf]
        %v396 = vld [vmem:[%s334 + $0x3c] sm:$0xf]
        %v405 = vunpack.c.l.b16 %v373
        %v406 = vunpack.c.l.b16 %v374
        %v407 = vunpack.c.l.b16 %v375
        %v408 = vunpack.c.l.b16 %v376
        %v409 = vunpack.c.l.b16 %v377
        %v410 = vunpack.c.l.b16 %v378
        %v411 = vunpack.c.l.b16 %v379
        %v412 = vunpack.c.l.b16 %v380
        %v413 = vpack.c.b16 %v406, %v405
        %v414 = vpack.c.b16 %v408, %v407
        %v415 = vpack.c.b16 %v410, %v409
        %v416 = vpack.c.b16 %v412, %v411
        %v437 = vunpack.c.l.b16 %v381
        %v438 = vunpack.c.l.b16 %v382
        %v439 = vunpack.c.l.b16 %v383
        %v440 = vunpack.c.l.b16 %v384
        %v441 = vunpack.c.l.b16 %v385
        %v442 = vunpack.c.l.b16 %v386
        %v443 = vunpack.c.l.b16 %v387
        %v444 = vunpack.c.l.b16 %v388
        %v445 = vunpack.c.l.b16 %v389
        %v446 = vunpack.c.l.b16 %v390
        %v447 = vunpack.c.l.b16 %v391
        %v448 = vunpack.c.l.b16 %v392
        %v449 = vunpack.c.l.b16 %v393
        %v450 = vunpack.c.l.b16 %v394
        %v451 = vunpack.c.l.b16 %v395
        %v452 = vunpack.c.l.b16 %v396
        %v453 = vpack.c.b16 %v438, %v437
        %v454 = vpack.c.b16 %v440, %v439
        %v455 = vpack.c.b16 %v442, %v441
        %v456 = vpack.c.b16 %v444, %v443
        %v457 = vpack.c.b16 %v446, %v445
        %v458 = vpack.c.b16 %v448, %v447
        %v459 = vpack.c.b16 %v450, %v449
        %v460 = vpack.c.b16 %v452, %v451
        %469 = vmatprep.subr.bf16.mxu0 0
        %470 = vmatpush1.bf16.msra.mxu0 %v453
        %471 = vmatprep.subr.bf16.mxu0 0
        %472 = vmatpush1.bf16.msra.mxu0 %v454
        %473 = vmatprep.subr.bf16.mxu0 0
        %474 = vmatpush1.bf16.msra.mxu0 %v455
        %475 = vmatprep.subr.bf16.mxu0 0
        %476 = vmatpush1.bf16.msra.mxu0 %v456
        %477 = vmatprep.subr.bf16.mxu0 0
        %478 = vmatpush1.bf16.msra.mxu0 %v457
        %479 = vmatprep.subr.bf16.mxu0 0
        %480 = vmatpush1.bf16.msra.mxu0 %v458
        %481 = vmatprep.subr.bf16.mxu0 0
        %482 = vmatpush1.bf16.msra.mxu0 %v459
        %483 = vmatprep.subr.bf16.mxu0 0
        %484 = vmatpush1.bf16.msra.mxu0 %v460
        %485 = vmatprep.subr.bf16.mxu0 0
        %486 = vmatpush1.bf16.msra.mxu0 0
        %487 = vmatprep.subr.bf16.mxu0 0
        %488 = vmatpush1.bf16.msra.mxu0 0
        %489 = vmatprep.subr.bf16.mxu0 0
        %490 = vmatpush1.bf16.msra.mxu0 0
        %491 = vmatprep.subr.bf16.mxu0 0
        %492 = vmatpush1.bf16.msra.mxu0 0
        %493 = vmatprep.subr.bf16.mxu0 0
        %494 = vmatpush1.bf16.msra.mxu0 0
        %495 = vmatprep.subr.bf16.mxu0 0
        %496 = vmatpush1.bf16.msra.mxu0 0
        %497 = vmatprep.subr.bf16.mxu0 0
        %498 = vmatpush1.bf16.msra.mxu0 0
        %499 = vmatprep.subr.bf16.mxu0 0
        %500 = vmatpush1.bf16.msra.mxu0 0
        %501 = vmatprep.mubr.bf16.mxu0 0
        %502 = vmatmul.mubr.bf16.gmra.mrb[0].mxu0 %v413
        %v503 = vpop.f32.mrb[0].mxu0
        %v504 = vadd.f32 0.0, %v503
        %v505 = vpop.f32.mrb[0].mxu0
        %v506 = vpop.f32.mrb[0].mxu0
        %v507 = vadd.f32 0.0, %v506
        %v508 = vpop.f32.mrb[0].mxu0
        %509 = vmatprep.mubr.bf16.mxu0 0
        %510 = vmatmul.mubr.bf16.gmra.mrb[0].mxu0 %v414
        %v511 = vpop.f32.mrb[0].mxu0
        %v512 = vadd.f32 0.0, %v511
        %v513 = vpop.f32.mrb[0].mxu0
        %v514 = vpop.f32.mrb[0].mxu0
        %v515 = vadd.f32 0.0, %v514
        %v516 = vpop.f32.mrb[0].mxu0
        %517 = vmatprep.mubr.bf16.mxu0 0
        %518 = vmatmul.mubr.bf16.gmra.mrb[0].mxu0 %v415
        %v519 = vpop.f32.mrb[0].mxu0
        %v520 = vadd.f32 0.0, %v519
        %v521 = vpop.f32.mrb[0].mxu0
        %v522 = vpop.f32.mrb[0].mxu0
        %v523 = vadd.f32 0.0, %v522
        %v524 = vpop.f32.mrb[0].mxu0
        %525 = vmatprep.mubr.bf16.mxu0 0
        %526 = vmatmul.mubr.bf16.gmra.mrb[0].mxu0 %v416
        %v527 = vpop.f32.mrb[0].mxu0
        %v528 = vadd.f32 0.0, %v527
        %v529 = vpop.f32.mrb[0].mxu0
        %v530 = vpop.f32.mrb[0].mxu0
        %v531 = vadd.f32 0.0, %v530
        %v532 = vpop.f32.mrb[0].mxu0
        %533 = vdwg.mxu0
        %v534 = vadd.f32 %v365, %v504
        %v535 = vadd.f32 %v366, %v507
        %v536 = vadd.f32 %v367, %v512
        %v537 = vadd.f32 %v368, %v515
        %v538 = vadd.f32 %v369, %v520
        %v539 = vadd.f32 %v370, %v523
        %v540 = vadd.f32 %v371, %v528
        %v541 = vadd.f32 %v372, %v531
        %542 = vst [vmem:[#allocation2] sm:$0xff] %v534
        %543 = vst [vmem:[#allocation2 + $0x8] sm:$0xff] %v535
        %544 = vst [vmem:[#allocation2 + $0x10] sm:$0xff] %v536
        %545 = vst [vmem:[#allocation2 + $0x18] sm:$0xff] %v537
        %546 = vst [vmem:[#allocation2 + $0x20] sm:$0xff] %v538
        %547 = vst [vmem:[#allocation2 + $0x28] sm:$0xff] %v539
        %548 = vst [vmem:[#allocation2 + $0x30] sm:$0xff] %v540
        %549 = vst [vmem:[#allocation2 + $0x38] sm:$0xff] %v541
        // Predicated region
        $region45: #{resnet_block_forward.7} parent=39 // pred_check
          %p550 = pneg %p353
        $region46: #{resnet_block_forward.7} parent=39 // pred_check_branch
          %552 = sbr.rel (%p550) target = $region48
        $region47: #{resnet_block_forward.7} parent=39 // pred_region
          %v553 = vld [vmem:[#allocation2] sm:$0xff]
          %v554 = vld [vmem:[#allocation2 + $0x8] sm:$0xff]
          %v555 = vld [vmem:[#allocation2 + $0x10] sm:$0xff]
          %v556 = vld [vmem:[#allocation2 + $0x18] sm:$0xff]
          %v557 = vld [vmem:[#allocation2 + $0x20] sm:$0xff]
          %v558 = vld [vmem:[#allocation2 + $0x28] sm:$0xff]
          %v559 = vld [vmem:[#allocation2 + $0x30] sm:$0xff]
          %v560 = vld [vmem:[#allocation2 + $0x38] sm:$0xff]
          %v561 = vld [vmem:[%s338] sm:$0x1]
          %v563 = vlaneseq
          %v564 = vshrl.u32 %v563, 7
          %v565 = vsub.s32 0, %v564
          %v566 = vrot.slane %v561, %v565
          %v568 = vmul.f32 %v553, %v566
          %v569 = vmul.f32 %v554, %v566
          %v570 = vmul.f32 %v555, %v566
          %v571 = vmul.f32 %v556, %v566
          %v572 = vmul.f32 %v557, %v566
          %v573 = vmul.f32 %v558, %v566
          %v574 = vmul.f32 %v559, %v566
          %v575 = vmul.f32 %v560, %v566
          %v576 = vld [vmem:[%s341] sm:$0x1]
          %v578 = vlaneseq
          %v579 = vshrl.u32 %v578, 7
          %v580 = vsub.s32 0, %v579
          %v581 = vrot.slane %v576, %v580
          %v583 = vadd.f32 %v568, %v581
          %v584 = vadd.f32 %v569, %v581
          %v585 = vadd.f32 %v570, %v581
          %v586 = vadd.f32 %v571, %v581
          %v587 = vadd.f32 %v572, %v581
          %v588 = vadd.f32 %v573, %v581
          %v589 = vadd.f32 %v574, %v581
          %v590 = vadd.f32 %v575, %v581
          %v591 = vld [vmem:[%s349] sm:$0xff]
          %v592 = vld [vmem:[%s349 + $0x8] sm:$0xff]
          %v593 = vld [vmem:[%s349 + $0x10] sm:$0xff]
          %v594 = vld [vmem:[%s349 + $0x18] sm:$0xff]
          %v595 = vld [vmem:[%s349 + $0x20] sm:$0xff]
          %v596 = vld [vmem:[%s349 + $0x28] sm:$0xff]
          %v597 = vld [vmem:[%s349 + $0x30] sm:$0xff]
          %v598 = vld [vmem:[%s349 + $0x38] sm:$0xff]
          %v599 = vadd.f32 %v583, %v591
          %v600 = vadd.f32 %v584, %v592
          %v601 = vadd.f32 %v585, %v593
          %v602 = vadd.f32 %v586, %v594
          %v603 = vadd.f32 %v587, %v595
          %v604 = vadd.f32 %v588, %v596
          %v605 = vadd.f32 %v589, %v597
          %v606 = vadd.f32 %v590, %v598
          %v607 = vmax.f32 %v599, 0.0
          %v608 = vmax.f32 %v600, 0.0
          %v609 = vmax.f32 %v601, 0.0
          %v610 = vmax.f32 %v602, 0.0
          %v611 = vmax.f32 %v603, 0.0
          %v612 = vmax.f32 %v604, 0.0
          %v613 = vmax.f32 %v605, 0.0
          %v614 = vmax.f32 %v606, 0.0
          %615 = vst [vmem:[%s317] sm:$0xff] %v607
          %616 = vst [vmem:[%s317 + $0x8] sm:$0xff] %v608
          %617 = vst [vmem:[%s317 + $0x10] sm:$0xff] %v609
          %618 = vst [vmem:[%s317 + $0x18] sm:$0xff] %v610
          %619 = vst [vmem:[%s317 + $0x20] sm:$0xff] %v611
          %620 = vst [vmem:[%s317 + $0x28] sm:$0xff] %v612
          %621 = vst [vmem:[%s317 + $0x30] sm:$0xff] %v613
          %622 = vst [vmem:[%s317 + $0x38] sm:$0xff] %v614
        $region48: #{resnet_block_forward.7} parent=39 // pred_fallthru
          _
        %s623 = sand.u32 %s184, 1
        %s624 = scalar_lea.sflag [#allocation4], %s623
        %s625 = sand.u32 %s184, 1
        %s626 = smul.addr %s625, 64
        %s627 = scalar_lea.vmem [#allocation3], %s626
        // Predicated region
        $region49: #{resnet_block_forward.7} parent=39 // pred_check
          %p628 = pneg %p194
        $region50: #{resnet_block_forward.7} parent=39 // pred_check_branch
          %630 = sbr.rel (%p628) target = $region52
        $region51: #{resnet_block_forward.7} parent=39 // pred_region
          %s631 = smul.u32 8, %s24
          %s633 = ssub.s32 1024, 1024
          %634 = vsyncadd %s624, %s633
          %s635 = sadd.s32 %s25, %s631
          %s636 = smul.addr %s635, 128
          %s637 = scalar_lea.hbm %s5, %s636
          %s638 = sshll.u32 %s627, 4
          %s639 = int_to_ptr.vmem [resolvable:$true] %s638
          %644 = dma.vmem_to_hbm [thread:$0]  %s639, 1024, %s637, %s624, 128, 128, 8
        $region52: #{resnet_block_forward.7} parent=39 // pred_fallthru
          _
      $region40: #{resnet_block_forward.7} parent=5 // pred_fallthru
        _
      %p645 = scmp.le.s32.totalorder 2, %s14
      // Predicated region
      $region53: #{resnet_block_forward.7} parent=5 // pred_check
        %p646 = pneg %p645
      $region54: #{resnet_block_forward.7} parent=5 // pred_check_branch
        %648 = sbr.rel (%p646) target = $region56
      $region55: #{resnet_block_forward.7} parent=5 // pred_region
        %s649 = ssub.s32 %s14, 2
        // Predicated region
        $region57: #{resnet_block_forward.7} parent=55 // pred_check
          %p650 = pneg %p200
        $region58: #{resnet_block_forward.7} parent=55 // pred_check_branch
          %652 = sbr.rel (%p650) target = $region60
        $region59: #{resnet_block_forward.7} parent=55 // pred_region
          %s653 = sand.u32 %s185, 1
          %s654 = scalar_lea.sflag [#allocation4], %s653
          %s655 = sand.u32 %s185, 1
          %s656 = smul.addr %s655, 64
          %s657 = scalar_lea.vmem [#allocation3], %s656
          %658 = dma.done %s654, 1024
        $region60: #{resnet_block_forward.7} parent=55 // pred_fallthru
          _
      $region56: #{resnet_block_forward.7} parent=5 // pred_fallthru
        _
    $region6: #{resnet_block_forward.7} parent=1 // loop_footer
      %s18 = sadd.s32 1, %s14
    $region7: #{resnet_block_forward.7} parent=1 // loop_footer_branch
      %13 = sbr.rel target = $region3
    $region8: #{resnet_block_forward.7} parent=1 // loop_exit
      _
    %659 = vsyncpa [#allocation4], 1
    %s660 = scalar_lea.sflag [#allocation4], 1
    %661 = vsyncpa %s660, 1

</llo_original>
